<compile_context>
chip_gen: v7x
topology: tpu7x:2x2x1
jax: 0.10.0
libtpu: 0.0.40
codegen_flags: <defaults>
</compile_context>

<pallas_src>
import jax
import jax.numpy as jnp
from jax.experimental import pallas as pl
from jax.experimental.pallas import tpu as pltpu


# ------------------------------ small helpers ------------------------------ #

def _round_up(x, m):
    return (x + m - 1) // m * m


def _pick_row_tile(rows, lanes, budget_bytes=4 << 20):
    """Largest row tile that divides `rows` and keeps one block <= budget.

    Candidates are multiples of 16 so bf16 blocks stay sublane-tile aligned;
    falls back to a single full-`rows` block (always legal, small in this net).
    """
    for cand in (1024, 512, 256, 128, 64, 32, 16):
        if rows % cand == 0 and cand * lanes * 4 <= budget_bytes:
            return cand
    return rows


# ----------------------------- Pallas kernels ------------------------------ #

def _matmul_kernel(a_ref, b_ref, o_ref):
    """bf16 x bf16 -> f32 accumulation on the MXU, bf16 on the final store."""
    o_ref[...] = jnp.dot(a_ref[...], b_ref[...],
                         preferred_element_type=jnp.float32).astype(o_ref.dtype)


def pallas_matmul(a, b, tile_m):
    """a: (Mp, Kp) bf16, b: (Kp, Np) bf16 -> (Mp, Np) bf16.

    K fits one tile for every DCGAN layer, so there is no K grid and no f32
    accumulator scratch.  B's block index is constant, so it is DMA'd once and
    stays VMEM-resident while the M grid streams A / the output.
    """
    Mp, Kp = a.shape
    Kp2, Np = b.shape
    assert Kp == Kp2 and Mp % tile_m == 0
    return pl.pallas_call(
        _matmul_kernel,
        out_shape=jax.ShapeDtypeStruct((Mp, Np), jnp.bfloat16),
        grid=(Mp // tile_m,),
        in_specs=[pl.BlockSpec((tile_m, Kp), lambda i: (i, 0)),
                  pl.BlockSpec((Kp, Np), lambda i: (0, 0))],   # resident B
        out_specs=pl.BlockSpec((tile_m, Np), lambda i: (i, 0)),
        compiler_params=pltpu.CompilerParams(
            dimension_semantics=("parallel",),
            vmem_limit_bytes=48 * 1024 * 1024),
    )(a, b)


def _col_stats_kernel(x_ref, sum_ref, sq_ref, acc_s, acc_q):
    @pl.when(pl.program_id(0) == 0)
    def _():
        acc_s[...] = jnp.zeros_like(acc_s)
        acc_q[...] = jnp.zeros_like(acc_q)

    x = x_ref[...].astype(jnp.float32)          # (tile_g, 8, L)
    acc_s[...] += jnp.sum(x, axis=0)            # cross-vreg adds only
    acc_q[...] += jnp.sum(x * x, axis=0)

    @pl.when(pl.program_id(0) == pl.num_programs(0) - 1)
    def _():                                    # single cross-sublane reduce
        sum_ref[...] = jnp.sum(acc_s[...], axis=0, keepdims=True)
        sq_ref[...] = jnp.sum(acc_q[...], axis=0, keepdims=True)


def pallas_col_stats(x2):
    """Per-column sum and sum-of-squares (f32) over rows of an (R, L) matrix."""
    R, L = x2.shape
    if R % 8:
        x2 = jnp.pad(x2, ((0, 8 - R % 8), (0, 0)))   # zero rows don't change sums
        R = x2.shape[0]
    G = R // 8
    x3 = x2.reshape(G, 8, L)                          # layout-preserving split
    tile_g = 1
    for cand in (512, 256, 128, 64, 32, 16, 8, 4, 2, 1):
        if G % cand == 0 and cand * 8 * L * 4 <= (4 << 20):
            tile_g = cand
            break
    return pl.pallas_call(
        _col_stats_kernel,
        out_shape=(jax.ShapeDtypeStruct((1, L), jnp.float32),
                   jax.ShapeDtypeStruct((1, L), jnp.float32)),
        grid=(G // tile_g,),
        in_specs=[pl.BlockSpec((tile_g, 8, L), lambda i: (i, 0, 0))],
        out_specs=(pl.BlockSpec((1, L), lambda i: (0, 0)),
                   pl.BlockSpec((1, L), lambda i: (0, 0))),
        scratch_shapes=[pltpu.VMEM((8, L), jnp.float32),
                        pltpu.VMEM((8, L), jnp.float32)],
        compiler_params=pltpu.CompilerParams(
            dimension_semantics=("arbitrary",)),
    )(x3)


def _bn_relu_kernel(x_ref, scale_ref, bias_ref, o_ref):
    x = x_ref[...].astype(jnp.float32)                # f32 math (v5e-safe)
    y = jnp.maximum(x * scale_ref[...] + bias_ref[...], 0.0)
    o_ref[...] = y.astype(o_ref.dtype)                # bf16 store


def pallas_bn_relu_apply(x2, scale_row, bias_row):
    """Fused per-column affine (BatchNorm) + ReLU; bf16 in, bf16 out."""
    R, L = x2.shape
    tile_r = _pick_row_tile(R, L)
    return pl.pallas_call(
        _bn_relu_kernel,
        out_shape=jax.ShapeDtypeStruct((R, L), jnp.bfloat16),
        grid=(R // tile_r,),
        in_specs=[pl.BlockSpec((tile_r, L), lambda i: (i, 0)),
                  pl.BlockSpec((1, L), lambda i: (0, 0)),
                  pl.BlockSpec((1, L), lambda i: (0, 0))],
        out_specs=pl.BlockSpec((tile_r, L), lambda i: (i, 0)),
        compiler_params=pltpu.CompilerParams(
            dimension_semantics=("parallel",)),
    )(x2, scale_row, bias_row)


def _tanh_kernel(x_ref, o_ref):
    o_ref[...] = jnp.tanh(x_ref[...].astype(jnp.float32))   # EUP in f32


def pallas_tanh(x2):
    R, L = x2.shape
    tile_r = _pick_row_tile(R, L)
    return pl.pallas_call(
        _tanh_kernel,
        out_shape=jax.ShapeDtypeStruct((R, L), jnp.float32),
        grid=(R // tile_r,),
        in_specs=[pl.BlockSpec((tile_r, L), lambda i: (i, 0))],
        out_specs=pl.BlockSpec((tile_r, L), lambda i: (i, 0)),
        compiler_params=pltpu.CompilerParams(
            dimension_semantics=("parallel",)),
    )(x2)


# ------------------------------- layer glue -------------------------------- #

def _col2im(y, stride, pad, OH, OW):
    """Overlap-add: y[n,h,w,kh,kw,c] contributes at (h*s - pad + kh, ...)."""
    N, H, W, KH, KW, C = y.shape
    dt = y.dtype
    if stride == 1:
        canvas = jnp.zeros((N, H + KH - 1, W + KW - 1, C), dt)
        for kh in range(KH):
            for kw in range(KW):
                canvas = canvas + jnp.pad(
                    y[:, :, :, kh, kw, :],
                    ((0, 0), (kh, KH - 1 - kh), (kw, KW - 1 - kw), (0, 0)))
        return canvas[:, pad:pad + OH, pad:pad + OW, :]

    # stride 2, kernel 4, pad 1: each output parity phase (rh, rw) is an
    # overlap-add of 2x2 shifted taps.  Only the small (N,H,W,C) slices are
    # padded (never the 16x-expanded 6-D tensor), the crop is folded into the
    # per-phase slice, and the phases are interleaved directly at output size.
    assert stride == 2 and KH == 4 and KW == 4 and pad == 1
    phases = {}
    for rh in range(2):
        for rw in range(2):
            acc = jnp.zeros((N, H + 1, W + 1, C), dt)
            for ah in range(2):
                for aw in range(2):
                    acc = acc + jnp.pad(
                        y[:, :, :, rh + 2 * ah, rw + 2 * aw, :],
                        ((0, 0), (ah, 1 - ah), (aw, 1 - aw), (0, 0)))
            r0 = 1 - rh            # rh=0 keeps rows 1..H, rh=1 keeps rows 0..H-1
            c0 = 1 - rw
            phases[(rh, rw)] = acc[:, r0:r0 + H, c0:c0 + W, :]
    # out[:, 2m+a, 2q+b, :]: a=0 -> rh=1 phase, a=1 -> rh=0 (same for columns).
    row_even = jnp.stack([phases[(1, 1)], phases[(1, 0)]], axis=3)
    row_odd = jnp.stack([phases[(0, 1)], phases[(0, 0)]], axis=3)
    ph = jnp.stack([row_even, row_odd], axis=2)       # (N, H, 2, W, 2, C)
    return ph.reshape(N, 2 * H, 2 * W, C)


def conv_transpose_nhwc(x, w_t, stride, pad):
    """ConvTranspose2d(bias=False) on NHWC bf16 input.

    x:   (N, H, W, Cin) bf16
    w_t: PyTorch weight layout (Cin, Cout, KH, KW) f32
    Returns conv output (N, OH, OW, Cout) bf16.
    """
    N, H, W, Cin = x.shape
    _, Cout, KH, KW = w_t.shape
    OH = (H - 1) * stride - 2 * pad + KH
    OW = (W - 1) * stride - 2 * pad + KW

    M, K, Ncols = N * H * W, Cin, KH * KW * Cout
    a = x.reshape(M, K)                                            # already bf16
    b = w_t.transpose(0, 2, 3, 1).reshape(K, Ncols).astype(jnp.bfloat16)

    # Tile selection: 256/512 rows for the big layers (full MXU pushes on
    # v6e/v7x, >=2 parallel grid steps for megacore); 16-aligned for tiny M.
    if M >= 1024:
        tile_m = 512
    elif M >= 512:
        tile_m = 256
    else:
        tile_m = _round_up(M, 16)
    Mp, Kp, Np = _round_up(M, tile_m), _round_up(K, 128), _round_up(Ncols, 128)
    a_p = jnp.pad(a, ((0, Mp - M), (0, Kp - K)))
    b_p = jnp.pad(b, ((0, Kp - K), (0, Np - Ncols)))

    y = pallas_matmul(a_p, b_p, tile_m)                            # (Mp, Np) bf16
    y = y[:M, :Ncols].reshape(N, H, W, KH, KW, Cout)
    return _col2im(y, stride, pad, OH, OW)


def batchnorm_relu(out_nhwc, gamma, beta, eps=1e-5):
    """BatchNorm2d (training-mode batch stats, biased var) + ReLU, bf16 I/O."""
    N, OH, OW, C = out_nhwc.shape
    count = N * OH * OW
    if (OW * C) % 128 == 0:
        # Lane-dense layout: rows = N*OH, lanes = OW*C (channel fastest).
        L = OW * C
        x2 = out_nhwc.reshape(N * OH, L)
        s, sq = pallas_col_stats(x2)
        s_c = s.reshape(OW, C).sum(axis=0)
        sq_c = sq.reshape(OW, C).sum(axis=0)
        mean = s_c / count
        var = sq_c / count - mean * mean
        scale_c = gamma * jax.lax.rsqrt(var + eps)
        bias_c = beta - mean * scale_c
        scale_row = jnp.tile(scale_c, OW).reshape(1, L)
        bias_row = jnp.tile(bias_c, OW).reshape(1, L)
        y2 = pallas_bn_relu_apply(x2, scale_row, bias_row)
        return y2.reshape(N, OH, OW, C)
    # Fallback: pad channels to a lane multiple (padded lanes stay zero).
    Cp = _round_up(C, 128)
    x2 = jnp.pad(out_nhwc,
                 ((0, 0), (0, 0), (0, 0), (0, Cp - C))).reshape(N * OH * OW, Cp)
    s, sq = pallas_col_stats(x2)
    mean = s[0, :C] / count
    var = sq[0, :C] / count - mean * mean
    scale_c = gamma * jax.lax.rsqrt(var + eps)
    bias_c = beta - mean * scale_c
    scale_row = jnp.pad(scale_c, (0, Cp - C)).reshape(1, Cp)
    bias_row = jnp.pad(bias_c, (0, Cp - C)).reshape(1, Cp)
    y2 = pallas_bn_relu_apply(x2, scale_row, bias_row)
    return y2[:, :C].reshape(N, OH, OW, C)


def tanh_activation(out_nhwc):
    """Elementwise tanh on a lane-dense view; L is chosen to divide the element
    count so no padded flatten copy is materialized.  Output is f32."""
    shape = out_nhwc.shape
    total = out_nhwc.size
    L = None
    for cand in (2048, 1024, 512, 256, 128):
        if total % cand == 0:
            L = cand
            break
    if L is None:
        # TODO(synk): ragged element count; padded flat fallback (never hit for
        # 64x64 DCGAN outputs).
        L = 128
        totp = _round_up(total, L)
        flat = jnp.pad(out_nhwc.reshape(-1), (0, totp - total))
        y2 = pallas_tanh(flat.reshape(totp // L, L))
        return y2.reshape(-1)[:total].reshape(shape)
    y2 = pallas_tanh(out_nhwc.reshape(total // L, L))
    return y2.reshape(shape)


# ------------------------------- Generator --------------------------------- #

def init_generator_params(key, z_dim, g_hidden, image_channel):
    """DCGAN-style init: conv ~ N(0, 0.02), BN gamma ~ N(1, 0.02), beta = 0."""
    chans = [z_dim, g_hidden * 8, g_hidden * 4, g_hidden * 2, g_hidden,
             image_channel]
    params = []
    for i in range(5):
        key, k1, k2 = jax.random.split(key, 3)
        w = 0.02 * jax.random.normal(k1, (chans[i], chans[i + 1], 4, 4),
                                     jnp.float32)
        if i < 4:
            gamma = 1.0 + 0.02 * jax.random.normal(k2, (chans[i + 1],),
                                                   jnp.float32)
            beta = jnp.zeros((chans[i + 1],), jnp.float32)
        else:
            gamma, beta = None, None
        params.append((w, gamma, beta))
    return params


def generator_forward(x_nchw, params):
    """x_nchw: (N, z_dim, 1, 1) -> (N, image_channel, 64, 64), like PyTorch."""
    x = jnp.transpose(x_nchw, (0, 2, 3, 1)).astype(jnp.bfloat16)   # NHWC bf16
    strides = (1, 2, 2, 2, 2)
    pads = (0, 1, 1, 1, 1)
    for i, (w, gamma, beta) in enumerate(params):
        out = conv_transpose_nhwc(x, w, strides[i], pads[i])        # bf16
        if gamma is not None:
            x = batchnorm_relu(out, gamma, beta)                    # bf16
        else:                          # final layer: Tanh, no BatchNorm
            x = tanh_activation(out)                                # f32
    return jnp.transpose(x, (0, 3, 1, 2))                           # NCHW f32


if __name__ == "__main__":
    # Small configuration consistent with the module: z_dim=16, g_hidden=8,
    # image_channel=1, batch=2 -> output (2, 1, 64, 64).
    z_dim, g_hidden, image_channel, batch = 16, 8, 1, 2
    key = jax.random.PRNGKey(0)
    pkey, xkey = jax.random.split(key)
    params = init_generator_params(pkey, z_dim, g_hidden, image_channel)
    x = jax.random.normal(xkey, (batch, z_dim, 1, 1), jnp.float32)

    fwd = jax.jit(generator_forward)
    out = jax.block_until_ready(fwd(x, params))
    assert out.shape == (batch, image_channel, 64, 64), out.shape
    assert bool(jnp.isfinite(out).all())
    print("KERNEL_OK")
</pallas_src>

<mosaic_0001>
module attributes {stable_mosaic.version = 11 : i64} {
  func.func @_matmul_kernel(%arg0: i32, %arg1: memref<16x128xbf16, #tpu.memory_space<vmem>>, %arg2: memref<128x1024xbf16, #tpu.memory_space<vmem>>, %arg3: memref<16x1024xbf16, #tpu.memory_space<vmem>>) attributes {dimension_semantics = [#tpu.dimension_semantics<parallel>], iteration_bounds = array<i64: 1>, scalar_prefetch = 0 : i64, scratch_operands = 0 : i64, tpu.core_type = #tpu.core_type<tc>, window_params = [{transform_indices = @transform_0, window_bounds = array<i64: 16, 128>}, {pipeline_mode = #tpu.pipeline_mode<synchronous>, transform_indices = @transform_1, window_bounds = array<i64: 128, 1024>}, {transform_indices = @transform_2, window_bounds = array<i64: 16, 1024>}]} {
    %c0 = arith.constant 0 : index
    %c0_0 = arith.constant 0 : index
    %0 = vector.load %arg1[%c0, %c0_0] : memref<16x128xbf16, #tpu.memory_space<vmem>>, vector<16x128xbf16>
    %c0_1 = arith.constant 0 : index
    %c0_2 = arith.constant 0 : index
    %1 = vector.load %arg2[%c0_1, %c0_2] : memref<128x1024xbf16, #tpu.memory_space<vmem>>, vector<128x1024xbf16>
    %cst = arith.constant dense<0.000000e+00> : vector<16x1024xf32>
    %2 = tpu.matmul %0, %1, %cst {dimension_numbers = #tpu.dot_dimension_numbers<[1], [0], [0], [1], [0, 0, 1, 1], [], []>} : vector<16x128xbf16>, vector<128x1024xbf16>, vector<16x1024xf32> -> vector<16x1024xf32>
    %3 = arith.truncf %2 : vector<16x1024xf32> to vector<16x1024xbf16>
    %c0_3 = arith.constant 0 : index
    %c0_4 = arith.constant 0 : index
    %4 = vector.load %arg3[%c0_3, %c0_4] : memref<16x1024xbf16, #tpu.memory_space<vmem>>, vector<16x1024xbf16>
    tpu.vector_store %arg3[%c0_3, %c0_4], %3 {strides = array<i32>} : memref<16x1024xbf16, #tpu.memory_space<vmem>>, vector<16x1024xbf16>,
    return
  }
  func.func @transform_0(%arg0: i32) -> (i32, i32) {
    %c0_i32 = arith.constant 0 : i32
    %c0_i32_0 = arith.constant 0 : i32
    return %arg0, %c0_i32 : i32, i32
  }
  func.func @transform_1(%arg0: i32) -> (i32, i32) {
    %c0_i32 = arith.constant 0 : i32
    %c0_i32_0 = arith.constant 0 : i32
    %c0_i32_1 = arith.constant 0 : i32
    return %c0_i32, %c0_i32_0 : i32, i32
  }
  func.func @transform_2(%arg0: i32) -> (i32, i32) {
    %c0_i32 = arith.constant 0 : i32
    %c0_i32_0 = arith.constant 0 : i32
    return %arg0, %c0_i32 : i32, i32
  }
}

module attributes {stable_mosaic.version = 11 : i64} {
  func.func @_col_stats_kernel(%arg0: i32, %arg1: memref<1x8x256xbf16, #tpu.memory_space<vmem>>, %arg2: memref<1x256xf32, #tpu.memory_space<vmem>>, %arg3: memref<1x256xf32, #tpu.memory_space<vmem>>, %arg4: memref<8x256xf32, #tpu.memory_space<vmem>>, %arg5: memref<8x256xf32, #tpu.memory_space<vmem>>) attributes {dimension_semantics = [#tpu.dimension_semantics<arbitrary>], iteration_bounds = array<i64: 1>, scalar_prefetch = 0 : i64, scratch_operands = 2 : i64, tpu.core_type = #tpu.core_type<tc>, window_params = [{transform_indices = @transform_0, window_bounds = array<i64: 1, 8, 256>}, {pipeline_mode = #tpu.pipeline_mode<synchronous>, transform_indices = @transform_1, window_bounds = array<i64: 1, 256>}, {pipeline_mode = #tpu.pipeline_mode<synchronous>, transform_indices = @transform_2, window_bounds = array<i64: 1, 256>}]} {
    %c0_i32 = arith.constant 0 : i32
    %0 = arith.cmpi eq, %arg0, %c0_i32 : i32
    %1 = arith.extui %0 : i1 to i32
    %c0_i32_0 = arith.constant 0 : i32
    %2 = arith.cmpi ne, %1, %c0_i32_0 : i32
    scf.if %2 {
      %cst_14 = arith.constant 0.000000e+00 : f32
      %17 = vector.broadcast %cst_14 : f32 to vector<8x256xf32>
      %c0_15 = arith.constant 0 : index
      %c0_16 = arith.constant 0 : index
      %18 = vector.load %arg4[%c0_15, %c0_16] : memref<8x256xf32, #tpu.memory_space<vmem>>, vector<8x256xf32>
      tpu.vector_store %arg4[%c0_15, %c0_16], %17 {strides = array<i32>} : memref<8x256xf32, #tpu.memory_space<vmem>>, vector<8x256xf32>,
      %cst_17 = arith.constant 0.000000e+00 : f32
      %19 = vector.broadcast %cst_17 : f32 to vector<8x256xf32>
      %c0_18 = arith.constant 0 : index
      %c0_19 = arith.constant 0 : index
      %20 = vector.load %arg5[%c0_18, %c0_19] : memref<8x256xf32, #tpu.memory_space<vmem>>, vector<8x256xf32>
      tpu.vector_store %arg5[%c0_18, %c0_19], %19 {strides = array<i32>} : memref<8x256xf32, #tpu.memory_space<vmem>>, vector<8x256xf32>,
    } else {
    }
    %c0 = arith.constant 0 : index
    %c0_1 = arith.constant 0 : index
    %c0_2 = arith.constant 0 : index
    %3 = vector.load %arg1[%c0, %c0_1, %c0_2] : memref<1x8x256xbf16, #tpu.memory_space<vmem>>, vector<1x8x256xbf16>
    %4 = arith.extf %3 : vector<1x8x256xbf16> to vector<1x8x256xf32>
    %c0_3 = arith.constant 0 : index
    %c0_4 = arith.constant 0 : index
    %5 = vector.load %arg4[%c0_3, %c0_4] : memref<8x256xf32, #tpu.memory_space<vmem>>, vector<8x256xf32>
    %cst = arith.constant dense<0.000000e+00> : vector<8x256xf32>
    %6 = vector.multi_reduction <add>, %4, %cst [0] : vector<1x8x256xf32> to vector<8x256xf32>
    %7 = arith.addf %5, %6 : vector<8x256xf32>
    %c0_5 = arith.constant 0 : index
    %c0_6 = arith.constant 0 : index
    %8 = vector.load %arg4[%c0_5, %c0_6] : memref<8x256xf32, #tpu.memory_space<vmem>>, vector<8x256xf32>
    tpu.vector_store %arg4[%c0_5, %c0_6], %7 {strides = array<i32>} : memref<8x256xf32, #tpu.memory_space<vmem>>, vector<8x256xf32>,
    %c0_7 = arith.constant 0 : index
    %c0_8 = arith.constant 0 : index
    %9 = vector.load %arg5[%c0_7, %c0_8] : memref<8x256xf32, #tpu.memory_space<vmem>>, vector<8x256xf32>
    %10 = arith.mulf %4, %4 : vector<1x8x256xf32>
    %cst_9 = arith.constant dense<0.000000e+00> : vector<8x256xf32>
    %11 = vector.multi_reduction <add>, %10, %cst_9 [0] : vector<1x8x256xf32> to vector<8x256xf32>
    %12 = arith.addf %9, %11 : vector<8x256xf32>
    %c0_10 = arith.constant 0 : index
    %c0_11 = arith.constant 0 : index
    %13 = vector.load %arg5[%c0_10, %c0_11] : memref<8x256xf32, #tpu.memory_space<vmem>>, vector<8x256xf32>
    tpu.vector_store %arg5[%c0_10, %c0_11], %12 {strides = array<i32>} : memref<8x256xf32, #tpu.memory_space<vmem>>, vector<8x256xf32>,
    %c0_i32_12 = arith.constant 0 : i32
    %14 = arith.cmpi eq, %arg0, %c0_i32_12 : i32
    %15 = arith.extui %14 : i1 to i32
    %c0_i32_13 = arith.constant 0 : i32
    %16 = arith.cmpi ne, %15, %c0_i32_13 : i32
    scf.if %16 {
      %c0_14 = arith.constant 0 : index
      %c0_15 = arith.constant 0 : index
      %17 = vector.load %arg4[%c0_14, %c0_15] : memref<8x256xf32, #tpu.memory_space<vmem>>, vector<8x256xf32>
      %cst_16 = arith.constant dense<0.000000e+00> : vector<256xf32>
      %18 = vector.multi_reduction <add>, %17, %cst_16 [0] : vector<8x256xf32> to vector<256xf32>
      %19 = vector.shape_cast %18 : vector<256xf32> to vector<1x256xf32>
      %c0_17 = arith.constant 0 : index
      %c0_18 = arith.constant 0 : index
      %20 = vector.load %arg2[%c0_17, %c0_18] : memref<1x256xf32, #tpu.memory_space<vmem>>, vector<1x256xf32>
      tpu.vector_store %arg2[%c0_17, %c0_18], %19 {strides = array<i32>} : memref<1x256xf32, #tpu.memory_space<vmem>>, vector<1x256xf32>,
      %c0_19 = arith.constant 0 : index
      %c0_20 = arith.constant 0 : index
      %21 = vector.load %arg5[%c0_19, %c0_20] : memref<8x256xf32, #tpu.memory_space<vmem>>, vector<8x256xf32>
      %cst_21 = arith.constant dense<0.000000e+00> : vector<256xf32>
      %22 = vector.multi_reduction <add>, %21, %cst_21 [0] : vector<8x256xf32> to vector<256xf32>
      %23 = vector.shape_cast %22 : vector<256xf32> to vector<1x256xf32>
      %c0_22 = arith.constant 0 : index
      %c0_23 = arith.constant 0 : index
      %24 = vector.load %arg3[%c0_22, %c0_23] : memref<1x256xf32, #tpu.memory_space<vmem>>, vector<1x256xf32>
      tpu.vector_store %arg3[%c0_22, %c0_23], %23 {strides = array<i32>} : memref<1x256xf32, #tpu.memory_space<vmem>>, vector<1x256xf32>,
    } else {
    }
    return
  }
  func.func @transform_0(%arg0: i32) -> (i32, i32, i32) {
    %c0_i32 = arith.constant 0 : i32
    %c0_i32_0 = arith.constant 0 : i32
    %c0_i32_1 = arith.constant 0 : i32
    return %arg0, %c0_i32, %c0_i32_0 : i32, i32, i32
  }
  func.func @transform_1(%arg0: i32) -> (i32, i32) {
    %c0_i32 = arith.constant 0 : i32
    %c0_i32_0 = arith.constant 0 : i32
    %c0_i32_1 = arith.constant 0 : i32
    return %c0_i32, %c0_i32_0 : i32, i32
  }
  func.func @transform_2(%arg0: i32) -> (i32, i32) {
    %c0_i32 = arith.constant 0 : i32
    %c0_i32_0 = arith.constant 0 : i32
    %c0_i32_1 = arith.constant 0 : i32
    return %c0_i32, %c0_i32_0 : i32, i32
  }
}

module attributes {stable_mosaic.version = 11 : i64} {
  func.func @_bn_relu_kernel(%arg0: i32, %arg1: memref<8x256xbf16, #tpu.memory_space<vmem>>, %arg2: memref<1x256xf32, #tpu.memory_space<vmem>>, %arg3: memref<1x256xf32, #tpu.memory_space<vmem>>, %arg4: memref<8x256xbf16, #tpu.memory_space<vmem>>) attributes {dimension_semantics = [#tpu.dimension_semantics<parallel>], iteration_bounds = array<i64: 1>, scalar_prefetch = 0 : i64, scratch_operands = 0 : i64, tpu.core_type = #tpu.core_type<tc>, window_params = [{transform_indices = @transform_0, window_bounds = array<i64: 8, 256>}, {pipeline_mode = #tpu.pipeline_mode<synchronous>, transform_indices = @transform_1, window_bounds = array<i64: 1, 256>}, {pipeline_mode = #tpu.pipeline_mode<synchronous>, transform_indices = @transform_2, window_bounds = array<i64: 1, 256>}, {transform_indices = @transform_3, window_bounds = array<i64: 8, 256>}]} {
    %c0 = arith.constant 0 : index
    %c0_0 = arith.constant 0 : index
    %0 = vector.load %arg1[%c0, %c0_0] : memref<8x256xbf16, #tpu.memory_space<vmem>>, vector<8x256xbf16>
    %1 = arith.extf %0 : vector<8x256xbf16> to vector<8x256xf32>
    %c0_1 = arith.constant 0 : index
    %c0_2 = arith.constant 0 : index
    %2 = vector.load %arg2[%c0_1, %c0_2] : memref<1x256xf32, #tpu.memory_space<vmem>>, vector<1x256xf32>
    %3 = vector.broadcast %2 : vector<1x256xf32> to vector<8x256xf32>
    %4 = arith.mulf %1, %3 : vector<8x256xf32>
    %c0_3 = arith.constant 0 : index
    %c0_4 = arith.constant 0 : index
    %5 = vector.load %arg3[%c0_3, %c0_4] : memref<1x256xf32, #tpu.memory_space<vmem>>, vector<1x256xf32>
    %6 = vector.broadcast %5 : vector<1x256xf32> to vector<8x256xf32>
    %7 = arith.addf %4, %6 : vector<8x256xf32>
    %cst = arith.constant 0.000000e+00 : f32
    %8 = vector.broadcast %cst : f32 to vector<8x256xf32>
    %9 = arith.maximumf %7, %8 : vector<8x256xf32>
    %10 = arith.truncf %9 : vector<8x256xf32> to vector<8x256xbf16>
    %c0_5 = arith.constant 0 : index
    %c0_6 = arith.constant 0 : index
    %11 = vector.load %arg4[%c0_5, %c0_6] : memref<8x256xbf16, #tpu.memory_space<vmem>>, vector<8x256xbf16>
    tpu.vector_store %arg4[%c0_5, %c0_6], %10 {strides = array<i32>} : memref<8x256xbf16, #tpu.memory_space<vmem>>, vector<8x256xbf16>,
    return
  }
  func.func @transform_0(%arg0: i32) -> (i32, i32) {
    %c0_i32 = arith.constant 0 : i32
    %c0_i32_0 = arith.constant 0 : i32
    return %arg0, %c0_i32 : i32, i32
  }
  func.func @transform_1(%arg0: i32) -> (i32, i32) {
    %c0_i32 = arith.constant 0 : i32
    %c0_i32_0 = arith.constant 0 : i32
    %c0_i32_1 = arith.constant 0 : i32
    return %c0_i32, %c0_i32_0 : i32, i32
  }
  func.func @transform_2(%arg0: i32) -> (i32, i32) {
    %c0_i32 = arith.constant 0 : i32
    %c0_i32_0 = arith.constant 0 : i32
    %c0_i32_1 = arith.constant 0 : i32
    return %c0_i32, %c0_i32_0 : i32, i32
  }
  func.func @transform_3(%arg0: i32) -> (i32, i32) {
    %c0_i32 = arith.constant 0 : i32
    %c0_i32_0 = arith.constant 0 : i32
    return %arg0, %c0_i32 : i32, i32
  }
}

module attributes {stable_mosaic.version = 11 : i64} {
  func.func @_matmul_kernel(%arg0: i32, %arg1: memref<32x128xbf16, #tpu.memory_space<vmem>>, %arg2: memref<128x512xbf16, #tpu.memory_space<vmem>>, %arg3: memref<32x512xbf16, #tpu.memory_space<vmem>>) attributes {dimension_semantics = [#tpu.dimension_semantics<parallel>], iteration_bounds = array<i64: 1>, scalar_prefetch = 0 : i64, scratch_operands = 0 : i64, tpu.core_type = #tpu.core_type<tc>, window_params = [{transform_indices = @transform_0, window_bounds = array<i64: 32, 128>}, {pipeline_mode = #tpu.pipeline_mode<synchronous>, transform_indices = @transform_1, window_bounds = array<i64: 128, 512>}, {transform_indices = @transform_2, window_bounds = array<i64: 32, 512>}]} {
    %c0 = arith.constant 0 : index
    %c0_0 = arith.constant 0 : index
    %0 = vector.load %arg1[%c0, %c0_0] : memref<32x128xbf16, #tpu.memory_space<vmem>>, vector<32x128xbf16>
    %c0_1 = arith.constant 0 : index
    %c0_2 = arith.constant 0 : index
    %1 = vector.load %arg2[%c0_1, %c0_2] : memref<128x512xbf16, #tpu.memory_space<vmem>>, vector<128x512xbf16>
    %cst = arith.constant dense<0.000000e+00> : vector<32x512xf32>
    %2 = tpu.matmul %0, %1, %cst {dimension_numbers = #tpu.dot_dimension_numbers<[1], [0], [0], [1], [0, 0, 1, 1], [], []>} : vector<32x128xbf16>, vector<128x512xbf16>, vector<32x512xf32> -> vector<32x512xf32>
    %3 = arith.truncf %2 : vector<32x512xf32> to vector<32x512xbf16>
    %c0_3 = arith.constant 0 : index
    %c0_4 = arith.constant 0 : index
    %4 = vector.load %arg3[%c0_3, %c0_4] : memref<32x512xbf16, #tpu.memory_space<vmem>>, vector<32x512xbf16>
    tpu.vector_store %arg3[%c0_3, %c0_4], %3 {strides = array<i32>} : memref<32x512xbf16, #tpu.memory_space<vmem>>, vector<32x512xbf16>,
    return
  }
  func.func @transform_0(%arg0: i32) -> (i32, i32) {
    %c0_i32 = arith.constant 0 : i32
    %c0_i32_0 = arith.constant 0 : i32
    return %arg0, %c0_i32 : i32, i32
  }
  func.func @transform_1(%arg0: i32) -> (i32, i32) {
    %c0_i32 = arith.constant 0 : i32
    %c0_i32_0 = arith.constant 0 : i32
    %c0_i32_1 = arith.constant 0 : i32
    return %c0_i32, %c0_i32_0 : i32, i32
  }
  func.func @transform_2(%arg0: i32) -> (i32, i32) {
    %c0_i32 = arith.constant 0 : i32
    %c0_i32_0 = arith.constant 0 : i32
    return %arg0, %c0_i32 : i32, i32
  }
}

module attributes {stable_mosaic.version = 11 : i64} {
  func.func @_col_stats_kernel(%arg0: i32, %arg1: memref<2x8x256xbf16, #tpu.memory_space<vmem>>, %arg2: memref<1x256xf32, #tpu.memory_space<vmem>>, %arg3: memref<1x256xf32, #tpu.memory_space<vmem>>, %arg4: memref<8x256xf32, #tpu.memory_space<vmem>>, %arg5: memref<8x256xf32, #tpu.memory_space<vmem>>) attributes {dimension_semantics = [#tpu.dimension_semantics<arbitrary>], iteration_bounds = array<i64: 1>, scalar_prefetch = 0 : i64, scratch_operands = 2 : i64, tpu.core_type = #tpu.core_type<tc>, window_params = [{transform_indices = @transform_0, window_bounds = array<i64: 2, 8, 256>}, {pipeline_mode = #tpu.pipeline_mode<synchronous>, transform_indices = @transform_1, window_bounds = array<i64: 1, 256>}, {pipeline_mode = #tpu.pipeline_mode<synchronous>, transform_indices = @transform_2, window_bounds = array<i64: 1, 256>}]} {
    %c0_i32 = arith.constant 0 : i32
    %0 = arith.cmpi eq, %arg0, %c0_i32 : i32
    %1 = arith.extui %0 : i1 to i32
    %c0_i32_0 = arith.constant 0 : i32
    %2 = arith.cmpi ne, %1, %c0_i32_0 : i32
    scf.if %2 {
      %cst_14 = arith.constant 0.000000e+00 : f32
      %17 = vector.broadcast %cst_14 : f32 to vector<8x256xf32>
      %c0_15 = arith.constant 0 : index
      %c0_16 = arith.constant 0 : index
      %18 = vector.load %arg4[%c0_15, %c0_16] : memref<8x256xf32, #tpu.memory_space<vmem>>, vector<8x256xf32>
      tpu.vector_store %arg4[%c0_15, %c0_16], %17 {strides = array<i32>} : memref<8x256xf32, #tpu.memory_space<vmem>>, vector<8x256xf32>,
      %cst_17 = arith.constant 0.000000e+00 : f32
      %19 = vector.broadcast %cst_17 : f32 to vector<8x256xf32>
      %c0_18 = arith.constant 0 : index
      %c0_19 = arith.constant 0 : index
      %20 = vector.load %arg5[%c0_18, %c0_19] : memref<8x256xf32, #tpu.memory_space<vmem>>, vector<8x256xf32>
      tpu.vector_store %arg5[%c0_18, %c0_19], %19 {strides = array<i32>} : memref<8x256xf32, #tpu.memory_space<vmem>>, vector<8x256xf32>,
    } else {
    }
    %c0 = arith.constant 0 : index
    %c0_1 = arith.constant 0 : index
    %c0_2 = arith.constant 0 : index
    %3 = vector.load %arg1[%c0, %c0_1, %c0_2] : memref<2x8x256xbf16, #tpu.memory_space<vmem>>, vector<2x8x256xbf16>
    %4 = arith.extf %3 : vector<2x8x256xbf16> to vector<2x8x256xf32>
    %c0_3 = arith.constant 0 : index
    %c0_4 = arith.constant 0 : index
    %5 = vector.load %arg4[%c0_3, %c0_4] : memref<8x256xf32, #tpu.memory_space<vmem>>, vector<8x256xf32>
    %cst = arith.constant dense<0.000000e+00> : vector<8x256xf32>
    %6 = vector.multi_reduction <add>, %4, %cst [0] : vector<2x8x256xf32> to vector<8x256xf32>
    %7 = arith.addf %5, %6 : vector<8x256xf32>
    %c0_5 = arith.constant 0 : index
    %c0_6 = arith.constant 0 : index
    %8 = vector.load %arg4[%c0_5, %c0_6] : memref<8x256xf32, #tpu.memory_space<vmem>>, vector<8x256xf32>
    tpu.vector_store %arg4[%c0_5, %c0_6], %7 {strides = array<i32>} : memref<8x256xf32, #tpu.memory_space<vmem>>, vector<8x256xf32>,
    %c0_7 = arith.constant 0 : index
    %c0_8 = arith.constant 0 : index
    %9 = vector.load %arg5[%c0_7, %c0_8] : memref<8x256xf32, #tpu.memory_space<vmem>>, vector<8x256xf32>
    %10 = arith.mulf %4, %4 : vector<2x8x256xf32>
    %cst_9 = arith.constant dense<0.000000e+00> : vector<8x256xf32>
    %11 = vector.multi_reduction <add>, %10, %cst_9 [0] : vector<2x8x256xf32> to vector<8x256xf32>
    %12 = arith.addf %9, %11 : vector<8x256xf32>
    %c0_10 = arith.constant 0 : index
    %c0_11 = arith.constant 0 : index
    %13 = vector.load %arg5[%c0_10, %c0_11] : memref<8x256xf32, #tpu.memory_space<vmem>>, vector<8x256xf32>
    tpu.vector_store %arg5[%c0_10, %c0_11], %12 {strides = array<i32>} : memref<8x256xf32, #tpu.memory_space<vmem>>, vector<8x256xf32>,
    %c0_i32_12 = arith.constant 0 : i32
    %14 = arith.cmpi eq, %arg0, %c0_i32_12 : i32
    %15 = arith.extui %14 : i1 to i32
    %c0_i32_13 = arith.constant 0 : i32
    %16 = arith.cmpi ne, %15, %c0_i32_13 : i32
    scf.if %16 {
      %c0_14 = arith.constant 0 : index
      %c0_15 = arith.constant 0 : index
      %17 = vector.load %arg4[%c0_14, %c0_15] : memref<8x256xf32, #tpu.memory_space<vmem>>, vector<8x256xf32>
      %cst_16 = arith.constant dense<0.000000e+00> : vector<256xf32>
      %18 = vector.multi_reduction <add>, %17, %cst_16 [0] : vector<8x256xf32> to vector<256xf32>
      %19 = vector.shape_cast %18 : vector<256xf32> to vector<1x256xf32>
      %c0_17 = arith.constant 0 : index
      %c0_18 = arith.constant 0 : index
      %20 = vector.load %arg2[%c0_17, %c0_18] : memref<1x256xf32, #tpu.memory_space<vmem>>, vector<1x256xf32>
      tpu.vector_store %arg2[%c0_17, %c0_18], %19 {strides = array<i32>} : memref<1x256xf32, #tpu.memory_space<vmem>>, vector<1x256xf32>,
      %c0_19 = arith.constant 0 : index
      %c0_20 = arith.constant 0 : index
      %21 = vector.load %arg5[%c0_19, %c0_20] : memref<8x256xf32, #tpu.memory_space<vmem>>, vector<8x256xf32>
      %cst_21 = arith.constant dense<0.000000e+00> : vector<256xf32>
      %22 = vector.multi_reduction <add>, %21, %cst_21 [0] : vector<8x256xf32> to vector<256xf32>
      %23 = vector.shape_cast %22 : vector<256xf32> to vector<1x256xf32>
      %c0_22 = arith.constant 0 : index
      %c0_23 = arith.constant 0 : index
      %24 = vector.load %arg3[%c0_22, %c0_23] : memref<1x256xf32, #tpu.memory_space<vmem>>, vector<1x256xf32>
      tpu.vector_store %arg3[%c0_22, %c0_23], %23 {strides = array<i32>} : memref<1x256xf32, #tpu.memory_space<vmem>>, vector<1x256xf32>,
    } else {
    }
    return
  }
  func.func @transform_0(%arg0: i32) -> (i32, i32, i32) {
    %c0_i32 = arith.constant 0 : i32
    %c0_i32_0 = arith.constant 0 : i32
    %c0_i32_1 = arith.constant 0 : i32
    return %arg0, %c0_i32, %c0_i32_0 : i32, i32, i32
  }
  func.func @transform_1(%arg0: i32) -> (i32, i32) {
    %c0_i32 = arith.constant 0 : i32
    %c0_i32_0 = arith.constant 0 : i32
    %c0_i32_1 = arith.constant 0 : i32
    return %c0_i32, %c0_i32_0 : i32, i32
  }
  func.func @transform_2(%arg0: i32) -> (i32, i32) {
    %c0_i32 = arith.constant 0 : i32
    %c0_i32_0 = arith.constant 0 : i32
    %c0_i32_1 = arith.constant 0 : i32
    return %c0_i32, %c0_i32_0 : i32, i32
  }
}

module attributes {stable_mosaic.version = 11 : i64} {
  func.func @_bn_relu_kernel(%arg0: i32, %arg1: memref<16x256xbf16, #tpu.memory_space<vmem>>, %arg2: memref<1x256xf32, #tpu.memory_space<vmem>>, %arg3: memref<1x256xf32, #tpu.memory_space<vmem>>, %arg4: memref<16x256xbf16, #tpu.memory_space<vmem>>) attributes {dimension_semantics = [#tpu.dimension_semantics<parallel>], iteration_bounds = array<i64: 1>, scalar_prefetch = 0 : i64, scratch_operands = 0 : i64, tpu.core_type = #tpu.core_type<tc>, window_params = [{transform_indices = @transform_0, window_bounds = array<i64: 16, 256>}, {pipeline_mode = #tpu.pipeline_mode<synchronous>, transform_indices = @transform_1, window_bounds = array<i64: 1, 256>}, {pipeline_mode = #tpu.pipeline_mode<synchronous>, transform_indices = @transform_2, window_bounds = array<i64: 1, 256>}, {transform_indices = @transform_3, window_bounds = array<i64: 16, 256>}]} {
    %c0 = arith.constant 0 : index
    %c0_0 = arith.constant 0 : index
    %0 = vector.load %arg1[%c0, %c0_0] : memref<16x256xbf16, #tpu.memory_space<vmem>>, vector<16x256xbf16>
    %1 = arith.extf %0 : vector<16x256xbf16> to vector<16x256xf32>
    %c0_1 = arith.constant 0 : index
    %c0_2 = arith.constant 0 : index
    %2 = vector.load %arg2[%c0_1, %c0_2] : memref<1x256xf32, #tpu.memory_space<vmem>>, vector<1x256xf32>
    %3 = vector.broadcast %2 : vector<1x256xf32> to vector<16x256xf32>
    %4 = arith.mulf %1, %3 : vector<16x256xf32>
    %c0_3 = arith.constant 0 : index
    %c0_4 = arith.constant 0 : index
    %5 = vector.load %arg3[%c0_3, %c0_4] : memref<1x256xf32, #tpu.memory_space<vmem>>, vector<1x256xf32>
    %6 = vector.broadcast %5 : vector<1x256xf32> to vector<16x256xf32>
    %7 = arith.addf %4, %6 : vector<16x256xf32>
    %cst = arith.constant 0.000000e+00 : f32
    %8 = vector.broadcast %cst : f32 to vector<16x256xf32>
    %9 = arith.maximumf %7, %8 : vector<16x256xf32>
    %10 = arith.truncf %9 : vector<16x256xf32> to vector<16x256xbf16>
    %c0_5 = arith.constant 0 : index
    %c0_6 = arith.constant 0 : index
    %11 = vector.load %arg4[%c0_5, %c0_6] : memref<16x256xbf16, #tpu.memory_space<vmem>>, vector<16x256xbf16>
    tpu.vector_store %arg4[%c0_5, %c0_6], %10 {strides = array<i32>} : memref<16x256xbf16, #tpu.memory_space<vmem>>, vector<16x256xbf16>,
    return
  }
  func.func @transform_0(%arg0: i32) -> (i32, i32) {
    %c0_i32 = arith.constant 0 : i32
    %c0_i32_0 = arith.constant 0 : i32
    return %arg0, %c0_i32 : i32, i32
  }
  func.func @transform_1(%arg0: i32) -> (i32, i32) {
    %c0_i32 = arith.constant 0 : i32
    %c0_i32_0 = arith.constant 0 : i32
    %c0_i32_1 = arith.constant 0 : i32
    return %c0_i32, %c0_i32_0 : i32, i32
  }
  func.func @transform_2(%arg0: i32) -> (i32, i32) {
    %c0_i32 = arith.constant 0 : i32
    %c0_i32_0 = arith.constant 0 : i32
    %c0_i32_1 = arith.constant 0 : i32
    return %c0_i32, %c0_i32_0 : i32, i32
  }
  func.func @transform_3(%arg0: i32) -> (i32, i32) {
    %c0_i32 = arith.constant 0 : i32
    %c0_i32_0 = arith.constant 0 : i32
    return %arg0, %c0_i32 : i32, i32
  }
}

module attributes {stable_mosaic.version = 11 : i64} {
  func.func @_matmul_kernel(%arg0: i32, %arg1: memref<128x128xbf16, #tpu.memory_space<vmem>>, %arg2: memref<128x256xbf16, #tpu.memory_space<vmem>>, %arg3: memref<128x256xbf16, #tpu.memory_space<vmem>>) attributes {dimension_semantics = [#tpu.dimension_semantics<parallel>], iteration_bounds = array<i64: 1>, scalar_prefetch = 0 : i64, scratch_operands = 0 : i64, tpu.core_type = #tpu.core_type<tc>, window_params = [{transform_indices = @transform_0, window_bounds = array<i64: 128, 128>}, {pipeline_mode = #tpu.pipeline_mode<synchronous>, transform_indices = @transform_1, window_bounds = array<i64: 128, 256>}, {transform_indices = @transform_2, window_bounds = array<i64: 128, 256>}]} {
    %c0 = arith.constant 0 : index
    %c0_0 = arith.constant 0 : index
    %0 = vector.load %arg1[%c0, %c0_0] : memref<128x128xbf16, #tpu.memory_space<vmem>>, vector<128x128xbf16>
    %c0_1 = arith.constant 0 : index
    %c0_2 = arith.constant 0 : index
    %1 = vector.load %arg2[%c0_1, %c0_2] : memref<128x256xbf16, #tpu.memory_space<vmem>>, vector<128x256xbf16>
    %cst = arith.constant dense<0.000000e+00> : vector<128x256xf32>
    %2 = tpu.matmul %0, %1, %cst {dimension_numbers = #tpu.dot_dimension_numbers<[1], [0], [0], [1], [0, 0, 1, 1], [], []>} : vector<128x128xbf16>, vector<128x256xbf16>, vector<128x256xf32> -> vector<128x256xf32>
    %3 = arith.truncf %2 : vector<128x256xf32> to vector<128x256xbf16>
    %c0_3 = arith.constant 0 : index
    %c0_4 = arith.constant 0 : index
    %4 = vector.load %arg3[%c0_3, %c0_4] : memref<128x256xbf16, #tpu.memory_space<vmem>>, vector<128x256xbf16>
    tpu.vector_store %arg3[%c0_3, %c0_4], %3 {strides = array<i32>} : memref<128x256xbf16, #tpu.memory_space<vmem>>, vector<128x256xbf16>,
    return
  }
  func.func @transform_0(%arg0: i32) -> (i32, i32) {
    %c0_i32 = arith.constant 0 : i32
    %c0_i32_0 = arith.constant 0 : i32
    return %arg0, %c0_i32 : i32, i32
  }
  func.func @transform_1(%arg0: i32) -> (i32, i32) {
    %c0_i32 = arith.constant 0 : i32
    %c0_i32_0 = arith.constant 0 : i32
    %c0_i32_1 = arith.constant 0 : i32
    return %c0_i32, %c0_i32_0 : i32, i32
  }
  func.func @transform_2(%arg0: i32) -> (i32, i32) {
    %c0_i32 = arith.constant 0 : i32
    %c0_i32_0 = arith.constant 0 : i32
    return %arg0, %c0_i32 : i32, i32
  }
}

module attributes {stable_mosaic.version = 11 : i64} {
  func.func @_col_stats_kernel(%arg0: i32, %arg1: memref<4x8x256xbf16, #tpu.memory_space<vmem>>, %arg2: memref<1x256xf32, #tpu.memory_space<vmem>>, %arg3: memref<1x256xf32, #tpu.memory_space<vmem>>, %arg4: memref<8x256xf32, #tpu.memory_space<vmem>>, %arg5: memref<8x256xf32, #tpu.memory_space<vmem>>) attributes {dimension_semantics = [#tpu.dimension_semantics<arbitrary>], iteration_bounds = array<i64: 1>, scalar_prefetch = 0 : i64, scratch_operands = 2 : i64, tpu.core_type = #tpu.core_type<tc>, window_params = [{transform_indices = @transform_0, window_bounds = array<i64: 4, 8, 256>}, {pipeline_mode = #tpu.pipeline_mode<synchronous>, transform_indices = @transform_1, window_bounds = array<i64: 1, 256>}, {pipeline_mode = #tpu.pipeline_mode<synchronous>, transform_indices = @transform_2, window_bounds = array<i64: 1, 256>}]} {
    %c0_i32 = arith.constant 0 : i32
    %0 = arith.cmpi eq, %arg0, %c0_i32 : i32
    %1 = arith.extui %0 : i1 to i32
    %c0_i32_0 = arith.constant 0 : i32
    %2 = arith.cmpi ne, %1, %c0_i32_0 : i32
    scf.if %2 {
      %cst_14 = arith.constant 0.000000e+00 : f32
      %17 = vector.broadcast %cst_14 : f32 to vector<8x256xf32>
      %c0_15 = arith.constant 0 : index
      %c0_16 = arith.constant 0 : index
      %18 = vector.load %arg4[%c0_15, %c0_16] : memref<8x256xf32, #tpu.memory_space<vmem>>, vector<8x256xf32>
      tpu.vector_store %arg4[%c0_15, %c0_16], %17 {strides = array<i32>} : memref<8x256xf32, #tpu.memory_space<vmem>>, vector<8x256xf32>,
      %cst_17 = arith.constant 0.000000e+00 : f32
      %19 = vector.broadcast %cst_17 : f32 to vector<8x256xf32>
      %c0_18 = arith.constant 0 : index
      %c0_19 = arith.constant 0 : index
      %20 = vector.load %arg5[%c0_18, %c0_19] : memref<8x256xf32, #tpu.memory_space<vmem>>, vector<8x256xf32>
      tpu.vector_store %arg5[%c0_18, %c0_19], %19 {strides = array<i32>} : memref<8x256xf32, #tpu.memory_space<vmem>>, vector<8x256xf32>,
    } else {
    }
    %c0 = arith.constant 0 : index
    %c0_1 = arith.constant 0 : index
    %c0_2 = arith.constant 0 : index
    %3 = vector.load %arg1[%c0, %c0_1, %c0_2] : memref<4x8x256xbf16, #tpu.memory_space<vmem>>, vector<4x8x256xbf16>
    %4 = arith.extf %3 : vector<4x8x256xbf16> to vector<4x8x256xf32>
    %c0_3 = arith.constant 0 : index
    %c0_4 = arith.constant 0 : index
    %5 = vector.load %arg4[%c0_3, %c0_4] : memref<8x256xf32, #tpu.memory_space<vmem>>, vector<8x256xf32>
    %cst = arith.constant dense<0.000000e+00> : vector<8x256xf32>
    %6 = vector.multi_reduction <add>, %4, %cst [0] : vector<4x8x256xf32> to vector<8x256xf32>
    %7 = arith.addf %5, %6 : vector<8x256xf32>
    %c0_5 = arith.constant 0 : index
    %c0_6 = arith.constant 0 : index
    %8 = vector.load %arg4[%c0_5, %c0_6] : memref<8x256xf32, #tpu.memory_space<vmem>>, vector<8x256xf32>
    tpu.vector_store %arg4[%c0_5, %c0_6], %7 {strides = array<i32>} : memref<8x256xf32, #tpu.memory_space<vmem>>, vector<8x256xf32>,
    %c0_7 = arith.constant 0 : index
    %c0_8 = arith.constant 0 : index
    %9 = vector.load %arg5[%c0_7, %c0_8] : memref<8x256xf32, #tpu.memory_space<vmem>>, vector<8x256xf32>
    %10 = arith.mulf %4, %4 : vector<4x8x256xf32>
    %cst_9 = arith.constant dense<0.000000e+00> : vector<8x256xf32>
    %11 = vector.multi_reduction <add>, %10, %cst_9 [0] : vector<4x8x256xf32> to vector<8x256xf32>
    %12 = arith.addf %9, %11 : vector<8x256xf32>
    %c0_10 = arith.constant 0 : index
    %c0_11 = arith.constant 0 : index
    %13 = vector.load %arg5[%c0_10, %c0_11] : memref<8x256xf32, #tpu.memory_space<vmem>>, vector<8x256xf32>
    tpu.vector_store %arg5[%c0_10, %c0_11], %12 {strides = array<i32>} : memref<8x256xf32, #tpu.memory_space<vmem>>, vector<8x256xf32>,
    %c0_i32_12 = arith.constant 0 : i32
    %14 = arith.cmpi eq, %arg0, %c0_i32_12 : i32
    %15 = arith.extui %14 : i1 to i32
    %c0_i32_13 = arith.constant 0 : i32
    %16 = arith.cmpi ne, %15, %c0_i32_13 : i32
    scf.if %16 {
      %c0_14 = arith.constant 0 : index
      %c0_15 = arith.constant 0 : index
      %17 = vector.load %arg4[%c0_14, %c0_15] : memref<8x256xf32, #tpu.memory_space<vmem>>, vector<8x256xf32>
      %cst_16 = arith.constant dense<0.000000e+00> : vector<256xf32>
      %18 = vector.multi_reduction <add>, %17, %cst_16 [0] : vector<8x256xf32> to vector<256xf32>
      %19 = vector.shape_cast %18 : vector<256xf32> to vector<1x256xf32>
      %c0_17 = arith.constant 0 : index
      %c0_18 = arith.constant 0 : index
      %20 = vector.load %arg2[%c0_17, %c0_18] : memref<1x256xf32, #tpu.memory_space<vmem>>, vector<1x256xf32>
      tpu.vector_store %arg2[%c0_17, %c0_18], %19 {strides = array<i32>} : memref<1x256xf32, #tpu.memory_space<vmem>>, vector<1x256xf32>,
      %c0_19 = arith.constant 0 : index
      %c0_20 = arith.constant 0 : index
      %21 = vector.load %arg5[%c0_19, %c0_20] : memref<8x256xf32, #tpu.memory_space<vmem>>, vector<8x256xf32>
      %cst_21 = arith.constant dense<0.000000e+00> : vector<256xf32>
      %22 = vector.multi_reduction <add>, %21, %cst_21 [0] : vector<8x256xf32> to vector<256xf32>
      %23 = vector.shape_cast %22 : vector<256xf32> to vector<1x256xf32>
      %c0_22 = arith.constant 0 : index
      %c0_23 = arith.constant 0 : index
      %24 = vector.load %arg3[%c0_22, %c0_23] : memref<1x256xf32, #tpu.memory_space<vmem>>, vector<1x256xf32>
      tpu.vector_store %arg3[%c0_22, %c0_23], %23 {strides = array<i32>} : memref<1x256xf32, #tpu.memory_space<vmem>>, vector<1x256xf32>,
    } else {
    }
    return
  }
  func.func @transform_0(%arg0: i32) -> (i32, i32, i32) {
    %c0_i32 = arith.constant 0 : i32
    %c0_i32_0 = arith.constant 0 : i32
    %c0_i32_1 = arith.constant 0 : i32
    return %arg0, %c0_i32, %c0_i32_0 : i32, i32, i32
  }
  func.func @transform_1(%arg0: i32) -> (i32, i32) {
    %c0_i32 = arith.constant 0 : i32
    %c0_i32_0 = arith.constant 0 : i32
    %c0_i32_1 = arith.constant 0 : i32
    return %c0_i32, %c0_i32_0 : i32, i32
  }
  func.func @transform_2(%arg0: i32) -> (i32, i32) {
    %c0_i32 = arith.constant 0 : i32
    %c0_i32_0 = arith.constant 0 : i32
    %c0_i32_1 = arith.constant 0 : i32
    return %c0_i32, %c0_i32_0 : i32, i32
  }
}

module attributes {stable_mosaic.version = 11 : i64} {
  func.func @_bn_relu_kernel(%arg0: i32, %arg1: memref<32x256xbf16, #tpu.memory_space<vmem>>, %arg2: memref<1x256xf32, #tpu.memory_space<vmem>>, %arg3: memref<1x256xf32, #tpu.memory_space<vmem>>, %arg4: memref<32x256xbf16, #tpu.memory_space<vmem>>) attributes {dimension_semantics = [#tpu.dimension_semantics<parallel>], iteration_bounds = array<i64: 1>, scalar_prefetch = 0 : i64, scratch_operands = 0 : i64, tpu.core_type = #tpu.core_type<tc>, window_params = [{transform_indices = @transform_0, window_bounds = array<i64: 32, 256>}, {pipeline_mode = #tpu.pipeline_mode<synchronous>, transform_indices = @transform_1, window_bounds = array<i64: 1, 256>}, {pipeline_mode = #tpu.pipeline_mode<synchronous>, transform_indices = @transform_2, window_bounds = array<i64: 1, 256>}, {transform_indices = @transform_3, window_bounds = array<i64: 32, 256>}]} {
    %c0 = arith.constant 0 : index
    %c0_0 = arith.constant 0 : index
    %0 = vector.load %arg1[%c0, %c0_0] : memref<32x256xbf16, #tpu.memory_space<vmem>>, vector<32x256xbf16>
    %1 = arith.extf %0 : vector<32x256xbf16> to vector<32x256xf32>
    %c0_1 = arith.constant 0 : index
    %c0_2 = arith.constant 0 : index
    %2 = vector.load %arg2[%c0_1, %c0_2] : memref<1x256xf32, #tpu.memory_space<vmem>>, vector<1x256xf32>
    %3 = vector.broadcast %2 : vector<1x256xf32> to vector<32x256xf32>
    %4 = arith.mulf %1, %3 : vector<32x256xf32>
    %c0_3 = arith.constant 0 : index
    %c0_4 = arith.constant 0 : index
    %5 = vector.load %arg3[%c0_3, %c0_4] : memref<1x256xf32, #tpu.memory_space<vmem>>, vector<1x256xf32>
    %6 = vector.broadcast %5 : vector<1x256xf32> to vector<32x256xf32>
    %7 = arith.addf %4, %6 : vector<32x256xf32>
    %cst = arith.constant 0.000000e+00 : f32
    %8 = vector.broadcast %cst : f32 to vector<32x256xf32>
    %9 = arith.maximumf %7, %8 : vector<32x256xf32>
    %10 = arith.truncf %9 : vector<32x256xf32> to vector<32x256xbf16>
    %c0_5 = arith.constant 0 : index
    %c0_6 = arith.constant 0 : index
    %11 = vector.load %arg4[%c0_5, %c0_6] : memref<32x256xbf16, #tpu.memory_space<vmem>>, vector<32x256xbf16>
    tpu.vector_store %arg4[%c0_5, %c0_6], %10 {strides = array<i32>} : memref<32x256xbf16, #tpu.memory_space<vmem>>, vector<32x256xbf16>,
    return
  }
  func.func @transform_0(%arg0: i32) -> (i32, i32) {
    %c0_i32 = arith.constant 0 : i32
    %c0_i32_0 = arith.constant 0 : i32
    return %arg0, %c0_i32 : i32, i32
  }
  func.func @transform_1(%arg0: i32) -> (i32, i32) {
    %c0_i32 = arith.constant 0 : i32
    %c0_i32_0 = arith.constant 0 : i32
    %c0_i32_1 = arith.constant 0 : i32
    return %c0_i32, %c0_i32_0 : i32, i32
  }
  func.func @transform_2(%arg0: i32) -> (i32, i32) {
    %c0_i32 = arith.constant 0 : i32
    %c0_i32_0 = arith.constant 0 : i32
    %c0_i32_1 = arith.constant 0 : i32
    return %c0_i32, %c0_i32_0 : i32, i32
  }
  func.func @transform_3(%arg0: i32) -> (i32, i32) {
    %c0_i32 = arith.constant 0 : i32
    %c0_i32_0 = arith.constant 0 : i32
    return %arg0, %c0_i32 : i32, i32
  }
}

module attributes {stable_mosaic.version = 11 : i64} {
  func.func @_matmul_kernel(%arg0: i32, %arg1: memref<256x128xbf16, #tpu.memory_space<vmem>>, %arg2: memref<128x128xbf16, #tpu.memory_space<vmem>>, %arg3: memref<256x128xbf16, #tpu.memory_space<vmem>>) attributes {dimension_semantics = [#tpu.dimension_semantics<parallel>], iteration_bounds = array<i64: 2>, scalar_prefetch = 0 : i64, scratch_operands = 0 : i64, tpu.core_type = #tpu.core_type<tc>, window_params = [{transform_indices = @transform_0, window_bounds = array<i64: 256, 128>}, {pipeline_mode = #tpu.pipeline_mode<synchronous>, transform_indices = @transform_1, window_bounds = array<i64: 128, 128>}, {transform_indices = @transform_2, window_bounds = array<i64: 256, 128>}]} {
    %c0 = arith.constant 0 : index
    %c0_0 = arith.constant 0 : index
    %0 = vector.load %arg1[%c0, %c0_0] : memref<256x128xbf16, #tpu.memory_space<vmem>>, vector<256x128xbf16>
    %c0_1 = arith.constant 0 : index
    %c0_2 = arith.constant 0 : index
    %1 = vector.load %arg2[%c0_1, %c0_2] : memref<128x128xbf16, #tpu.memory_space<vmem>>, vector<128x128xbf16>
    %cst = arith.constant dense<0.000000e+00> : vector<256x128xf32>
    %2 = tpu.matmul %0, %1, %cst {dimension_numbers = #tpu.dot_dimension_numbers<[1], [0], [0], [1], [0, 0, 1, 1], [], []>} : vector<256x128xbf16>, vector<128x128xbf16>, vector<256x128xf32> -> vector<256x128xf32>
    %3 = arith.truncf %2 : vector<256x128xf32> to vector<256x128xbf16>
    %c0_3 = arith.constant 0 : index
    %c0_4 = arith.constant 0 : index
    %4 = vector.load %arg3[%c0_3, %c0_4] : memref<256x128xbf16, #tpu.memory_space<vmem>>, vector<256x128xbf16>
    tpu.vector_store %arg3[%c0_3, %c0_4], %3 {strides = array<i32>} : memref<256x128xbf16, #tpu.memory_space<vmem>>, vector<256x128xbf16>,
    return
  }
  func.func @transform_0(%arg0: i32) -> (i32, i32) {
    %c0_i32 = arith.constant 0 : i32
    %c0_i32_0 = arith.constant 0 : i32
    return %arg0, %c0_i32 : i32, i32
  }
  func.func @transform_1(%arg0: i32) -> (i32, i32) {
    %c0_i32 = arith.constant 0 : i32
    %c0_i32_0 = arith.constant 0 : i32
    %c0_i32_1 = arith.constant 0 : i32
    return %c0_i32, %c0_i32_0 : i32, i32
  }
  func.func @transform_2(%arg0: i32) -> (i32, i32) {
    %c0_i32 = arith.constant 0 : i32
    %c0_i32_0 = arith.constant 0 : i32
    return %arg0, %c0_i32 : i32, i32
  }
}

module attributes {stable_mosaic.version = 11 : i64} {
  func.func @_col_stats_kernel(%arg0: i32, %arg1: memref<8x8x256xbf16, #tpu.memory_space<vmem>>, %arg2: memref<1x256xf32, #tpu.memory_space<vmem>>, %arg3: memref<1x256xf32, #tpu.memory_space<vmem>>, %arg4: memref<8x256xf32, #tpu.memory_space<vmem>>, %arg5: memref<8x256xf32, #tpu.memory_space<vmem>>) attributes {dimension_semantics = [#tpu.dimension_semantics<arbitrary>], iteration_bounds = array<i64: 1>, scalar_prefetch = 0 : i64, scratch_operands = 2 : i64, tpu.core_type = #tpu.core_type<tc>, window_params = [{transform_indices = @transform_0, window_bounds = array<i64: 8, 8, 256>}, {pipeline_mode = #tpu.pipeline_mode<synchronous>, transform_indices = @transform_1, window_bounds = array<i64: 1, 256>}, {pipeline_mode = #tpu.pipeline_mode<synchronous>, transform_indices = @transform_2, window_bounds = array<i64: 1, 256>}]} {
    %c0_i32 = arith.constant 0 : i32
    %0 = arith.cmpi eq, %arg0, %c0_i32 : i32
    %1 = arith.extui %0 : i1 to i32
    %c0_i32_0 = arith.constant 0 : i32
    %2 = arith.cmpi ne, %1, %c0_i32_0 : i32
    scf.if %2 {
      %cst_14 = arith.constant 0.000000e+00 : f32
      %17 = vector.broadcast %cst_14 : f32 to vector<8x256xf32>
      %c0_15 = arith.constant 0 : index
      %c0_16 = arith.constant 0 : index
      %18 = vector.load %arg4[%c0_15, %c0_16] : memref<8x256xf32, #tpu.memory_space<vmem>>, vector<8x256xf32>
      tpu.vector_store %arg4[%c0_15, %c0_16], %17 {strides = array<i32>} : memref<8x256xf32, #tpu.memory_space<vmem>>, vector<8x256xf32>,
      %cst_17 = arith.constant 0.000000e+00 : f32
      %19 = vector.broadcast %cst_17 : f32 to vector<8x256xf32>
      %c0_18 = arith.constant 0 : index
      %c0_19 = arith.constant 0 : index
      %20 = vector.load %arg5[%c0_18, %c0_19] : memref<8x256xf32, #tpu.memory_space<vmem>>, vector<8x256xf32>
      tpu.vector_store %arg5[%c0_18, %c0_19], %19 {strides = array<i32>} : memref<8x256xf32, #tpu.memory_space<vmem>>, vector<8x256xf32>,
    } else {
    }
    %c0 = arith.constant 0 : index
    %c0_1 = arith.constant 0 : index
    %c0_2 = arith.constant 0 : index
    %3 = vector.load %arg1[%c0, %c0_1, %c0_2] : memref<8x8x256xbf16, #tpu.memory_space<vmem>>, vector<8x8x256xbf16>
    %4 = arith.extf %3 : vector<8x8x256xbf16> to vector<8x8x256xf32>
    %c0_3 = arith.constant 0 : index
    %c0_4 = arith.constant 0 : index
    %5 = vector.load %arg4[%c0_3, %c0_4] : memref<8x256xf32, #tpu.memory_space<vmem>>, vector<8x256xf32>
    %cst = arith.constant dense<0.000000e+00> : vector<8x256xf32>
    %6 = vector.multi_reduction <add>, %4, %cst [0] : vector<8x8x256xf32> to vector<8x256xf32>
    %7 = arith.addf %5, %6 : vector<8x256xf32>
    %c0_5 = arith.constant 0 : index
    %c0_6 = arith.constant 0 : index
    %8 = vector.load %arg4[%c0_5, %c0_6] : memref<8x256xf32, #tpu.memory_space<vmem>>, vector<8x256xf32>
    tpu.vector_store %arg4[%c0_5, %c0_6], %7 {strides = array<i32>} : memref<8x256xf32, #tpu.memory_space<vmem>>, vector<8x256xf32>,
    %c0_7 = arith.constant 0 : index
    %c0_8 = arith.constant 0 : index
    %9 = vector.load %arg5[%c0_7, %c0_8] : memref<8x256xf32, #tpu.memory_space<vmem>>, vector<8x256xf32>
    %10 = arith.mulf %4, %4 : vector<8x8x256xf32>
    %cst_9 = arith.constant dense<0.000000e+00> : vector<8x256xf32>
    %11 = vector.multi_reduction <add>, %10, %cst_9 [0] : vector<8x8x256xf32> to vector<8x256xf32>
    %12 = arith.addf %9, %11 : vector<8x256xf32>
    %c0_10 = arith.constant 0 : index
    %c0_11 = arith.constant 0 : index
    %13 = vector.load %arg5[%c0_10, %c0_11] : memref<8x256xf32, #tpu.memory_space<vmem>>, vector<8x256xf32>
    tpu.vector_store %arg5[%c0_10, %c0_11], %12 {strides = array<i32>} : memref<8x256xf32, #tpu.memory_space<vmem>>, vector<8x256xf32>,
    %c0_i32_12 = arith.constant 0 : i32
    %14 = arith.cmpi eq, %arg0, %c0_i32_12 : i32
    %15 = arith.extui %14 : i1 to i32
    %c0_i32_13 = arith.constant 0 : i32
    %16 = arith.cmpi ne, %15, %c0_i32_13 : i32
    scf.if %16 {
      %c0_14 = arith.constant 0 : index
      %c0_15 = arith.constant 0 : index
      %17 = vector.load %arg4[%c0_14, %c0_15] : memref<8x256xf32, #tpu.memory_space<vmem>>, vector<8x256xf32>
      %cst_16 = arith.constant dense<0.000000e+00> : vector<256xf32>
      %18 = vector.multi_reduction <add>, %17, %cst_16 [0] : vector<8x256xf32> to vector<256xf32>
      %19 = vector.shape_cast %18 : vector<256xf32> to vector<1x256xf32>
      %c0_17 = arith.constant 0 : index
      %c0_18 = arith.constant 0 : index
      %20 = vector.load %arg2[%c0_17, %c0_18] : memref<1x256xf32, #tpu.memory_space<vmem>>, vector<1x256xf32>
      tpu.vector_store %arg2[%c0_17, %c0_18], %19 {strides = array<i32>} : memref<1x256xf32, #tpu.memory_space<vmem>>, vector<1x256xf32>,
      %c0_19 = arith.constant 0 : index
      %c0_20 = arith.constant 0 : index
      %21 = vector.load %arg5[%c0_19, %c0_20] : memref<8x256xf32, #tpu.memory_space<vmem>>, vector<8x256xf32>
      %cst_21 = arith.constant dense<0.000000e+00> : vector<256xf32>
      %22 = vector.multi_reduction <add>, %21, %cst_21 [0] : vector<8x256xf32> to vector<256xf32>
      %23 = vector.shape_cast %22 : vector<256xf32> to vector<1x256xf32>
      %c0_22 = arith.constant 0 : index
      %c0_23 = arith.constant 0 : index
      %24 = vector.load %arg3[%c0_22, %c0_23] : memref<1x256xf32, #tpu.memory_space<vmem>>, vector<1x256xf32>
      tpu.vector_store %arg3[%c0_22, %c0_23], %23 {strides = array<i32>} : memref<1x256xf32, #tpu.memory_space<vmem>>, vector<1x256xf32>,
    } else {
    }
    return
  }
  func.func @transform_0(%arg0: i32) -> (i32, i32, i32) {
    %c0_i32 = arith.constant 0 : i32
    %c0_i32_0 = arith.constant 0 : i32
    %c0_i32_1 = arith.constant 0 : i32
    return %arg0, %c0_i32, %c0_i32_0 : i32, i32, i32
  }
  func.func @transform_1(%arg0: i32) -> (i32, i32) {
    %c0_i32 = arith.constant 0 : i32
    %c0_i32_0 = arith.constant 0 : i32
    %c0_i32_1 = arith.constant 0 : i32
    return %c0_i32, %c0_i32_0 : i32, i32
  }
  func.func @transform_2(%arg0: i32) -> (i32, i32) {
    %c0_i32 = arith.constant 0 : i32
    %c0_i32_0 = arith.constant 0 : i32
    %c0_i32_1 = arith.constant 0 : i32
    return %c0_i32, %c0_i32_0 : i32, i32
  }
}

module attributes {stable_mosaic.version = 11 : i64} {
  func.func @_bn_relu_kernel(%arg0: i32, %arg1: memref<64x256xbf16, #tpu.memory_space<vmem>>, %arg2: memref<1x256xf32, #tpu.memory_space<vmem>>, %arg3: memref<1x256xf32, #tpu.memory_space<vmem>>, %arg4: memref<64x256xbf16, #tpu.memory_space<vmem>>) attributes {dimension_semantics = [#tpu.dimension_semantics<parallel>], iteration_bounds = array<i64: 1>, scalar_prefetch = 0 : i64, scratch_operands = 0 : i64, tpu.core_type = #tpu.core_type<tc>, window_params = [{transform_indices = @transform_0, window_bounds = array<i64: 64, 256>}, {pipeline_mode = #tpu.pipeline_mode<synchronous>, transform_indices = @transform_1, window_bounds = array<i64: 1, 256>}, {pipeline_mode = #tpu.pipeline_mode<synchronous>, transform_indices = @transform_2, window_bounds = array<i64: 1, 256>}, {transform_indices = @transform_3, window_bounds = array<i64: 64, 256>}]} {
    %c0 = arith.constant 0 : index
    %c0_0 = arith.constant 0 : index
    %0 = vector.load %arg1[%c0, %c0_0] : memref<64x256xbf16, #tpu.memory_space<vmem>>, vector<64x256xbf16>
    %1 = arith.extf %0 : vector<64x256xbf16> to vector<64x256xf32>
    %c0_1 = arith.constant 0 : index
    %c0_2 = arith.constant 0 : index
    %2 = vector.load %arg2[%c0_1, %c0_2] : memref<1x256xf32, #tpu.memory_space<vmem>>, vector<1x256xf32>
    %3 = vector.broadcast %2 : vector<1x256xf32> to vector<64x256xf32>
    %4 = arith.mulf %1, %3 : vector<64x256xf32>
    %c0_3 = arith.constant 0 : index
    %c0_4 = arith.constant 0 : index
    %5 = vector.load %arg3[%c0_3, %c0_4] : memref<1x256xf32, #tpu.memory_space<vmem>>, vector<1x256xf32>
    %6 = vector.broadcast %5 : vector<1x256xf32> to vector<64x256xf32>
    %7 = arith.addf %4, %6 : vector<64x256xf32>
    %cst = arith.constant 0.000000e+00 : f32
    %8 = vector.broadcast %cst : f32 to vector<64x256xf32>
    %9 = arith.maximumf %7, %8 : vector<64x256xf32>
    %10 = arith.truncf %9 : vector<64x256xf32> to vector<64x256xbf16>
    %c0_5 = arith.constant 0 : index
    %c0_6 = arith.constant 0 : index
    %11 = vector.load %arg4[%c0_5, %c0_6] : memref<64x256xbf16, #tpu.memory_space<vmem>>, vector<64x256xbf16>
    tpu.vector_store %arg4[%c0_5, %c0_6], %10 {strides = array<i32>} : memref<64x256xbf16, #tpu.memory_space<vmem>>, vector<64x256xbf16>,
    return
  }
  func.func @transform_0(%arg0: i32) -> (i32, i32) {
    %c0_i32 = arith.constant 0 : i32
    %c0_i32_0 = arith.constant 0 : i32
    return %arg0, %c0_i32 : i32, i32
  }
  func.func @transform_1(%arg0: i32) -> (i32, i32) {
    %c0_i32 = arith.constant 0 : i32
    %c0_i32_0 = arith.constant 0 : i32
    %c0_i32_1 = arith.constant 0 : i32
    return %c0_i32, %c0_i32_0 : i32, i32
  }
  func.func @transform_2(%arg0: i32) -> (i32, i32) {
    %c0_i32 = arith.constant 0 : i32
    %c0_i32_0 = arith.constant 0 : i32
    %c0_i32_1 = arith.constant 0 : i32
    return %c0_i32, %c0_i32_0 : i32, i32
  }
  func.func @transform_3(%arg0: i32) -> (i32, i32) {
    %c0_i32 = arith.constant 0 : i32
    %c0_i32_0 = arith.constant 0 : i32
    return %arg0, %c0_i32 : i32, i32
  }
}

module attributes {stable_mosaic.version = 11 : i64} {
  func.func @_matmul_kernel(%arg0: i32, %arg1: memref<512x128xbf16, #tpu.memory_space<vmem>>, %arg2: memref<128x128xbf16, #tpu.memory_space<vmem>>, %arg3: memref<512x128xbf16, #tpu.memory_space<vmem>>) attributes {dimension_semantics = [#tpu.dimension_semantics<parallel>], iteration_bounds = array<i64: 4>, scalar_prefetch = 0 : i64, scratch_operands = 0 : i64, tpu.core_type = #tpu.core_type<tc>, window_params = [{transform_indices = @transform_0, window_bounds = array<i64: 512, 128>}, {pipeline_mode = #tpu.pipeline_mode<synchronous>, transform_indices = @transform_1, window_bounds = array<i64: 128, 128>}, {transform_indices = @transform_2, window_bounds = array<i64: 512, 128>}]} {
    %c0 = arith.constant 0 : index
    %c0_0 = arith.constant 0 : index
    %0 = vector.load %arg1[%c0, %c0_0] : memref<512x128xbf16, #tpu.memory_space<vmem>>, vector<512x128xbf16>
    %c0_1 = arith.constant 0 : index
    %c0_2 = arith.constant 0 : index
    %1 = vector.load %arg2[%c0_1, %c0_2] : memref<128x128xbf16, #tpu.memory_space<vmem>>, vector<128x128xbf16>
    %cst = arith.constant dense<0.000000e+00> : vector<512x128xf32>
    %2 = tpu.matmul %0, %1, %cst {dimension_numbers = #tpu.dot_dimension_numbers<[1], [0], [0], [1], [0, 0, 1, 1], [], []>} : vector<512x128xbf16>, vector<128x128xbf16>, vector<512x128xf32> -> vector<512x128xf32>
    %3 = arith.truncf %2 : vector<512x128xf32> to vector<512x128xbf16>
    %c0_3 = arith.constant 0 : index
    %c0_4 = arith.constant 0 : index
    %4 = vector.load %arg3[%c0_3, %c0_4] : memref<512x128xbf16, #tpu.memory_space<vmem>>, vector<512x128xbf16>
    tpu.vector_store %arg3[%c0_3, %c0_4], %3 {strides = array<i32>} : memref<512x128xbf16, #tpu.memory_space<vmem>>, vector<512x128xbf16>,
    return
  }
  func.func @transform_0(%arg0: i32) -> (i32, i32) {
    %c0_i32 = arith.constant 0 : i32
    %c0_i32_0 = arith.constant 0 : i32
    return %arg0, %c0_i32 : i32, i32
  }
  func.func @transform_1(%arg0: i32) -> (i32, i32) {
    %c0_i32 = arith.constant 0 : i32
    %c0_i32_0 = arith.constant 0 : i32
    %c0_i32_1 = arith.constant 0 : i32
    return %c0_i32, %c0_i32_0 : i32, i32
  }
  func.func @transform_2(%arg0: i32) -> (i32, i32) {
    %c0_i32 = arith.constant 0 : i32
    %c0_i32_0 = arith.constant 0 : i32
    return %arg0, %c0_i32 : i32, i32
  }
}

module attributes {stable_mosaic.version = 11 : i64} {
  func.func @_tanh_kernel(%arg0: i32, %arg1: memref<4x2048xbf16, #tpu.memory_space<vmem>>, %arg2: memref<4x2048xf32, #tpu.memory_space<vmem>>) attributes {dimension_semantics = [#tpu.dimension_semantics<parallel>], iteration_bounds = array<i64: 1>, scalar_prefetch = 0 : i64, scratch_operands = 0 : i64, tpu.core_type = #tpu.core_type<tc>, window_params = [{transform_indices = @transform_0, window_bounds = array<i64: 4, 2048>}, {transform_indices = @transform_1, window_bounds = array<i64: 4, 2048>}]} {
    %c0 = arith.constant 0 : index
    %c0_0 = arith.constant 0 : index
    %0 = vector.load %arg1[%c0, %c0_0] : memref<4x2048xbf16, #tpu.memory_space<vmem>>, vector<4x2048xbf16>
    %1 = arith.extf %0 : vector<4x2048xbf16> to vector<4x2048xf32>
    %2 = math.tanh %1 : vector<4x2048xf32>
    %c0_1 = arith.constant 0 : index
    %c0_2 = arith.constant 0 : index
    %3 = vector.load %arg2[%c0_1, %c0_2] : memref<4x2048xf32, #tpu.memory_space<vmem>>, vector<4x2048xf32>
    tpu.vector_store %arg2[%c0_1, %c0_2], %2 {strides = array<i32>} : memref<4x2048xf32, #tpu.memory_space<vmem>>, vector<4x2048xf32>,
    return
  }
  func.func @transform_0(%arg0: i32) -> (i32, i32) {
    %c0_i32 = arith.constant 0 : i32
    %c0_i32_0 = arith.constant 0 : i32
    return %arg0, %c0_i32 : i32, i32
  }
  func.func @transform_1(%arg0: i32) -> (i32, i32) {
    %c0_i32 = arith.constant 0 : i32
    %c0_i32_0 = arith.constant 0 : i32
    return %arg0, %c0_i32 : i32, i32
  }
}

</mosaic_0001>

<llo_original>
// kernel: tile.43
$region0: #{tile.43}
  #allocation0 [shape = 's32[1]{0}', space=sflag, size = 0x4, scoped, tag = 'scoped memory for tile.43']
  %s0 = inlined_call_operand.vmem [shape: f32[64], index: 0, kind: input, shape index: {}]
  %s1 = inlined_call_operand.vmem [shape: f32[4,64], index: 1, kind: output, shape index: {}]
  // Predicated region
  $region2: #{tile.43} parent=0 // pred_check
    _
  $region3: #{tile.43} parent=0 // pred_check_branch
    %3 = sbr.rel (0) target = $region5
  $region4: #{tile.43} parent=0 // pred_region
    _
  $region5: #{tile.43} parent=0 // pred_fallthru
    _
  %v4 = vld [vmem:[%s0] ss:$0 sm:$0xff]
  %5 = vst [vmem:[%s1] sm:$0xf] %v4

// kernel: tile.44
$region0: #{tile.44}
  %s0 = inlined_call_operand.vmem [shape: f32[4,64], index: 0, kind: input, shape index: {}]
  %s1 = inlined_call_operand.vmem [shape: f32[1,256], index: 1, kind: output, shape index: {}]
  $region1: #{tile.44} parent=0
    #allocation0 [shape = 'u8[8192]{0}', space=vmem, size = 0x2000, scoped, tag = 'scoped mem for output reshape']
    #allocation1 [shape = 'u8[4096]{0}', space=vmem, size = 0x1000, scoped, tag = 'scoped mem for input reshape']
    %s3 = sshllo.u32 0, 4
    %v4 = vld [vmem:[%s0] sm:%s3]
    %5 = vst [vmem:[#allocation1] sm:%s3] %v4
    %s6 = smov 3
    %v7 = vld [vmem:[#allocation1] ss:$2 sm:%s6]
    %vm8 = vcmask 523264
    %9 = vst.msk [vmem:[#allocation0] ss:$8 sm:$0x3] %vm8, %v7
    %s10 = scalar_lea.vmem [#allocation1], 1
    %s11 = smov 3
    %v12 = vld [vmem:[%s10] ss:$2 sm:%s11]
    %13 = vrot.lane.b32.xlu0 %v12, 64
    %v14 = vpop.permute.xlu0 %13
    %vm15 = vcmask 1048064
    %16 = vst.msk [vmem:[#allocation0] ss:$8 sm:$0x3] %vm15, %v14
    %s18 = sshllo.u32 0, 1
    %v20 = vld [vmem:[#allocation0] sm:%s18]
    %s21 = sshllo.u32 0, 1
    %22 = vst [vmem:[%s1] sm:%s21] %v20
    %s23 = scalar_lea.vmem [#allocation0], 8
    %v24 = vld [vmem:[%s23] sm:%s18]
    %s25 = sshllo.u32 0, 1
    %s26 = scalar_lea.vmem %s1, 1
    %27 = vst [vmem:[%s26] sm:%s25] %v24

// kernel: generator_forward.15
$region0: #{generator_forward.15}
  #allocation0 [shape = 'u32[]', space=smem, size = 0x4, offset = 0x4, fixed_abs, tag = 'smem constant byte address 0x4 - core index']
  #allocation1 [shape = 'u32[144,128]{1,0:T(1,128)}', space=vmem, size = 0x12000, scoped, tag = 'internal scratch']
  #allocation2 [shape = 'f32[8,256]{1,0:T(8,128)}', space=vmem, size = 0x2000, scoped, tag = 'scratch operand']
  #allocation3 [shape = 'f32[8,256]{1,0:T(8,128)}', space=vmem, size = 0x2000, scoped, tag = 'scratch operand']
  %s0 = inlined_call_operand.vmem [shape: bf16[1,8,256], index: 0, kind: input, shape index: {}]
  %s1 = inlined_call_operand.vmem [shape: f32[1,256], index: 1, kind: output, shape index: {0}]
  %s2 = inlined_call_operand.vmem [shape: f32[1,256], index: 2, kind: output, shape index: {1}]
  %3 = xla_tuple %s1, %s2
  %s4 = sld [smem:[#allocation0]]
  $region30: #{generator_forward.15} parent=0
    _
  %s6 = ssub.s32 1, %s4
  %s7 = scalar_select 0, %s6, %s4
  // Predicated region
  $region2: #{generator_forward.15} parent=0 // pred_check
    _
  $region3: #{generator_forward.15} parent=0 // pred_check_branch
    %9 = sbr.rel (0) target = $region5
  $region4: #{generator_forward.15} parent=0 // pred_region
    _
  $region5: #{generator_forward.15} parent=0 // pred_fallthru
    _
  %p10 = scmp.eq.s32.totalorder 0, 0
  // Predicated region
  $region6: #{generator_forward.15} parent=0 // pred_check
    %p11 = pneg %p10
  $region7: #{generator_forward.15} parent=0 // pred_check_branch
    %13 = sbr.rel (%p11) target = $region9
  $region8: #{generator_forward.15} parent=0 // pred_region
    %14 = vst [vmem:[#allocation2] sm:$0xff] 0.0
    %15 = vst [vmem:[#allocation2 + $0x8] sm:$0xff] 0.0
    %16 = vst [vmem:[#allocation3] sm:$0xff] 0.0
    %17 = vst [vmem:[#allocation3 + $0x8] sm:$0xff] 0.0
  $region9: #{generator_forward.15} parent=0 // pred_fallthru
    _
  %v18 = vld [vmem:[%s0] sm:$0xff]
  %v19 = vunpack.c.l.bf16 %v18
  %v20 = vunpack.c.h.bf16 %v18
  %v21 = vld [vmem:[#allocation2] sm:$0xff]
  %v22 = vld [vmem:[#allocation2 + $0x8] sm:$0xff]
  %v23 = vadd.f32 %v19, 0.0
  %v24 = vadd.f32 %v20, 0.0
  %v25 = vadd.f32 %v21, %v23
  %v26 = vadd.f32 %v22, %v24
  %27 = vst [vmem:[#allocation2] sm:$0xff] %v25
  %28 = vst [vmem:[#allocation2 + $0x8] sm:$0xff] %v26
  %v29 = vld [vmem:[#allocation3] sm:$0xff]
  %v30 = vld [vmem:[#allocation3 + $0x8] sm:$0xff]
  %v31 = vmul.f32 %v19, %v19
  %v32 = vmul.f32 %v20, %v20
  %v33 = vadd.f32 %v31, 0.0
  %v34 = vadd.f32 %v32, 0.0
  %v35 = vadd.f32 %v29, %v33
  %v36 = vadd.f32 %v30, %v34
  %37 = vst [vmem:[#allocation3] sm:$0xff] %v35
  %38 = vst [vmem:[#allocation3 + $0x8] sm:$0xff] %v36
  // Predicated region
  $region10: #{generator_forward.15} parent=0 // pred_check
    %p39 = pneg %p10
  $region11: #{generator_forward.15} parent=0 // pred_check_branch
    %41 = sbr.rel (%p39) target = $region13
  $region12: #{generator_forward.15} parent=0 // pred_region
    %v42 = vld [vmem:[#allocation2] sm:$0xff]
    %v43 = vld [vmem:[#allocation2 + $0x8] sm:$0xff]
    %v44 = vrot.slane %v42, 4
    %v45 = vadd.f32 %v42, %v44
    %v46 = vrot.slane %v45, 2
    %v47 = vadd.f32 %v45, %v46
    %v48 = vrot.slane %v47, 1
    %v49 = vadd.f32 %v47, %v48
    %v50 = vrot.slane %v43, 4
    %v51 = vadd.f32 %v43, %v50
    %v52 = vrot.slane %v51, 2
    %v53 = vadd.f32 %v51, %v52
    %v54 = vrot.slane %v53, 1
    %v55 = vadd.f32 %v53, %v54
    %v58 = vcombine.low %v49, %v55
    %v60 = vunpack.c.l.s4 1966171168
    %v61 = vunpack.c.0.s8 %v60
    %v62 = vlaneseq
    %v63 = vshrl.u32 %v62, 7
    %v64 = vsub.s32 %v61, %v63
    %v65 = vrot.slane %v58, %v64
    %v67 = vunpack.c.l.s4 1966171168
    %v68 = vunpack.c.0.s8 %v67
    %v69 = vlaneseq
    %v70 = vshrl.u32 %v69, 7
    %v71 = vsub.s32 %v68, %v70
    %v72 = vrot.slane %v65, %v71
    %v74 = vlaneseq
    %vm75 = vcmp.ge.s32.totalorder %v74, 0
    %vm76 = vcmp.lt.s32.totalorder %v74, 256
    %vm77 = vmand %vm75, %vm76
    %78 = vst.msk [vmem:[%s1] sm:$0x3] %vm77, %v72
    %v79 = vld [vmem:[#allocation3] sm:$0xff]
    %v80 = vld [vmem:[#allocation3 + $0x8] sm:$0xff]
    %v81 = vrot.slane %v79, 4
    %v82 = vadd.f32 %v79, %v81
    %v83 = vrot.slane %v82, 2
    %v84 = vadd.f32 %v82, %v83
    %v85 = vrot.slane %v84, 1
    %v86 = vadd.f32 %v84, %v85
    %v87 = vrot.slane %v80, 4
    %v88 = vadd.f32 %v80, %v87
    %v89 = vrot.slane %v88, 2
    %v90 = vadd.f32 %v88, %v89
    %v91 = vrot.slane %v90, 1
    %v92 = vadd.f32 %v90, %v91
    %v95 = vcombine.low %v86, %v92
    %v97 = vunpack.c.l.s4 1966171168
    %v98 = vunpack.c.0.s8 %v97
    %v99 = vlaneseq
    %v100 = vshrl.u32 %v99, 7
    %v101 = vsub.s32 %v98, %v100
    %v102 = vrot.slane %v95, %v101
    %v104 = vunpack.c.l.s4 1966171168
    %v105 = vunpack.c.0.s8 %v104
    %v106 = vlaneseq
    %v107 = vshrl.u32 %v106, 7
    %v108 = vsub.s32 %v105, %v107
    %v109 = vrot.slane %v102, %v108
    %111 = vst.msk [vmem:[%s2] sm:$0x3] %vm77, %v109
  $region13: #{generator_forward.15} parent=0 // pred_fallthru
    _
  // Predicated region
  $region14: #{generator_forward.15} parent=0 // pred_check
    _
  $region15: #{generator_forward.15} parent=0 // pred_check_branch
    %113 = sbr.rel (0) target = $region17
  $region16: #{generator_forward.15} parent=0 // pred_region
    _
  $region17: #{generator_forward.15} parent=0 // pred_fallthru
    _
  // Predicated region
  $region18: #{generator_forward.15} parent=0 // pred_check
    _
  $region19: #{generator_forward.15} parent=0 // pred_check_branch
    %115 = sbr.rel (0) target = $region21
  $region20: #{generator_forward.15} parent=0 // pred_region
    _
  $region21: #{generator_forward.15} parent=0 // pred_fallthru
    _
  // Predicated region
  $region22: #{generator_forward.15} parent=0 // pred_check
    _
  $region23: #{generator_forward.15} parent=0 // pred_check_branch
    %117 = sbr.rel (0) target = $region25
  $region24: #{generator_forward.15} parent=0 // pred_region
    _
  $region25: #{generator_forward.15} parent=0 // pred_fallthru
    _
  // Predicated region
  $region26: #{generator_forward.15} parent=0 // pred_check
    _
  $region27: #{generator_forward.15} parent=0 // pred_check_branch
    %119 = sbr.rel (0) target = $region29
  $region28: #{generator_forward.15} parent=0 // pred_region
    _
  $region29: #{generator_forward.15} parent=0 // pred_fallthru
    _

// kernel: generator_forward.14
$region0: #{generator_forward.14}
  #allocation0 [shape = 'u32[]', space=smem, size = 0x4, offset = 0x4, fixed_abs, tag = 'smem constant byte address 0x4 - core index']
  #allocation1 [shape = 'u32[144,128]{1,0:T(1,128)}', space=vmem, size = 0x12000, scoped, tag = 'internal scratch']
  %s0 = inlined_call_operand.vmem [shape: bf16[16,128], index: 0, kind: input, shape index: {}]
  %s1 = inlined_call_operand.vmem [shape: bf16[128,1024], index: 1, kind: input, shape index: {}]
  %s2 = inlined_call_operand.vmem [shape: bf16[16,1024], index: 2, kind: output, shape index: {}]
  %s3 = sld [smem:[#allocation0]]
  $region18: #{generator_forward.14} parent=0
    _
  %s5 = ssub.s32 1, %s3
  %s6 = scalar_select 0, %s5, %s3
  // Predicated region
  $region2: #{generator_forward.14} parent=0 // pred_check
    _
  $region3: #{generator_forward.14} parent=0 // pred_check_branch
    %8 = sbr.rel (0) target = $region5
  $region4: #{generator_forward.14} parent=0 // pred_region
    _
  $region5: #{generator_forward.14} parent=0 // pred_fallthru
    _
  // Predicated region
  $region6: #{generator_forward.14} parent=0 // pred_check
    _
  $region7: #{generator_forward.14} parent=0 // pred_check_branch
    %10 = sbr.rel (0) target = $region9
  $region8: #{generator_forward.14} parent=0 // pred_region
    _
  $region9: #{generator_forward.14} parent=0 // pred_fallthru
    _
  %v12 = vld [vmem:[%s0] sm:$0xf]
  %v13 = vld [vmem:[%s0 + $0x4] sm:$0xf]
  %v14 = vld [vmem:[%s1] sm:$0xff]
  %v15 = vld [vmem:[%s1 + $0x8] sm:$0xff]
  %v16 = vld [vmem:[%s1 + $0x10] sm:$0xff]
  %v17 = vld [vmem:[%s1 + $0x18] sm:$0xff]
  %v18 = vld [vmem:[%s1 + $0x20] sm:$0xff]
  %v19 = vld [vmem:[%s1 + $0x28] sm:$0xff]
  %v20 = vld [vmem:[%s1 + $0x30] sm:$0xff]
  %v21 = vld [vmem:[%s1 + $0x38] sm:$0xff]
  %v22 = vld [vmem:[%s1 + $0x40] sm:$0xff]
  %v23 = vld [vmem:[%s1 + $0x48] sm:$0xff]
  %v24 = vld [vmem:[%s1 + $0x50] sm:$0xff]
  %v25 = vld [vmem:[%s1 + $0x58] sm:$0xff]
  %v26 = vld [vmem:[%s1 + $0x60] sm:$0xff]
  %v27 = vld [vmem:[%s1 + $0x68] sm:$0xff]
  %v28 = vld [vmem:[%s1 + $0x70] sm:$0xff]
  %v29 = vld [vmem:[%s1 + $0x78] sm:$0xff]
  %v30 = vld [vmem:[%s1 + $0x80] sm:$0xff]
  %v31 = vld [vmem:[%s1 + $0x88] sm:$0xff]
  %v32 = vld [vmem:[%s1 + $0x90] sm:$0xff]
  %v33 = vld [vmem:[%s1 + $0x98] sm:$0xff]
  %v34 = vld [vmem:[%s1 + $0xa0] sm:$0xff]
  %v35 = vld [vmem:[%s1 + $0xa8] sm:$0xff]
  %v36 = vld [vmem:[%s1 + $0xb0] sm:$0xff]
  %v37 = vld [vmem:[%s1 + $0xb8] sm:$0xff]
  %v38 = vld [vmem:[%s1 + $0xc0] sm:$0xff]
  %v39 = vld [vmem:[%s1 + $0xc8] sm:$0xff]
  %v40 = vld [vmem:[%s1 + $0xd0] sm:$0xff]
  %v41 = vld [vmem:[%s1 + $0xd8] sm:$0xff]
  %v42 = vld [vmem:[%s1 + $0xe0] sm:$0xff]
  %v43 = vld [vmem:[%s1 + $0xe8] sm:$0xff]
  %v44 = vld [vmem:[%s1 + $0xf0] sm:$0xff]
  %v45 = vld [vmem:[%s1 + $0xf8] sm:$0xff]
  %v46 = vld [vmem:[%s1 + $0x100] sm:$0xff]
  %v47 = vld [vmem:[%s1 + $0x108] sm:$0xff]
  %v48 = vld [vmem:[%s1 + $0x110] sm:$0xff]
  %v49 = vld [vmem:[%s1 + $0x118] sm:$0xff]
  %v50 = vld [vmem:[%s1 + $0x120] sm:$0xff]
  %v51 = vld [vmem:[%s1 + $0x128] sm:$0xff]
  %v52 = vld [vmem:[%s1 + $0x130] sm:$0xff]
  %v53 = vld [vmem:[%s1 + $0x138] sm:$0xff]
  %v54 = vld [vmem:[%s1 + $0x140] sm:$0xff]
  %v55 = vld [vmem:[%s1 + $0x148] sm:$0xff]
  %v56 = vld [vmem:[%s1 + $0x150] sm:$0xff]
  %v57 = vld [vmem:[%s1 + $0x158] sm:$0xff]
  %v58 = vld [vmem:[%s1 + $0x160] sm:$0xff]
  %v59 = vld [vmem:[%s1 + $0x168] sm:$0xff]
  %v60 = vld [vmem:[%s1 + $0x170] sm:$0xff]
  %v61 = vld [vmem:[%s1 + $0x178] sm:$0xff]
  %v62 = vld [vmem:[%s1 + $0x180] sm:$0xff]
  %v63 = vld [vmem:[%s1 + $0x188] sm:$0xff]
  %v64 = vld [vmem:[%s1 + $0x190] sm:$0xff]
  %v65 = vld [vmem:[%s1 + $0x198] sm:$0xff]
  %v66 = vld [vmem:[%s1 + $0x1a0] sm:$0xff]
  %v67 = vld [vmem:[%s1 + $0x1a8] sm:$0xff]
  %v68 = vld [vmem:[%s1 + $0x1b0] sm:$0xff]
  %v69 = vld [vmem:[%s1 + $0x1b8] sm:$0xff]
  %v70 = vld [vmem:[%s1 + $0x1c0] sm:$0xff]
  %v71 = vld [vmem:[%s1 + $0x1c8] sm:$0xff]
  %v72 = vld [vmem:[%s1 + $0x1d0] sm:$0xff]
  %v73 = vld [vmem:[%s1 + $0x1d8] sm:$0xff]
  %v74 = vld [vmem:[%s1 + $0x1e0] sm:$0xff]
  %v75 = vld [vmem:[%s1 + $0x1e8] sm:$0xff]
  %v76 = vld [vmem:[%s1 + $0x1f0] sm:$0xff]
  %v77 = vld [vmem:[%s1 + $0x1f8] sm:$0xff]
  %v80 = vunpack.c.l.b16 %v12
  %v81 = vunpack.c.l.b16 %v13
  %v82 = vpack.c.b16 %v81, %v80
  %v148 = vunpack.c.l.b16 %v14
  %v149 = vunpack.c.h.b16 %v14
  %v150 = vunpack.c.l.b16 %v15
  %v151 = vunpack.c.h.b16 %v15
  %v152 = vunpack.c.l.b16 %v16
  %v153 = vunpack.c.h.b16 %v16
  %v154 = vunpack.c.l.b16 %v17
  %v155 = vunpack.c.h.b16 %v17
  %v156 = vunpack.c.l.b16 %v18
  %v157 = vunpack.c.h.b16 %v18
  %v158 = vunpack.c.l.b16 %v19
  %v159 = vunpack.c.h.b16 %v19
  %v160 = vunpack.c.l.b16 %v20
  %v161 = vunpack.c.h.b16 %v20
  %v162 = vunpack.c.l.b16 %v21
  %v163 = vunpack.c.h.b16 %v21
  %v164 = vunpack.c.l.b16 %v22
  %v165 = vunpack.c.h.b16 %v22
  %v166 = vunpack.c.l.b16 %v23
  %v167 = vunpack.c.h.b16 %v23
  %v168 = vunpack.c.l.b16 %v24
  %v169 = vunpack.c.h.b16 %v24
  %v170 = vunpack.c.l.b16 %v25
  %v171 = vunpack.c.h.b16 %v25
  %v172 = vunpack.c.l.b16 %v26
  %v173 = vunpack.c.h.b16 %v26
  %v174 = vunpack.c.l.b16 %v27
  %v175 = vunpack.c.h.b16 %v27
  %v176 = vunpack.c.l.b16 %v28
  %v177 = vunpack.c.h.b16 %v28
  %v178 = vunpack.c.l.b16 %v29
  %v179 = vunpack.c.h.b16 %v29
  %v180 = vunpack.c.l.b16 %v30
  %v181 = vunpack.c.h.b16 %v30
  %v182 = vunpack.c.l.b16 %v31
  %v183 = vunpack.c.h.b16 %v31
  %v184 = vunpack.c.l.b16 %v32
  %v185 = vunpack.c.h.b16 %v32
  %v186 = vunpack.c.l.b16 %v33
  %v187 = vunpack.c.h.b16 %v33
  %v188 = vunpack.c.l.b16 %v34
  %v189 = vunpack.c.h.b16 %v34
  %v190 = vunpack.c.l.b16 %v35
  %v191 = vunpack.c.h.b16 %v35
  %v192 = vunpack.c.l.b16 %v36
  %v193 = vunpack.c.h.b16 %v36
  %v194 = vunpack.c.l.b16 %v37
  %v195 = vunpack.c.h.b16 %v37
  %v196 = vunpack.c.l.b16 %v38
  %v197 = vunpack.c.h.b16 %v38
  %v198 = vunpack.c.l.b16 %v39
  %v199 = vunpack.c.h.b16 %v39
  %v200 = vunpack.c.l.b16 %v40
  %v201 = vunpack.c.h.b16 %v40
  %v202 = vunpack.c.l.b16 %v41
  %v203 = vunpack.c.h.b16 %v41
  %v204 = vunpack.c.l.b16 %v42
  %v205 = vunpack.c.h.b16 %v42
  %v206 = vunpack.c.l.b16 %v43
  %v207 = vunpack.c.h.b16 %v43
  %v208 = vunpack.c.l.b16 %v44
  %v209 = vunpack.c.h.b16 %v44
  %v210 = vunpack.c.l.b16 %v45
  %v211 = vunpack.c.h.b16 %v45
  %v212 = vunpack.c.l.b16 %v46
  %v213 = vunpack.c.h.b16 %v46
  %v214 = vunpack.c.l.b16 %v47
  %v215 = vunpack.c.h.b16 %v47
  %v216 = vunpack.c.l.b16 %v48
  %v217 = vunpack.c.h.b16 %v48
  %v218 = vunpack.c.l.b16 %v49
  %v219 = vunpack.c.h.b16 %v49
  %v220 = vunpack.c.l.b16 %v50
  %v221 = vunpack.c.h.b16 %v50
  %v222 = vunpack.c.l.b16 %v51
  %v223 = vunpack.c.h.b16 %v51
  %v224 = vunpack.c.l.b16 %v52
  %v225 = vunpack.c.h.b16 %v52
  %v226 = vunpack.c.l.b16 %v53
  %v227 = vunpack.c.h.b16 %v53
  %v228 = vunpack.c.l.b16 %v54
  %v229 = vunpack.c.h.b16 %v54
  %v230 = vunpack.c.l.b16 %v55
  %v231 = vunpack.c.h.b16 %v55
  %v232 = vunpack.c.l.b16 %v56
  %v233 = vunpack.c.h.b16 %v56
  %v234 = vunpack.c.l.b16 %v57
  %v235 = vunpack.c.h.b16 %v57
  %v236 = vunpack.c.l.b16 %v58
  %v237 = vunpack.c.h.b16 %v58
  %v238 = vunpack.c.l.b16 %v59
  %v239 = vunpack.c.h.b16 %v59
  %v240 = vunpack.c.l.b16 %v60
  %v241 = vunpack.c.h.b16 %v60
  %v242 = vunpack.c.l.b16 %v61
  %v243 = vunpack.c.h.b16 %v61
  %v244 = vunpack.c.l.b16 %v62
  %v245 = vunpack.c.h.b16 %v62
  %v246 = vunpack.c.l.b16 %v63
  %v247 = vunpack.c.h.b16 %v63
  %v248 = vunpack.c.l.b16 %v64
  %v249 = vunpack.c.h.b16 %v64
  %v250 = vunpack.c.l.b16 %v65
  %v251 = vunpack.c.h.b16 %v65
  %v252 = vunpack.c.l.b16 %v66
  %v253 = vunpack.c.h.b16 %v66
  %v254 = vunpack.c.l.b16 %v67
  %v255 = vunpack.c.h.b16 %v67
  %v256 = vunpack.c.l.b16 %v68
  %v257 = vunpack.c.h.b16 %v68
  %v258 = vunpack.c.l.b16 %v69
  %v259 = vunpack.c.h.b16 %v69
  %v260 = vunpack.c.l.b16 %v70
  %v261 = vunpack.c.h.b16 %v70
  %v262 = vunpack.c.l.b16 %v71
  %v263 = vunpack.c.h.b16 %v71
  %v264 = vunpack.c.l.b16 %v72
  %v265 = vunpack.c.h.b16 %v72
  %v266 = vunpack.c.l.b16 %v73
  %v267 = vunpack.c.h.b16 %v73
  %v268 = vunpack.c.l.b16 %v74
  %v269 = vunpack.c.h.b16 %v74
  %v270 = vunpack.c.l.b16 %v75
  %v271 = vunpack.c.h.b16 %v75
  %v272 = vunpack.c.l.b16 %v76
  %v273 = vunpack.c.h.b16 %v76
  %v274 = vunpack.c.l.b16 %v77
  %v275 = vunpack.c.h.b16 %v77
  %v276 = vpack.c.b16 %v156, %v148
  %v277 = vpack.c.b16 %v157, %v149
  %v278 = vpack.c.b16 %v158, %v150
  %v279 = vpack.c.b16 %v159, %v151
  %v280 = vpack.c.b16 %v160, %v152
  %v281 = vpack.c.b16 %v161, %v153
  %v282 = vpack.c.b16 %v162, %v154
  %v283 = vpack.c.b16 %v163, %v155
  %v284 = vpack.c.b16 %v172, %v164
  %v285 = vpack.c.b16 %v173, %v165
  %v286 = vpack.c.b16 %v174, %v166
  %v287 = vpack.c.b16 %v175, %v167
  %v288 = vpack.c.b16 %v176, %v168
  %v289 = vpack.c.b16 %v177, %v169
  %v290 = vpack.c.b16 %v178, %v170
  %v291 = vpack.c.b16 %v179, %v171
  %v292 = vpack.c.b16 %v188, %v180
  %v293 = vpack.c.b16 %v189, %v181
  %v294 = vpack.c.b16 %v190, %v182
  %v295 = vpack.c.b16 %v191, %v183
  %v296 = vpack.c.b16 %v192, %v184
  %v297 = vpack.c.b16 %v193, %v185
  %v298 = vpack.c.b16 %v194, %v186
  %v299 = vpack.c.b16 %v195, %v187
  %v300 = vpack.c.b16 %v204, %v196
  %v301 = vpack.c.b16 %v205, %v197
  %v302 = vpack.c.b16 %v206, %v198
  %v303 = vpack.c.b16 %v207, %v199
  %v304 = vpack.c.b16 %v208, %v200
  %v305 = vpack.c.b16 %v209, %v201
  %v306 = vpack.c.b16 %v210, %v202
  %v307 = vpack.c.b16 %v211, %v203
  %v308 = vpack.c.b16 %v220, %v212
  %v309 = vpack.c.b16 %v221, %v213
  %v310 = vpack.c.b16 %v222, %v214
  %v311 = vpack.c.b16 %v223, %v215
  %v312 = vpack.c.b16 %v224, %v216
  %v313 = vpack.c.b16 %v225, %v217
  %v314 = vpack.c.b16 %v226, %v218
  %v315 = vpack.c.b16 %v227, %v219
  %v316 = vpack.c.b16 %v236, %v228
  %v317 = vpack.c.b16 %v237, %v229
  %v318 = vpack.c.b16 %v238, %v230
  %v319 = vpack.c.b16 %v239, %v231
  %v320 = vpack.c.b16 %v240, %v232
  %v321 = vpack.c.b16 %v241, %v233
  %v322 = vpack.c.b16 %v242, %v234
  %v323 = vpack.c.b16 %v243, %v235
  %v324 = vpack.c.b16 %v252, %v244
  %v325 = vpack.c.b16 %v253, %v245
  %v326 = vpack.c.b16 %v254, %v246
  %v327 = vpack.c.b16 %v255, %v247
  %v328 = vpack.c.b16 %v256, %v248
  %v329 = vpack.c.b16 %v257, %v249
  %v330 = vpack.c.b16 %v258, %v250
  %v331 = vpack.c.b16 %v259, %v251
  %v332 = vpack.c.b16 %v268, %v260
  %v333 = vpack.c.b16 %v269, %v261
  %v334 = vpack.c.b16 %v270, %v262
  %v335 = vpack.c.b16 %v271, %v263
  %v336 = vpack.c.b16 %v272, %v264
  %v337 = vpack.c.b16 %v273, %v265
  %v338 = vpack.c.b16 %v274, %v266
  %v339 = vpack.c.b16 %v275, %v267
  %404 = vmatprep.subr.bf16.mxu0 %v277
  %405 = vmatpush1.bf16.msra.mxu0 %v276
  %406 = vmatprep.subr.bf16.mxu0 %v285
  %407 = vmatpush1.bf16.msra.mxu0 %v284
  %408 = vmatprep.subr.bf16.mxu0 %v293
  %409 = vmatpush1.bf16.msra.mxu0 %v292
  %410 = vmatprep.subr.bf16.mxu0 %v301
  %411 = vmatpush1.bf16.msra.mxu0 %v300
  %412 = vmatprep.subr.bf16.mxu0 %v309
  %413 = vmatpush1.bf16.msra.mxu0 %v308
  %414 = vmatprep.subr.bf16.mxu0 %v317
  %415 = vmatpush1.bf16.msra.mxu0 %v316
  %416 = vmatprep.subr.bf16.mxu0 %v325
  %417 = vmatpush1.bf16.msra.mxu0 %v324
  %418 = vmatprep.subr.bf16.mxu0 %v333
  %419 = vmatpush1.bf16.msra.mxu0 %v332
  %420 = vmatprep.subr.bf16.mxu0 0
  %421 = vmatpush1.bf16.msra.mxu0 0
  %422 = vmatprep.subr.bf16.mxu0 0
  %423 = vmatpush1.bf16.msra.mxu0 0
  %424 = vmatprep.subr.bf16.mxu0 0
  %425 = vmatpush1.bf16.msra.mxu0 0
  %426 = vmatprep.subr.bf16.mxu0 0
  %427 = vmatpush1.bf16.msra.mxu0 0
  %428 = vmatprep.subr.bf16.mxu0 0
  %429 = vmatpush1.bf16.msra.mxu0 0
  %430 = vmatprep.subr.bf16.mxu0 0
  %431 = vmatpush1.bf16.msra.mxu0 0
  %432 = vmatprep.subr.bf16.mxu0 0
  %433 = vmatpush1.bf16.msra.mxu0 0
  %434 = vmatprep.subr.bf16.mxu0 0
  %435 = vmatpush1.bf16.msra.mxu0 0
  %436 = vmatprep.mubr.bf16.mxu0 0
  %437 = vmatmul.mubr.bf16.gmra.mrb[0].mxu0 %v82
  %v438 = vpop.f32.mrb[0].mxu0
  %v439 = vadd.f32 0.0, %v438
  %v440 = vpop.f32.mrb[0].mxu0
  %v441 = vadd.f32 0.0, %v440
  %v442 = vpop.f32.mrb[0].mxu0
  %v443 = vadd.f32 0.0, %v442
  %v444 = vpop.f32.mrb[0].mxu0
  %v445 = vadd.f32 0.0, %v444
  %446 = vdwg.mxu0
  %447 = vmatprep.subr.bf16.mxu0 %v279
  %448 = vmatpush1.bf16.msra.mxu0 %v278
  %449 = vmatprep.subr.bf16.mxu0 %v287
  %450 = vmatpush1.bf16.msra.mxu0 %v286
  %451 = vmatprep.subr.bf16.mxu0 %v295
  %452 = vmatpush1.bf16.msra.mxu0 %v294
  %453 = vmatprep.subr.bf16.mxu0 %v303
  %454 = vmatpush1.bf16.msra.mxu0 %v302
  %455 = vmatprep.subr.bf16.mxu0 %v311
  %456 = vmatpush1.bf16.msra.mxu0 %v310
  %457 = vmatprep.subr.bf16.mxu0 %v319
  %458 = vmatpush1.bf16.msra.mxu0 %v318
  %459 = vmatprep.subr.bf16.mxu0 %v327
  %460 = vmatpush1.bf16.msra.mxu0 %v326
  %461 = vmatprep.subr.bf16.mxu0 %v335
  %462 = vmatpush1.bf16.msra.mxu0 %v334
  %463 = vmatprep.subr.bf16.mxu0 0
  %464 = vmatpush1.bf16.msra.mxu0 0
  %465 = vmatprep.subr.bf16.mxu0 0
  %466 = vmatpush1.bf16.msra.mxu0 0
  %467 = vmatprep.subr.bf16.mxu0 0
  %468 = vmatpush1.bf16.msra.mxu0 0
  %469 = vmatprep.subr.bf16.mxu0 0
  %470 = vmatpush1.bf16.msra.mxu0 0
  %471 = vmatprep.subr.bf16.mxu0 0
  %472 = vmatpush1.bf16.msra.mxu0 0
  %473 = vmatprep.subr.bf16.mxu0 0
  %474 = vmatpush1.bf16.msra.mxu0 0
  %475 = vmatprep.subr.bf16.mxu0 0
  %476 = vmatpush1.bf16.msra.mxu0 0
  %477 = vmatprep.subr.bf16.mxu0 0
  %478 = vmatpush1.bf16.msra.mxu0 0
  %479 = vmatprep.mubr.bf16.mxu0 0
  %480 = vmatmul.mubr.bf16.gmra.mrb[0].mxu0 %v82
  %v481 = vpop.f32.mrb[0].mxu0
  %v482 = vadd.f32 0.0, %v481
  %v483 = vpop.f32.mrb[0].mxu0
  %v484 = vadd.f32 0.0, %v483
  %v485 = vpop.f32.mrb[0].mxu0
  %v486 = vadd.f32 0.0, %v485
  %v487 = vpop.f32.mrb[0].mxu0
  %v488 = vadd.f32 0.0, %v487
  %489 = vdwg.mxu0
  %490 = vmatprep.subr.bf16.mxu0 %v281
  %491 = vmatpush1.bf16.msra.mxu0 %v280
  %492 = vmatprep.subr.bf16.mxu0 %v289
  %493 = vmatpush1.bf16.msra.mxu0 %v288
  %494 = vmatprep.subr.bf16.mxu0 %v297
  %495 = vmatpush1.bf16.msra.mxu0 %v296
  %496 = vmatprep.subr.bf16.mxu0 %v305
  %497 = vmatpush1.bf16.msra.mxu0 %v304
  %498 = vmatprep.subr.bf16.mxu0 %v313
  %499 = vmatpush1.bf16.msra.mxu0 %v312
  %500 = vmatprep.subr.bf16.mxu0 %v321
  %501 = vmatpush1.bf16.msra.mxu0 %v320
  %502 = vmatprep.subr.bf16.mxu0 %v329
  %503 = vmatpush1.bf16.msra.mxu0 %v328
  %504 = vmatprep.subr.bf16.mxu0 %v337
  %505 = vmatpush1.bf16.msra.mxu0 %v336
  %506 = vmatprep.subr.bf16.mxu0 0
  %507 = vmatpush1.bf16.msra.mxu0 0
  %508 = vmatprep.subr.bf16.mxu0 0
  %509 = vmatpush1.bf16.msra.mxu0 0
  %510 = vmatprep.subr.bf16.mxu0 0
  %511 = vmatpush1.bf16.msra.mxu0 0
  %512 = vmatprep.subr.bf16.mxu0 0
  %513 = vmatpush1.bf16.msra.mxu0 0
  %514 = vmatprep.subr.bf16.mxu0 0
  %515 = vmatpush1.bf16.msra.mxu0 0
  %516 = vmatprep.subr.bf16.mxu0 0
  %517 = vmatpush1.bf16.msra.mxu0 0
  %518 = vmatprep.subr.bf16.mxu0 0
  %519 = vmatpush1.bf16.msra.mxu0 0
  %520 = vmatprep.subr.bf16.mxu0 0
  %521 = vmatpush1.bf16.msra.mxu0 0
  %522 = vmatprep.mubr.bf16.mxu0 0
  %523 = vmatmul.mubr.bf16.gmra.mrb[0].mxu0 %v82
  %v524 = vpop.f32.mrb[0].mxu0
  %v525 = vadd.f32 0.0, %v524
  %v526 = vpop.f32.mrb[0].mxu0
  %v527 = vadd.f32 0.0, %v526
  %v528 = vpop.f32.mrb[0].mxu0
  %v529 = vadd.f32 0.0, %v528
  %v530 = vpop.f32.mrb[0].mxu0
  %v531 = vadd.f32 0.0, %v530
  %532 = vdwg.mxu0
  %533 = vmatprep.subr.bf16.mxu0 %v283
  %534 = vmatpush1.bf16.msra.mxu0 %v282
  %535 = vmatprep.subr.bf16.mxu0 %v291
  %536 = vmatpush1.bf16.msra.mxu0 %v290
  %537 = vmatprep.subr.bf16.mxu0 %v299
  %538 = vmatpush1.bf16.msra.mxu0 %v298
  %539 = vmatprep.subr.bf16.mxu0 %v307
  %540 = vmatpush1.bf16.msra.mxu0 %v306
  %541 = vmatprep.subr.bf16.mxu0 %v315
  %542 = vmatpush1.bf16.msra.mxu0 %v314
  %543 = vmatprep.subr.bf16.mxu0 %v323
  %544 = vmatpush1.bf16.msra.mxu0 %v322
  %545 = vmatprep.subr.bf16.mxu0 %v331
  %546 = vmatpush1.bf16.msra.mxu0 %v330
  %547 = vmatprep.subr.bf16.mxu0 %v339
  %548 = vmatpush1.bf16.msra.mxu0 %v338
  %549 = vmatprep.subr.bf16.mxu0 0
  %550 = vmatpush1.bf16.msra.mxu0 0
  %551 = vmatprep.subr.bf16.mxu0 0
  %552 = vmatpush1.bf16.msra.mxu0 0
  %553 = vmatprep.subr.bf16.mxu0 0
  %554 = vmatpush1.bf16.msra.mxu0 0
  %555 = vmatprep.subr.bf16.mxu0 0
  %556 = vmatpush1.bf16.msra.mxu0 0
  %557 = vmatprep.subr.bf16.mxu0 0
  %558 = vmatpush1.bf16.msra.mxu0 0
  %559 = vmatprep.subr.bf16.mxu0 0
  %560 = vmatpush1.bf16.msra.mxu0 0
  %561 = vmatprep.subr.bf16.mxu0 0
  %562 = vmatpush1.bf16.msra.mxu0 0
  %563 = vmatprep.subr.bf16.mxu0 0
  %564 = vmatpush1.bf16.msra.mxu0 0
  %565 = vmatprep.mubr.bf16.mxu0 0
  %566 = vmatmul.mubr.bf16.gmra.mrb[0].mxu0 %v82
  %v567 = vpop.f32.mrb[0].mxu0
  %v568 = vadd.f32 0.0, %v567
  %v569 = vpop.f32.mrb[0].mxu0
  %v570 = vadd.f32 0.0, %v569
  %v571 = vpop.f32.mrb[0].mxu0
  %v572 = vadd.f32 0.0, %v571
  %v573 = vpop.f32.mrb[0].mxu0
  %v574 = vadd.f32 0.0, %v573
  %575 = vdwg.mxu0
  %v576 = vpack.c.bf16 %v443, %v439
  %v577 = vpack.c.bf16 %v445, %v441
  %v578 = vpack.c.bf16 %v486, %v482
  %v579 = vpack.c.bf16 %v488, %v484
  %v580 = vpack.c.bf16 %v529, %v525
  %v581 = vpack.c.bf16 %v531, %v527
  %v582 = vpack.c.bf16 %v572, %v568
  %v583 = vpack.c.bf16 %v574, %v570
  %v592 = vunpack.c.l.b16 %v576
  %v593 = vunpack.c.l.b16 %v577
  %v594 = vunpack.c.l.b16 %v578
  %v595 = vunpack.c.l.b16 %v579
  %v596 = vunpack.c.l.b16 %v580
  %v597 = vunpack.c.l.b16 %v581
  %v598 = vunpack.c.l.b16 %v582
  %v599 = vunpack.c.l.b16 %v583
  %v600 = vunpack.c.h.b16 %v576
  %v601 = vunpack.c.h.b16 %v577
  %v602 = vunpack.c.h.b16 %v578
  %v603 = vunpack.c.h.b16 %v579
  %v604 = vunpack.c.h.b16 %v580
  %v605 = vunpack.c.h.b16 %v581
  %v606 = vunpack.c.h.b16 %v582
  %v607 = vunpack.c.h.b16 %v583
  %v608 = vpack.c.b16 %v593, %v592
  %v609 = vpack.c.b16 %v595, %v594
  %v610 = vpack.c.b16 %v597, %v596
  %v611 = vpack.c.b16 %v599, %v598
  %v612 = vpack.c.b16 %v601, %v600
  %v613 = vpack.c.b16 %v603, %v602
  %v614 = vpack.c.b16 %v605, %v604
  %v615 = vpack.c.b16 %v607, %v606
  %624 = vst [vmem:[%s2] sm:$0xff] %v608
  %625 = vst [vmem:[%s2 + $0x8] sm:$0xff] %v609
  %626 = vst [vmem:[%s2 + $0x10] sm:$0xff] %v610
  %627 = vst [vmem:[%s2 + $0x18] sm:$0xff] %v611
  %628 = vst [vmem:[%s2 + $0x20] sm:$0xff] %v612
  %629 = vst [vmem:[%s2 + $0x28] sm:$0xff] %v613
  %630 = vst [vmem:[%s2 + $0x30] sm:$0xff] %v614
  %631 = vst [vmem:[%s2 + $0x38] sm:$0xff] %v615
  // Predicated region
  $region10: #{generator_forward.14} parent=0 // pred_check
    _
  $region11: #{generator_forward.14} parent=0 // pred_check_branch
    %633 = sbr.rel (0) target = $region13
  $region12: #{generator_forward.14} parent=0 // pred_region
    _
  $region13: #{generator_forward.14} parent=0 // pred_fallthru
    _
  // Predicated region
  $region14: #{generator_forward.14} parent=0 // pred_check
    _
  $region15: #{generator_forward.14} parent=0 // pred_check_branch
    %635 = sbr.rel (0) target = $region17
  $region16: #{generator_forward.14} parent=0 // pred_region
    _
  $region17: #{generator_forward.14} parent=0 // pred_fallthru
    _

// kernel: generator_forward.16
$region0: #{generator_forward.16}
  #allocation0 [shape = 'u32[]', space=smem, size = 0x4, offset = 0x4, fixed_abs, tag = 'smem constant byte address 0x4 - core index']
  #allocation1 [shape = 'u32[144,128]{1,0:T(1,128)}', space=vmem, size = 0x12000, scoped, tag = 'internal scratch']
  %s0 = inlined_call_operand.vmem [shape: bf16[8,256], index: 0, kind: input, shape index: {}]
  %s1 = inlined_call_operand.vmem [shape: f32[1,256], index: 1, kind: input, shape index: {}]
  %s2 = inlined_call_operand.vmem [shape: f32[1,256], index: 2, kind: input, shape index: {}]
  %s3 = inlined_call_operand.vmem [shape: bf16[8,256], index: 3, kind: output, shape index: {}]
  %s4 = sld [smem:[#allocation0]]
  $region22: #{generator_forward.16} parent=0
    _
  %s6 = ssub.s32 1, %s4
  %s7 = scalar_select 0, %s6, %s4
  // Predicated region
  $region2: #{generator_forward.16} parent=0 // pred_check
    _
  $region3: #{generator_forward.16} parent=0 // pred_check_branch
    %9 = sbr.rel (0) target = $region5
  $region4: #{generator_forward.16} parent=0 // pred_region
    _
  $region5: #{generator_forward.16} parent=0 // pred_fallthru
    _
  // Predicated region
  $region6: #{generator_forward.16} parent=0 // pred_check
    _
  $region7: #{generator_forward.16} parent=0 // pred_check_branch
    %11 = sbr.rel (0) target = $region9
  $region8: #{generator_forward.16} parent=0 // pred_region
    _
  $region9: #{generator_forward.16} parent=0 // pred_fallthru
    _
  // Predicated region
  $region10: #{generator_forward.16} parent=0 // pred_check
    _
  $region11: #{generator_forward.16} parent=0 // pred_check_branch
    %13 = sbr.rel (0) target = $region13
  $region12: #{generator_forward.16} parent=0 // pred_region
    _
  $region13: #{generator_forward.16} parent=0 // pred_fallthru
    _
  %v14 = vld [vmem:[%s0] sm:$0xff]
  %v15 = vunpack.c.l.bf16 %v14
  %v16 = vunpack.c.h.bf16 %v14
  %v17 = vld [vmem:[%s1] sm:$0x3]
  %v19 = vlaneseq
  %v20 = vshrl.u32 %v19, 7
  %v21 = vsub.s32 0, %v20
  %v22 = vrot.slane %v17, %v21
  %v23 = vlaneseq
  %v24 = vshrl.u32 %v23, 7
  %v25 = vsub.s32 1, %v24
  %v26 = vrot.slane %v17, %v25
  %v29 = vmul.f32 %v15, %v22
  %v30 = vmul.f32 %v16, %v26
  %v31 = vld [vmem:[%s2] sm:$0x3]
  %v33 = vlaneseq
  %v34 = vshrl.u32 %v33, 7
  %v35 = vsub.s32 0, %v34
  %v36 = vrot.slane %v31, %v35
  %v37 = vlaneseq
  %v38 = vshrl.u32 %v37, 7
  %v39 = vsub.s32 1, %v38
  %v40 = vrot.slane %v31, %v39
  %v43 = vadd.f32 %v29, %v36
  %v44 = vadd.f32 %v30, %v40
  %v45 = vmax.f32 %v43, 0.0
  %v46 = vmax.f32 %v44, 0.0
  %v47 = vpack.c.bf16 %v45, %v45
  %v48 = vpack.c.bf16 %v46, %v46
  %v51 = vunpack.c.l.b16 %v47
  %v52 = vunpack.c.l.b16 %v48
  %v53 = vpack.c.b16 %v52, %v51
  %55 = vst [vmem:[%s3] sm:$0xff] %v53
  // Predicated region
  $region14: #{generator_forward.16} parent=0 // pred_check
    _
  $region15: #{generator_forward.16} parent=0 // pred_check_branch
    %57 = sbr.rel (0) target = $region17
  $region16: #{generator_forward.16} parent=0 // pred_region
    _
  $region17: #{generator_forward.16} parent=0 // pred_fallthru
    _
  // Predicated region
  $region18: #{generator_forward.16} parent=0 // pred_check
    _
  $region19: #{generator_forward.16} parent=0 // pred_check_branch
    %59 = sbr.rel (0) target = $region21
  $region20: #{generator_forward.16} parent=0 // pred_region
    _
  $region21: #{generator_forward.16} parent=0 // pred_fallthru
    _

// kernel: generator_forward.17
$region0: #{generator_forward.17}
  #allocation0 [shape = 'u32[]', space=smem, size = 0x4, offset = 0x4, fixed_abs, tag = 'smem constant byte address 0x4 - core index']
  #allocation1 [shape = 'u32[144,128]{1,0:T(1,128)}', space=vmem, size = 0x12000, scoped, tag = 'internal scratch']
  %s0 = inlined_call_operand.vmem [shape: bf16[32,128], index: 0, kind: input, shape index: {}]
  %s1 = inlined_call_operand.vmem [shape: bf16[128,512], index: 1, kind: input, shape index: {}]
  %s2 = inlined_call_operand.vmem [shape: bf16[32,512], index: 2, kind: output, shape index: {}]
  %s3 = sld [smem:[#allocation0]]
  $region18: #{generator_forward.17} parent=0
    _
  %s5 = ssub.s32 1, %s3
  %s6 = scalar_select 0, %s5, %s3
  // Predicated region
  $region2: #{generator_forward.17} parent=0 // pred_check
    _
  $region3: #{generator_forward.17} parent=0 // pred_check_branch
    %8 = sbr.rel (0) target = $region5
  $region4: #{generator_forward.17} parent=0 // pred_region
    _
  $region5: #{generator_forward.17} parent=0 // pred_fallthru
    _
  // Predicated region
  $region6: #{generator_forward.17} parent=0 // pred_check
    _
  $region7: #{generator_forward.17} parent=0 // pred_check_branch
    %10 = sbr.rel (0) target = $region9
  $region8: #{generator_forward.17} parent=0 // pred_region
    _
  $region9: #{generator_forward.17} parent=0 // pred_fallthru
    _
  %v12 = vld [vmem:[%s0] sm:$0xf]
  %v13 = vld [vmem:[%s0 + $0x4] sm:$0xf]
  %v14 = vld [vmem:[%s0 + $0x8] sm:$0xf]
  %v15 = vld [vmem:[%s0 + $0xc] sm:$0xf]
  %v16 = vld [vmem:[%s1] sm:$0xff]
  %v17 = vld [vmem:[%s1 + $0x8] sm:$0xff]
  %v18 = vld [vmem:[%s1 + $0x10] sm:$0xff]
  %v19 = vld [vmem:[%s1 + $0x18] sm:$0xff]
  %v20 = vld [vmem:[%s1 + $0x20] sm:$0xff]
  %v21 = vld [vmem:[%s1 + $0x28] sm:$0xff]
  %v22 = vld [vmem:[%s1 + $0x30] sm:$0xff]
  %v23 = vld [vmem:[%s1 + $0x38] sm:$0xff]
  %v24 = vld [vmem:[%s1 + $0x40] sm:$0xff]
  %v25 = vld [vmem:[%s1 + $0x48] sm:$0xff]
  %v26 = vld [vmem:[%s1 + $0x50] sm:$0xff]
  %v27 = vld [vmem:[%s1 + $0x58] sm:$0xff]
  %v28 = vld [vmem:[%s1 + $0x60] sm:$0xff]
  %v29 = vld [vmem:[%s1 + $0x68] sm:$0xff]
  %v30 = vld [vmem:[%s1 + $0x70] sm:$0xff]
  %v31 = vld [vmem:[%s1 + $0x78] sm:$0xff]
  %v32 = vld [vmem:[%s1 + $0x80] sm:$0xff]
  %v33 = vld [vmem:[%s1 + $0x88] sm:$0xff]
  %v34 = vld [vmem:[%s1 + $0x90] sm:$0xff]
  %v35 = vld [vmem:[%s1 + $0x98] sm:$0xff]
  %v36 = vld [vmem:[%s1 + $0xa0] sm:$0xff]
  %v37 = vld [vmem:[%s1 + $0xa8] sm:$0xff]
  %v38 = vld [vmem:[%s1 + $0xb0] sm:$0xff]
  %v39 = vld [vmem:[%s1 + $0xb8] sm:$0xff]
  %v40 = vld [vmem:[%s1 + $0xc0] sm:$0xff]
  %v41 = vld [vmem:[%s1 + $0xc8] sm:$0xff]
  %v42 = vld [vmem:[%s1 + $0xd0] sm:$0xff]
  %v43 = vld [vmem:[%s1 + $0xd8] sm:$0xff]
  %v44 = vld [vmem:[%s1 + $0xe0] sm:$0xff]
  %v45 = vld [vmem:[%s1 + $0xe8] sm:$0xff]
  %v46 = vld [vmem:[%s1 + $0xf0] sm:$0xff]
  %v47 = vld [vmem:[%s1 + $0xf8] sm:$0xff]
  %v52 = vunpack.c.l.b16 %v12
  %v53 = vunpack.c.l.b16 %v13
  %v54 = vunpack.c.l.b16 %v14
  %v55 = vunpack.c.l.b16 %v15
  %v56 = vpack.c.b16 %v53, %v52
  %v57 = vpack.c.b16 %v55, %v54
  %v92 = vunpack.c.l.b16 %v16
  %v93 = vunpack.c.h.b16 %v16
  %v94 = vunpack.c.l.b16 %v17
  %v95 = vunpack.c.h.b16 %v17
  %v96 = vunpack.c.l.b16 %v18
  %v97 = vunpack.c.h.b16 %v18
  %v98 = vunpack.c.l.b16 %v19
  %v99 = vunpack.c.h.b16 %v19
  %v100 = vunpack.c.l.b16 %v20
  %v101 = vunpack.c.h.b16 %v20
  %v102 = vunpack.c.l.b16 %v21
  %v103 = vunpack.c.h.b16 %v21
  %v104 = vunpack.c.l.b16 %v22
  %v105 = vunpack.c.h.b16 %v22
  %v106 = vunpack.c.l.b16 %v23
  %v107 = vunpack.c.h.b16 %v23
  %v108 = vunpack.c.l.b16 %v24
  %v109 = vunpack.c.h.b16 %v24
  %v110 = vunpack.c.l.b16 %v25
  %v111 = vunpack.c.h.b16 %v25
  %v112 = vunpack.c.l.b16 %v26
  %v113 = vunpack.c.h.b16 %v26
  %v114 = vunpack.c.l.b16 %v27
  %v115 = vunpack.c.h.b16 %v27
  %v116 = vunpack.c.l.b16 %v28
  %v117 = vunpack.c.h.b16 %v28
  %v118 = vunpack.c.l.b16 %v29
  %v119 = vunpack.c.h.b16 %v29
  %v120 = vunpack.c.l.b16 %v30
  %v121 = vunpack.c.h.b16 %v30
  %v122 = vunpack.c.l.b16 %v31
  %v123 = vunpack.c.h.b16 %v31
  %v124 = vunpack.c.l.b16 %v32
  %v125 = vunpack.c.h.b16 %v32
  %v126 = vunpack.c.l.b16 %v33
  %v127 = vunpack.c.h.b16 %v33
  %v128 = vunpack.c.l.b16 %v34
  %v129 = vunpack.c.h.b16 %v34
  %v130 = vunpack.c.l.b16 %v35
  %v131 = vunpack.c.h.b16 %v35
  %v132 = vunpack.c.l.b16 %v36
  %v133 = vunpack.c.h.b16 %v36
  %v134 = vunpack.c.l.b16 %v37
  %v135 = vunpack.c.h.b16 %v37
  %v136 = vunpack.c.l.b16 %v38
  %v137 = vunpack.c.h.b16 %v38
  %v138 = vunpack.c.l.b16 %v39
  %v139 = vunpack.c.h.b16 %v39
  %v140 = vunpack.c.l.b16 %v40
  %v141 = vunpack.c.h.b16 %v40
  %v142 = vunpack.c.l.b16 %v41
  %v143 = vunpack.c.h.b16 %v41
  %v144 = vunpack.c.l.b16 %v42
  %v145 = vunpack.c.h.b16 %v42
  %v146 = vunpack.c.l.b16 %v43
  %v147 = vunpack.c.h.b16 %v43
  %v148 = vunpack.c.l.b16 %v44
  %v149 = vunpack.c.h.b16 %v44
  %v150 = vunpack.c.l.b16 %v45
  %v151 = vunpack.c.h.b16 %v45
  %v152 = vunpack.c.l.b16 %v46
  %v153 = vunpack.c.h.b16 %v46
  %v154 = vunpack.c.l.b16 %v47
  %v155 = vunpack.c.h.b16 %v47
  %v156 = vpack.c.b16 %v96, %v92
  %v157 = vpack.c.b16 %v97, %v93
  %v158 = vpack.c.b16 %v98, %v94
  %v159 = vpack.c.b16 %v99, %v95
  %v160 = vpack.c.b16 %v104, %v100
  %v161 = vpack.c.b16 %v105, %v101
  %v162 = vpack.c.b16 %v106, %v102
  %v163 = vpack.c.b16 %v107, %v103
  %v164 = vpack.c.b16 %v112, %v108
  %v165 = vpack.c.b16 %v113, %v109
  %v166 = vpack.c.b16 %v114, %v110
  %v167 = vpack.c.b16 %v115, %v111
  %v168 = vpack.c.b16 %v120, %v116
  %v169 = vpack.c.b16 %v121, %v117
  %v170 = vpack.c.b16 %v122, %v118
  %v171 = vpack.c.b16 %v123, %v119
  %v172 = vpack.c.b16 %v128, %v124
  %v173 = vpack.c.b16 %v129, %v125
  %v174 = vpack.c.b16 %v130, %v126
  %v175 = vpack.c.b16 %v131, %v127
  %v176 = vpack.c.b16 %v136, %v132
  %v177 = vpack.c.b16 %v137, %v133
  %v178 = vpack.c.b16 %v138, %v134
  %v179 = vpack.c.b16 %v139, %v135
  %v180 = vpack.c.b16 %v144, %v140
  %v181 = vpack.c.b16 %v145, %v141
  %v182 = vpack.c.b16 %v146, %v142
  %v183 = vpack.c.b16 %v147, %v143
  %v184 = vpack.c.b16 %v152, %v148
  %v185 = vpack.c.b16 %v153, %v149
  %v186 = vpack.c.b16 %v154, %v150
  %v187 = vpack.c.b16 %v155, %v151
  %220 = vmatprep.subr.bf16.mxu0 %v157
  %221 = vmatpush1.bf16.msra.mxu0 %v156
  %222 = vmatprep.subr.bf16.mxu0 %v161
  %223 = vmatpush1.bf16.msra.mxu0 %v160
  %224 = vmatprep.subr.bf16.mxu0 %v165
  %225 = vmatpush1.bf16.msra.mxu0 %v164
  %226 = vmatprep.subr.bf16.mxu0 %v169
  %227 = vmatpush1.bf16.msra.mxu0 %v168
  %228 = vmatprep.subr.bf16.mxu0 %v173
  %229 = vmatpush1.bf16.msra.mxu0 %v172
  %230 = vmatprep.subr.bf16.mxu0 %v177
  %231 = vmatpush1.bf16.msra.mxu0 %v176
  %232 = vmatprep.subr.bf16.mxu0 %v181
  %233 = vmatpush1.bf16.msra.mxu0 %v180
  %234 = vmatprep.subr.bf16.mxu0 %v185
  %235 = vmatpush1.bf16.msra.mxu0 %v184
  %236 = vmatprep.subr.bf16.mxu0 0
  %237 = vmatpush1.bf16.msra.mxu0 0
  %238 = vmatprep.subr.bf16.mxu0 0
  %239 = vmatpush1.bf16.msra.mxu0 0
  %240 = vmatprep.subr.bf16.mxu0 0
  %241 = vmatpush1.bf16.msra.mxu0 0
  %242 = vmatprep.subr.bf16.mxu0 0
  %243 = vmatpush1.bf16.msra.mxu0 0
  %244 = vmatprep.subr.bf16.mxu0 0
  %245 = vmatpush1.bf16.msra.mxu0 0
  %246 = vmatprep.subr.bf16.mxu0 0
  %247 = vmatpush1.bf16.msra.mxu0 0
  %248 = vmatprep.subr.bf16.mxu0 0
  %249 = vmatpush1.bf16.msra.mxu0 0
  %250 = vmatprep.subr.bf16.mxu0 0
  %251 = vmatpush1.bf16.msra.mxu0 0
  %252 = vmatprep.mubr.bf16.mxu0 0
  %253 = vmatmul.mubr.bf16.gmra.mrb[0].mxu0 %v56
  %v254 = vpop.f32.mrb[0].mxu0
  %v255 = vadd.f32 0.0, %v254
  %v256 = vpop.f32.mrb[0].mxu0
  %v257 = vadd.f32 0.0, %v256
  %v258 = vpop.f32.mrb[0].mxu0
  %v259 = vadd.f32 0.0, %v258
  %v260 = vpop.f32.mrb[0].mxu0
  %v261 = vadd.f32 0.0, %v260
  %262 = vmatprep.mubr.bf16.mxu0 0
  %263 = vmatmul.mubr.bf16.gmra.mrb[0].mxu0 %v57
  %v264 = vpop.f32.mrb[0].mxu0
  %v265 = vadd.f32 0.0, %v264
  %v266 = vpop.f32.mrb[0].mxu0
  %v267 = vadd.f32 0.0, %v266
  %v268 = vpop.f32.mrb[0].mxu0
  %v269 = vadd.f32 0.0, %v268
  %v270 = vpop.f32.mrb[0].mxu0
  %v271 = vadd.f32 0.0, %v270
  %272 = vdwg.mxu0
  %273 = vmatprep.subr.bf16.mxu0 %v159
  %274 = vmatpush1.bf16.msra.mxu0 %v158
  %275 = vmatprep.subr.bf16.mxu0 %v163
  %276 = vmatpush1.bf16.msra.mxu0 %v162
  %277 = vmatprep.subr.bf16.mxu0 %v167
  %278 = vmatpush1.bf16.msra.mxu0 %v166
  %279 = vmatprep.subr.bf16.mxu0 %v171
  %280 = vmatpush1.bf16.msra.mxu0 %v170
  %281 = vmatprep.subr.bf16.mxu0 %v175
  %282 = vmatpush1.bf16.msra.mxu0 %v174
  %283 = vmatprep.subr.bf16.mxu0 %v179
  %284 = vmatpush1.bf16.msra.mxu0 %v178
  %285 = vmatprep.subr.bf16.mxu0 %v183
  %286 = vmatpush1.bf16.msra.mxu0 %v182
  %287 = vmatprep.subr.bf16.mxu0 %v187
  %288 = vmatpush1.bf16.msra.mxu0 %v186
  %289 = vmatprep.subr.bf16.mxu0 0
  %290 = vmatpush1.bf16.msra.mxu0 0
  %291 = vmatprep.subr.bf16.mxu0 0
  %292 = vmatpush1.bf16.msra.mxu0 0
  %293 = vmatprep.subr.bf16.mxu0 0
  %294 = vmatpush1.bf16.msra.mxu0 0
  %295 = vmatprep.subr.bf16.mxu0 0
  %296 = vmatpush1.bf16.msra.mxu0 0
  %297 = vmatprep.subr.bf16.mxu0 0
  %298 = vmatpush1.bf16.msra.mxu0 0
  %299 = vmatprep.subr.bf16.mxu0 0
  %300 = vmatpush1.bf16.msra.mxu0 0
  %301 = vmatprep.subr.bf16.mxu0 0
  %302 = vmatpush1.bf16.msra.mxu0 0
  %303 = vmatprep.subr.bf16.mxu0 0
  %304 = vmatpush1.bf16.msra.mxu0 0
  %305 = vmatprep.mubr.bf16.mxu0 0
  %306 = vmatmul.mubr.bf16.gmra.mrb[0].mxu0 %v56
  %v307 = vpop.f32.mrb[0].mxu0
  %v308 = vadd.f32 0.0, %v307
  %v309 = vpop.f32.mrb[0].mxu0
  %v310 = vadd.f32 0.0, %v309
  %v311 = vpop.f32.mrb[0].mxu0
  %v312 = vadd.f32 0.0, %v311
  %v313 = vpop.f32.mrb[0].mxu0
  %v314 = vadd.f32 0.0, %v313
  %315 = vmatprep.mubr.bf16.mxu0 0
  %316 = vmatmul.mubr.bf16.gmra.mrb[0].mxu0 %v57
  %v317 = vpop.f32.mrb[0].mxu0
  %v318 = vadd.f32 0.0, %v317
  %v319 = vpop.f32.mrb[0].mxu0
  %v320 = vadd.f32 0.0, %v319
  %v321 = vpop.f32.mrb[0].mxu0
  %v322 = vadd.f32 0.0, %v321
  %v323 = vpop.f32.mrb[0].mxu0
  %v324 = vadd.f32 0.0, %v323
  %325 = vdwg.mxu0
  %v326 = vpack.c.bf16 %v259, %v255
  %v327 = vpack.c.bf16 %v261, %v257
  %v328 = vpack.c.bf16 %v312, %v308
  %v329 = vpack.c.bf16 %v314, %v310
  %v330 = vpack.c.bf16 %v269, %v265
  %v331 = vpack.c.bf16 %v271, %v267
  %v332 = vpack.c.bf16 %v322, %v318
  %v333 = vpack.c.bf16 %v324, %v320
  %v342 = vunpack.c.l.b16 %v326
  %v343 = vunpack.c.l.b16 %v327
  %v344 = vunpack.c.l.b16 %v328
  %v345 = vunpack.c.l.b16 %v329
  %v346 = vunpack.c.h.b16 %v326
  %v347 = vunpack.c.h.b16 %v327
  %v348 = vunpack.c.h.b16 %v328
  %v349 = vunpack.c.h.b16 %v329
  %v350 = vunpack.c.l.b16 %v330
  %v351 = vunpack.c.l.b16 %v331
  %v352 = vunpack.c.l.b16 %v332
  %v353 = vunpack.c.l.b16 %v333
  %v354 = vunpack.c.h.b16 %v330
  %v355 = vunpack.c.h.b16 %v331
  %v356 = vunpack.c.h.b16 %v332
  %v357 = vunpack.c.h.b16 %v333
  %v358 = vpack.c.b16 %v343, %v342
  %v359 = vpack.c.b16 %v345, %v344
  %v360 = vpack.c.b16 %v347, %v346
  %v361 = vpack.c.b16 %v349, %v348
  %v362 = vpack.c.b16 %v351, %v350
  %v363 = vpack.c.b16 %v353, %v352
  %v364 = vpack.c.b16 %v355, %v354
  %v365 = vpack.c.b16 %v357, %v356
  %374 = vst [vmem:[%s2] sm:$0xff] %v358
  %375 = vst [vmem:[%s2 + $0x8] sm:$0xff] %v359
  %376 = vst [vmem:[%s2 + $0x10] sm:$0xff] %v360
  %377 = vst [vmem:[%s2 + $0x18] sm:$0xff] %v361
  %378 = vst [vmem:[%s2 + $0x20] sm:$0xff] %v362
  %379 = vst [vmem:[%s2 + $0x28] sm:$0xff] %v363
  %380 = vst [vmem:[%s2 + $0x30] sm:$0xff] %v364
  %381 = vst [vmem:[%s2 + $0x38] sm:$0xff] %v365
  // Predicated region
  $region10: #{generator_forward.17} parent=0 // pred_check
    _
  $region11: #{generator_forward.17} parent=0 // pred_check_branch
    %383 = sbr.rel (0) target = $region13
  $region12: #{generator_forward.17} parent=0 // pred_region
    _
  $region13: #{generator_forward.17} parent=0 // pred_fallthru
    _
  // Predicated region
  $region14: #{generator_forward.17} parent=0 // pred_check
    _
  $region15: #{generator_forward.17} parent=0 // pred_check_branch
    %385 = sbr.rel (0) target = $region17
  $region16: #{generator_forward.17} parent=0 // pred_region
    _
  $region17: #{generator_forward.17} parent=0 // pred_fallthru
    _

// kernel: tile.53
$region0: #{tile.53}
  #allocation0 [shape = 's32[1]{0}', space=sflag, size = 0x4, scoped, tag = 'scoped memory for tile.53']
  %s0 = inlined_call_operand.vmem [shape: f32[32], index: 0, kind: input, shape index: {}]
  %s1 = inlined_call_operand.vmem [shape: f32[8,32], index: 1, kind: output, shape index: {}]
  // Predicated region
  $region2: #{tile.53} parent=0 // pred_check
    _
  $region3: #{tile.53} parent=0 // pred_check_branch
    %3 = sbr.rel (0) target = $region5
  $region4: #{tile.53} parent=0 // pred_region
    _
  $region5: #{tile.53} parent=0 // pred_fallthru
    _
  %v4 = vld [vmem:[%s0] ss:$0 sm:$0xff]
  %5 = vst [vmem:[%s1] sm:$0xff] %v4

// kernel: tile.54
$region0: #{tile.54}
  %s0 = inlined_call_operand.vmem [shape: f32[8,32], index: 0, kind: input, shape index: {}]
  %s1 = inlined_call_operand.vmem [shape: f32[1,256], index: 1, kind: output, shape index: {}]
  $region1: #{tile.54} parent=0
    #allocation0 [shape = 'u8[8192]{0}', space=vmem, size = 0x2000, scoped, tag = 'scoped mem for output reshape']
    %s2 = smov 3
    %v3 = vld [vmem:[%s0] ss:$4 sm:%s2]
    %vm4 = vcmask 261120
    %5 = vst.msk [vmem:[#allocation0] ss:$8 sm:$0x3] %vm4, %v3
    %s6 = scalar_lea.vmem %s0, 3
    %s7 = smov 3
    %v8 = vld [vmem:[%s6] ss:$4 sm:%s7]
    %9 = vrot.lane.b32.xlu0 %v8, 96
    %v10 = vpop.permute.xlu0 %9
    %vm11 = vcmask 1048320
    %12 = vst.msk [vmem:[#allocation0] ss:$8 sm:$0x3] %vm11, %v10
    %s13 = scalar_lea.vmem %s0, 2
    %s14 = smov 3
    %v15 = vld [vmem:[%s13] ss:$4 sm:%s14]
    %16 = vrot.lane.b32.xlu0 %v15, 64
    %v17 = vpop.permute.xlu0 %16
    %vm18 = vcmask 785920
    %19 = vst.msk [vmem:[#allocation0] ss:$8 sm:$0x3] %vm18, %v17
    %s20 = scalar_lea.vmem %s0, 1
    %s21 = smov 3
    %v22 = vld [vmem:[%s20] ss:$4 sm:%s21]
    %23 = vrot.lane.b32.xlu0 %v22, 32
    %v24 = vpop.permute.xlu0 %23
    %vm25 = vcmask 523520
    %26 = vst.msk [vmem:[#allocation0] ss:$8 sm:$0x3] %vm25, %v24
    %s28 = sshllo.u32 0, 1
    %v30 = vld [vmem:[#allocation0] sm:%s28]
    %s31 = sshllo.u32 0, 1
    %32 = vst [vmem:[%s1] sm:%s31] %v30
    %s33 = scalar_lea.vmem [#allocation0], 8
    %v34 = vld [vmem:[%s33] sm:%s28]
    %s35 = sshllo.u32 0, 1
    %s36 = scalar_lea.vmem %s1, 1
    %37 = vst [vmem:[%s36] sm:%s35] %v34

// kernel: generator_forward.18
$region0: #{generator_forward.18}
  #allocation0 [shape = 'u32[]', space=smem, size = 0x4, offset = 0x4, fixed_abs, tag = 'smem constant byte address 0x4 - core index']
  #allocation1 [shape = 'u32[144,128]{1,0:T(1,128)}', space=vmem, size = 0x12000, scoped, tag = 'internal scratch']
  #allocation2 [shape = 'f32[8,256]{1,0:T(8,128)}', space=vmem, size = 0x2000, scoped, tag = 'scratch operand']
  #allocation3 [shape = 'f32[8,256]{1,0:T(8,128)}', space=vmem, size = 0x2000, scoped, tag = 'scratch operand']
  %s0 = inlined_call_operand.vmem [shape: bf16[2,8,256], index: 0, kind: input, shape index: {}]
  %s1 = inlined_call_operand.vmem [shape: f32[1,256], index: 1, kind: output, shape index: {0}]
  %s2 = inlined_call_operand.vmem [shape: f32[1,256], index: 2, kind: output, shape index: {1}]
  %3 = xla_tuple %s1, %s2
  %s4 = sld [smem:[#allocation0]]
  $region30: #{generator_forward.18} parent=0
    _
  %s6 = ssub.s32 1, %s4
  %s7 = scalar_select 0, %s6, %s4
  // Predicated region
  $region2: #{generator_forward.18} parent=0 // pred_check
    _
  $region3: #{generator_forward.18} parent=0 // pred_check_branch
    %9 = sbr.rel (0) target = $region5
  $region4: #{generator_forward.18} parent=0 // pred_region
    _
  $region5: #{generator_forward.18} parent=0 // pred_fallthru
    _
  %p10 = scmp.eq.s32.totalorder 0, 0
  // Predicated region
  $region6: #{generator_forward.18} parent=0 // pred_check
    %p11 = pneg %p10
  $region7: #{generator_forward.18} parent=0 // pred_check_branch
    %13 = sbr.rel (%p11) target = $region9
  $region8: #{generator_forward.18} parent=0 // pred_region
    %14 = vst [vmem:[#allocation2] sm:$0xff] 0.0
    %15 = vst [vmem:[#allocation2 + $0x8] sm:$0xff] 0.0
    %16 = vst [vmem:[#allocation3] sm:$0xff] 0.0
    %17 = vst [vmem:[#allocation3 + $0x8] sm:$0xff] 0.0
  $region9: #{generator_forward.18} parent=0 // pred_fallthru
    _
  %v18 = vld [vmem:[%s0] sm:$0xff]
  %v19 = vld [vmem:[%s0 + $0x8] sm:$0xff]
  %v20 = vunpack.c.l.bf16 %v18
  %v21 = vunpack.c.h.bf16 %v18
  %v22 = vunpack.c.l.bf16 %v19
  %v23 = vunpack.c.h.bf16 %v19
  %v24 = vld [vmem:[#allocation2] sm:$0xff]
  %v25 = vld [vmem:[#allocation2 + $0x8] sm:$0xff]
  %v26 = vadd.f32 %v20, %v22
  %v27 = vadd.f32 %v21, %v23
  %v28 = vadd.f32 %v24, %v26
  %v29 = vadd.f32 %v25, %v27
  %30 = vst [vmem:[#allocation2] sm:$0xff] %v28
  %31 = vst [vmem:[#allocation2 + $0x8] sm:$0xff] %v29
  %v32 = vld [vmem:[#allocation3] sm:$0xff]
  %v33 = vld [vmem:[#allocation3 + $0x8] sm:$0xff]
  %v34 = vmul.f32 %v20, %v20
  %v35 = vmul.f32 %v21, %v21
  %v36 = vmul.f32 %v22, %v22
  %v37 = vmul.f32 %v23, %v23
  %v38 = vadd.f32 %v34, %v36
  %v39 = vadd.f32 %v35, %v37
  %v40 = vadd.f32 %v32, %v38
  %v41 = vadd.f32 %v33, %v39
  %42 = vst [vmem:[#allocation3] sm:$0xff] %v40
  %43 = vst [vmem:[#allocation3 + $0x8] sm:$0xff] %v41
  // Predicated region
  $region10: #{generator_forward.18} parent=0 // pred_check
    %p44 = pneg %p10
  $region11: #{generator_forward.18} parent=0 // pred_check_branch
    %46 = sbr.rel (%p44) target = $region13
  $region12: #{generator_forward.18} parent=0 // pred_region
    %v47 = vld [vmem:[#allocation2] sm:$0xff]
    %v48 = vld [vmem:[#allocation2 + $0x8] sm:$0xff]
    %v49 = vrot.slane %v47, 4
    %v50 = vadd.f32 %v47, %v49
    %v51 = vrot.slane %v50, 2
    %v52 = vadd.f32 %v50, %v51
    %v53 = vrot.slane %v52, 1
    %v54 = vadd.f32 %v52, %v53
    %v55 = vrot.slane %v48, 4
    %v56 = vadd.f32 %v48, %v55
    %v57 = vrot.slane %v56, 2
    %v58 = vadd.f32 %v56, %v57
    %v59 = vrot.slane %v58, 1
    %v60 = vadd.f32 %v58, %v59
    %v63 = vcombine.low %v54, %v60
    %v65 = vunpack.c.l.s4 1966171168
    %v66 = vunpack.c.0.s8 %v65
    %v67 = vlaneseq
    %v68 = vshrl.u32 %v67, 7
    %v69 = vsub.s32 %v66, %v68
    %v70 = vrot.slane %v63, %v69
    %v72 = vunpack.c.l.s4 1966171168
    %v73 = vunpack.c.0.s8 %v72
    %v74 = vlaneseq
    %v75 = vshrl.u32 %v74, 7
    %v76 = vsub.s32 %v73, %v75
    %v77 = vrot.slane %v70, %v76
    %v79 = vlaneseq
    %vm80 = vcmp.ge.s32.totalorder %v79, 0
    %vm81 = vcmp.lt.s32.totalorder %v79, 256
    %vm82 = vmand %vm80, %vm81
    %83 = vst.msk [vmem:[%s1] sm:$0x3] %vm82, %v77
    %v84 = vld [vmem:[#allocation3] sm:$0xff]
    %v85 = vld [vmem:[#allocation3 + $0x8] sm:$0xff]
    %v86 = vrot.slane %v84, 4
    %v87 = vadd.f32 %v84, %v86
    %v88 = vrot.slane %v87, 2
    %v89 = vadd.f32 %v87, %v88
    %v90 = vrot.slane %v89, 1
    %v91 = vadd.f32 %v89, %v90
    %v92 = vrot.slane %v85, 4
    %v93 = vadd.f32 %v85, %v92
    %v94 = vrot.slane %v93, 2
    %v95 = vadd.f32 %v93, %v94
    %v96 = vrot.slane %v95, 1
    %v97 = vadd.f32 %v95, %v96
    %v100 = vcombine.low %v91, %v97
    %v102 = vunpack.c.l.s4 1966171168
    %v103 = vunpack.c.0.s8 %v102
    %v104 = vlaneseq
    %v105 = vshrl.u32 %v104, 7
    %v106 = vsub.s32 %v103, %v105
    %v107 = vrot.slane %v100, %v106
    %v109 = vunpack.c.l.s4 1966171168
    %v110 = vunpack.c.0.s8 %v109
    %v111 = vlaneseq
    %v112 = vshrl.u32 %v111, 7
    %v113 = vsub.s32 %v110, %v112
    %v114 = vrot.slane %v107, %v113
    %116 = vst.msk [vmem:[%s2] sm:$0x3] %vm82, %v114
  $region13: #{generator_forward.18} parent=0 // pred_fallthru
    _
  // Predicated region
  $region14: #{generator_forward.18} parent=0 // pred_check
    _
  $region15: #{generator_forward.18} parent=0 // pred_check_branch
    %118 = sbr.rel (0) target = $region17
  $region16: #{generator_forward.18} parent=0 // pred_region
    _
  $region17: #{generator_forward.18} parent=0 // pred_fallthru
    _
  // Predicated region
  $region18: #{generator_forward.18} parent=0 // pred_check
    _
  $region19: #{generator_forward.18} parent=0 // pred_check_branch
    %120 = sbr.rel (0) target = $region21
  $region20: #{generator_forward.18} parent=0 // pred_region
    _
  $region21: #{generator_forward.18} parent=0 // pred_fallthru
    _
  // Predicated region
  $region22: #{generator_forward.18} parent=0 // pred_check
    _
  $region23: #{generator_forward.18} parent=0 // pred_check_branch
    %122 = sbr.rel (0) target = $region25
  $region24: #{generator_forward.18} parent=0 // pred_region
    _
  $region25: #{generator_forward.18} parent=0 // pred_fallthru
    _
  // Predicated region
  $region26: #{generator_forward.18} parent=0 // pred_check
    _
  $region27: #{generator_forward.18} parent=0 // pred_check_branch
    %124 = sbr.rel (0) target = $region29
  $region28: #{generator_forward.18} parent=0 // pred_region
    _
  $region29: #{generator_forward.18} parent=0 // pred_fallthru
    _

// kernel: generator_forward.19
$region0: #{generator_forward.19}
  #allocation0 [shape = 'u32[]', space=smem, size = 0x4, offset = 0x4, fixed_abs, tag = 'smem constant byte address 0x4 - core index']
  #allocation1 [shape = 'u32[144,128]{1,0:T(1,128)}', space=vmem, size = 0x12000, scoped, tag = 'internal scratch']
  %s0 = inlined_call_operand.vmem [shape: bf16[16,256], index: 0, kind: input, shape index: {}]
  %s1 = inlined_call_operand.vmem [shape: f32[1,256], index: 1, kind: input, shape index: {}]
  %s2 = inlined_call_operand.vmem [shape: f32[1,256], index: 2, kind: input, shape index: {}]
  %s3 = inlined_call_operand.vmem [shape: bf16[16,256], index: 3, kind: output, shape index: {}]
  %s4 = sld [smem:[#allocation0]]
  $region22: #{generator_forward.19} parent=0
    _
  %s6 = ssub.s32 1, %s4
  %s7 = scalar_select 0, %s6, %s4
  // Predicated region
  $region2: #{generator_forward.19} parent=0 // pred_check
    _
  $region3: #{generator_forward.19} parent=0 // pred_check_branch
    %9 = sbr.rel (0) target = $region5
  $region4: #{generator_forward.19} parent=0 // pred_region
    _
  $region5: #{generator_forward.19} parent=0 // pred_fallthru
    _
  // Predicated region
  $region6: #{generator_forward.19} parent=0 // pred_check
    _
  $region7: #{generator_forward.19} parent=0 // pred_check_branch
    %11 = sbr.rel (0) target = $region9
  $region8: #{generator_forward.19} parent=0 // pred_region
    _
  $region9: #{generator_forward.19} parent=0 // pred_fallthru
    _
  // Predicated region
  $region10: #{generator_forward.19} parent=0 // pred_check
    _
  $region11: #{generator_forward.19} parent=0 // pred_check_branch
    %13 = sbr.rel (0) target = $region13
  $region12: #{generator_forward.19} parent=0 // pred_region
    _
  $region13: #{generator_forward.19} parent=0 // pred_fallthru
    _
  %v14 = vld [vmem:[%s0] sm:$0xff]
  %v15 = vld [vmem:[%s0 + $0x8] sm:$0xff]
  %v16 = vunpack.c.l.bf16 %v14
  %v17 = vunpack.c.h.bf16 %v14
  %v18 = vunpack.c.l.bf16 %v15
  %v19 = vunpack.c.h.bf16 %v15
  %v20 = vld [vmem:[%s1] sm:$0x3]
  %v22 = vlaneseq
  %v23 = vshrl.u32 %v22, 7
  %v24 = vsub.s32 0, %v23
  %v25 = vrot.slane %v20, %v24
  %v26 = vlaneseq
  %v27 = vshrl.u32 %v26, 7
  %v28 = vsub.s32 1, %v27
  %v29 = vrot.slane %v20, %v28
  %v32 = vmul.f32 %v16, %v25
  %v33 = vmul.f32 %v17, %v29
  %v34 = vmul.f32 %v18, %v25
  %v35 = vmul.f32 %v19, %v29
  %v36 = vld [vmem:[%s2] sm:$0x3]
  %v38 = vlaneseq
  %v39 = vshrl.u32 %v38, 7
  %v40 = vsub.s32 0, %v39
  %v41 = vrot.slane %v36, %v40
  %v42 = vlaneseq
  %v43 = vshrl.u32 %v42, 7
  %v44 = vsub.s32 1, %v43
  %v45 = vrot.slane %v36, %v44
  %v48 = vadd.f32 %v32, %v41
  %v49 = vadd.f32 %v33, %v45
  %v50 = vadd.f32 %v34, %v41
  %v51 = vadd.f32 %v35, %v45
  %v52 = vmax.f32 %v48, 0.0
  %v53 = vmax.f32 %v49, 0.0
  %v54 = vmax.f32 %v50, 0.0
  %v55 = vmax.f32 %v51, 0.0
  %v56 = vpack.c.bf16 %v54, %v52
  %v57 = vpack.c.bf16 %v55, %v53
  %v60 = vunpack.c.l.b16 %v56
  %v61 = vunpack.c.l.b16 %v57
  %v62 = vunpack.c.h.b16 %v56
  %v63 = vunpack.c.h.b16 %v57
  %v64 = vpack.c.b16 %v61, %v60
  %v65 = vpack.c.b16 %v63, %v62
  %68 = vst [vmem:[%s3] sm:$0xff] %v64
  %69 = vst [vmem:[%s3 + $0x8] sm:$0xff] %v65
  // Predicated region
  $region14: #{generator_forward.19} parent=0 // pred_check
    _
  $region15: #{generator_forward.19} parent=0 // pred_check_branch
    %71 = sbr.rel (0) target = $region17
  $region16: #{generator_forward.19} parent=0 // pred_region
    _
  $region17: #{generator_forward.19} parent=0 // pred_fallthru
    _
  // Predicated region
  $region18: #{generator_forward.19} parent=0 // pred_check
    _
  $region19: #{generator_forward.19} parent=0 // pred_check_branch
    %73 = sbr.rel (0) target = $region21
  $region20: #{generator_forward.19} parent=0 // pred_region
    _
  $region21: #{generator_forward.19} parent=0 // pred_fallthru
    _

// kernel: generator_forward.20
$region0: #{generator_forward.20}
  #allocation0 [shape = 'u32[]', space=smem, size = 0x4, offset = 0x4, fixed_abs, tag = 'smem constant byte address 0x4 - core index']
  #allocation1 [shape = 'u32[144,128]{1,0:T(1,128)}', space=vmem, size = 0x12000, scoped, tag = 'internal scratch']
  %s0 = inlined_call_operand.vmem [shape: bf16[128,128], index: 0, kind: input, shape index: {}]
  %s1 = inlined_call_operand.vmem [shape: bf16[128,256], index: 1, kind: input, shape index: {}]
  %s2 = inlined_call_operand.vmem [shape: bf16[128,256], index: 2, kind: output, shape index: {}]
  %s3 = sld [smem:[#allocation0]]
  $region18: #{generator_forward.20} parent=0
    _
  %s5 = ssub.s32 1, %s3
  %s6 = scalar_select 0, %s5, %s3
  // Predicated region
  $region2: #{generator_forward.20} parent=0 // pred_check
    _
  $region3: #{generator_forward.20} parent=0 // pred_check_branch
    %8 = sbr.rel (0) target = $region5
  $region4: #{generator_forward.20} parent=0 // pred_region
    _
  $region5: #{generator_forward.20} parent=0 // pred_fallthru
    _
  // Predicated region
  $region6: #{generator_forward.20} parent=0 // pred_check
    _
  $region7: #{generator_forward.20} parent=0 // pred_check_branch
    %10 = sbr.rel (0) target = $region9
  $region8: #{generator_forward.20} parent=0 // pred_region
    _
  $region9: #{generator_forward.20} parent=0 // pred_fallthru
    _
  %v12 = vld [vmem:[%s0] sm:$0xf]
  %v13 = vld [vmem:[%s0 + $0x4] sm:$0xf]
  %v14 = vld [vmem:[%s0 + $0x8] sm:$0xf]
  %v15 = vld [vmem:[%s0 + $0xc] sm:$0xf]
  %v16 = vld [vmem:[%s0 + $0x10] sm:$0xf]
  %v17 = vld [vmem:[%s0 + $0x14] sm:$0xf]
  %v18 = vld [vmem:[%s0 + $0x18] sm:$0xf]
  %v19 = vld [vmem:[%s0 + $0x1c] sm:$0xf]
  %v20 = vld [vmem:[%s0 + $0x20] sm:$0xf]
  %v21 = vld [vmem:[%s0 + $0x24] sm:$0xf]
  %v22 = vld [vmem:[%s0 + $0x28] sm:$0xf]
  %v23 = vld [vmem:[%s0 + $0x2c] sm:$0xf]
  %v24 = vld [vmem:[%s0 + $0x30] sm:$0xf]
  %v25 = vld [vmem:[%s0 + $0x34] sm:$0xf]
  %v26 = vld [vmem:[%s0 + $0x38] sm:$0xf]
  %v27 = vld [vmem:[%s0 + $0x3c] sm:$0xf]
  %v28 = vld [vmem:[%s1] sm:$0xff]
  %v29 = vld [vmem:[%s1 + $0x8] sm:$0xff]
  %v30 = vld [vmem:[%s1 + $0x10] sm:$0xff]
  %v31 = vld [vmem:[%s1 + $0x18] sm:$0xff]
  %v32 = vld [vmem:[%s1 + $0x20] sm:$0xff]
  %v33 = vld [vmem:[%s1 + $0x28] sm:$0xff]
  %v34 = vld [vmem:[%s1 + $0x30] sm:$0xff]
  %v35 = vld [vmem:[%s1 + $0x38] sm:$0xff]
  %v36 = vld [vmem:[%s1 + $0x40] sm:$0xff]
  %v37 = vld [vmem:[%s1 + $0x48] sm:$0xff]
  %v38 = vld [vmem:[%s1 + $0x50] sm:$0xff]
  %v39 = vld [vmem:[%s1 + $0x58] sm:$0xff]
  %v40 = vld [vmem:[%s1 + $0x60] sm:$0xff]
  %v41 = vld [vmem:[%s1 + $0x68] sm:$0xff]
  %v42 = vld [vmem:[%s1 + $0x70] sm:$0xff]
  %v43 = vld [vmem:[%s1 + $0x78] sm:$0xff]
  %v60 = vunpack.c.l.b16 %v12
  %v61 = vunpack.c.l.b16 %v13
  %v62 = vunpack.c.l.b16 %v14
  %v63 = vunpack.c.l.b16 %v15
  %v64 = vunpack.c.l.b16 %v16
  %v65 = vunpack.c.l.b16 %v17
  %v66 = vunpack.c.l.b16 %v18
  %v67 = vunpack.c.l.b16 %v19
  %v68 = vunpack.c.l.b16 %v20
  %v69 = vunpack.c.l.b16 %v21
  %v70 = vunpack.c.l.b16 %v22
  %v71 = vunpack.c.l.b16 %v23
  %v72 = vunpack.c.l.b16 %v24
  %v73 = vunpack.c.l.b16 %v25
  %v74 = vunpack.c.l.b16 %v26
  %v75 = vunpack.c.l.b16 %v27
  %v76 = vpack.c.b16 %v61, %v60
  %v77 = vpack.c.b16 %v63, %v62
  %v78 = vpack.c.b16 %v65, %v64
  %v79 = vpack.c.b16 %v67, %v66
  %v80 = vpack.c.b16 %v69, %v68
  %v81 = vpack.c.b16 %v71, %v70
  %v82 = vpack.c.b16 %v73, %v72
  %v83 = vpack.c.b16 %v75, %v74
  %v108 = vunpack.c.l.b16 %v28
  %v109 = vunpack.c.h.b16 %v28
  %v110 = vunpack.c.l.b16 %v29
  %v111 = vunpack.c.h.b16 %v29
  %v112 = vunpack.c.l.b16 %v30
  %v113 = vunpack.c.h.b16 %v30
  %v114 = vunpack.c.l.b16 %v31
  %v115 = vunpack.c.h.b16 %v31
  %v116 = vunpack.c.l.b16 %v32
  %v117 = vunpack.c.h.b16 %v32
  %v118 = vunpack.c.l.b16 %v33
  %v119 = vunpack.c.h.b16 %v33
  %v120 = vunpack.c.l.b16 %v34
  %v121 = vunpack.c.h.b16 %v34
  %v122 = vunpack.c.l.b16 %v35
  %v123 = vunpack.c.h.b16 %v35
  %v124 = vunpack.c.l.b16 %v36
  %v125 = vunpack.c.h.b16 %v36
  %v126 = vunpack.c.l.b16 %v37
  %v127 = vunpack.c.h.b16 %v37
  %v128 = vunpack.c.l.b16 %v38
  %v129 = vunpack.c.h.b16 %v38
  %v130 = vunpack.c.l.b16 %v39
  %v131 = vunpack.c.h.b16 %v39
  %v132 = vunpack.c.l.b16 %v40
  %v133 = vunpack.c.h.b16 %v40
  %v134 = vunpack.c.l.b16 %v41
  %v135 = vunpack.c.h.b16 %v41
  %v136 = vunpack.c.l.b16 %v42
  %v137 = vunpack.c.h.b16 %v42
  %v138 = vunpack.c.l.b16 %v43
  %v139 = vunpack.c.h.b16 %v43
  %v140 = vpack.c.b16 %v110, %v108
  %v141 = vpack.c.b16 %v111, %v109
  %v142 = vpack.c.b16 %v114, %v112
  %v143 = vpack.c.b16 %v115, %v113
  %v144 = vpack.c.b16 %v118, %v116
  %v145 = vpack.c.b16 %v119, %v117
  %v146 = vpack.c.b16 %v122, %v120
  %v147 = vpack.c.b16 %v123, %v121
  %v148 = vpack.c.b16 %v126, %v124
  %v149 = vpack.c.b16 %v127, %v125
  %v150 = vpack.c.b16 %v130, %v128
  %v151 = vpack.c.b16 %v131, %v129
  %v152 = vpack.c.b16 %v134, %v132
  %v153 = vpack.c.b16 %v135, %v133
  %v154 = vpack.c.b16 %v138, %v136
  %v155 = vpack.c.b16 %v139, %v137
  %172 = vmatprep.subr.bf16.mxu0 %v141
  %173 = vmatpush1.bf16.msra.mxu0 %v140
  %174 = vmatprep.subr.bf16.mxu0 %v143
  %175 = vmatpush1.bf16.msra.mxu0 %v142
  %176 = vmatprep.subr.bf16.mxu0 %v145
  %177 = vmatpush1.bf16.msra.mxu0 %v144
  %178 = vmatprep.subr.bf16.mxu0 %v147
  %179 = vmatpush1.bf16.msra.mxu0 %v146
  %180 = vmatprep.subr.bf16.mxu0 %v149
  %181 = vmatpush1.bf16.msra.mxu0 %v148
  %182 = vmatprep.subr.bf16.mxu0 %v151
  %183 = vmatpush1.bf16.msra.mxu0 %v150
  %184 = vmatprep.subr.bf16.mxu0 %v153
  %185 = vmatpush1.bf16.msra.mxu0 %v152
  %186 = vmatprep.subr.bf16.mxu0 %v155
  %187 = vmatpush1.bf16.msra.mxu0 %v154
  %188 = vmatprep.subr.bf16.mxu0 0
  %189 = vmatpush1.bf16.msra.mxu0 0
  %190 = vmatprep.subr.bf16.mxu0 0
  %191 = vmatpush1.bf16.msra.mxu0 0
  %192 = vmatprep.subr.bf16.mxu0 0
  %193 = vmatpush1.bf16.msra.mxu0 0
  %194 = vmatprep.subr.bf16.mxu0 0
  %195 = vmatpush1.bf16.msra.mxu0 0
  %196 = vmatprep.subr.bf16.mxu0 0
  %197 = vmatpush1.bf16.msra.mxu0 0
  %198 = vmatprep.subr.bf16.mxu0 0
  %199 = vmatpush1.bf16.msra.mxu0 0
  %200 = vmatprep.subr.bf16.mxu0 0
  %201 = vmatpush1.bf16.msra.mxu0 0
  %202 = vmatprep.subr.bf16.mxu0 0
  %203 = vmatpush1.bf16.msra.mxu0 0
  %204 = vmatprep.mubr.bf16.mxu0 0
  %205 = vmatmul.mubr.bf16.gmra.mrb[0].mxu0 %v76
  %v206 = vpop.f32.mrb[0].mxu0
  %v207 = vadd.f32 0.0, %v206
  %v208 = vpop.f32.mrb[0].mxu0
  %v209 = vadd.f32 0.0, %v208
  %v210 = vpop.f32.mrb[0].mxu0
  %v211 = vadd.f32 0.0, %v210
  %v212 = vpop.f32.mrb[0].mxu0
  %v213 = vadd.f32 0.0, %v212
  %214 = vmatprep.mubr.bf16.mxu0 0
  %215 = vmatmul.mubr.bf16.gmra.mrb[0].mxu0 %v77
  %v216 = vpop.f32.mrb[0].mxu0
  %v217 = vadd.f32 0.0, %v216
  %v218 = vpop.f32.mrb[0].mxu0
  %v219 = vadd.f32 0.0, %v218
  %v220 = vpop.f32.mrb[0].mxu0
  %v221 = vadd.f32 0.0, %v220
  %v222 = vpop.f32.mrb[0].mxu0
  %v223 = vadd.f32 0.0, %v222
  %224 = vmatprep.mubr.bf16.mxu0 0
  %225 = vmatmul.mubr.bf16.gmra.mrb[0].mxu0 %v78
  %v226 = vpop.f32.mrb[0].mxu0
  %v227 = vadd.f32 0.0, %v226
  %v228 = vpop.f32.mrb[0].mxu0
  %v229 = vadd.f32 0.0, %v228
  %v230 = vpop.f32.mrb[0].mxu0
  %v231 = vadd.f32 0.0, %v230
  %v232 = vpop.f32.mrb[0].mxu0
  %v233 = vadd.f32 0.0, %v232
  %234 = vmatprep.mubr.bf16.mxu0 0
  %235 = vmatmul.mubr.bf16.gmra.mrb[0].mxu0 %v79
  %v236 = vpop.f32.mrb[0].mxu0
  %v237 = vadd.f32 0.0, %v236
  %v238 = vpop.f32.mrb[0].mxu0
  %v239 = vadd.f32 0.0, %v238
  %v240 = vpop.f32.mrb[0].mxu0
  %v241 = vadd.f32 0.0, %v240
  %v242 = vpop.f32.mrb[0].mxu0
  %v243 = vadd.f32 0.0, %v242
  %244 = vmatprep.mubr.bf16.mxu0 0
  %245 = vmatmul.mubr.bf16.gmra.mrb[0].mxu0 %v80
  %v246 = vpop.f32.mrb[0].mxu0
  %v247 = vadd.f32 0.0, %v246
  %v248 = vpop.f32.mrb[0].mxu0
  %v249 = vadd.f32 0.0, %v248
  %v250 = vpop.f32.mrb[0].mxu0
  %v251 = vadd.f32 0.0, %v250
  %v252 = vpop.f32.mrb[0].mxu0
  %v253 = vadd.f32 0.0, %v252
  %254 = vmatprep.mubr.bf16.mxu0 0
  %255 = vmatmul.mubr.bf16.gmra.mrb[0].mxu0 %v81
  %v256 = vpop.f32.mrb[0].mxu0
  %v257 = vadd.f32 0.0, %v256
  %v258 = vpop.f32.mrb[0].mxu0
  %v259 = vadd.f32 0.0, %v258
  %v260 = vpop.f32.mrb[0].mxu0
  %v261 = vadd.f32 0.0, %v260
  %v262 = vpop.f32.mrb[0].mxu0
  %v263 = vadd.f32 0.0, %v262
  %264 = vmatprep.mubr.bf16.mxu0 0
  %265 = vmatmul.mubr.bf16.gmra.mrb[0].mxu0 %v82
  %v266 = vpop.f32.mrb[0].mxu0
  %v267 = vadd.f32 0.0, %v266
  %v268 = vpop.f32.mrb[0].mxu0
  %v269 = vadd.f32 0.0, %v268
  %v270 = vpop.f32.mrb[0].mxu0
  %v271 = vadd.f32 0.0, %v270
  %v272 = vpop.f32.mrb[0].mxu0
  %v273 = vadd.f32 0.0, %v272
  %274 = vmatprep.mubr.bf16.mxu0 0
  %275 = vmatmul.mubr.bf16.gmra.mrb[0].mxu0 %v83
  %v276 = vpop.f32.mrb[0].mxu0
  %v277 = vadd.f32 0.0, %v276
  %v278 = vpop.f32.mrb[0].mxu0
  %v279 = vadd.f32 0.0, %v278
  %v280 = vpop.f32.mrb[0].mxu0
  %v281 = vadd.f32 0.0, %v280
  %v282 = vpop.f32.mrb[0].mxu0
  %v283 = vadd.f32 0.0, %v282
  %284 = vdwg.mxu0
  %v285 = vpack.c.bf16 %v211, %v207
  %v286 = vpack.c.bf16 %v213, %v209
  %v287 = vpack.c.bf16 %v221, %v217
  %v288 = vpack.c.bf16 %v223, %v219
  %v289 = vpack.c.bf16 %v231, %v227
  %v290 = vpack.c.bf16 %v233, %v229
  %v291 = vpack.c.bf16 %v241, %v237
  %v292 = vpack.c.bf16 %v243, %v239
  %v293 = vpack.c.bf16 %v251, %v247
  %v294 = vpack.c.bf16 %v253, %v249
  %v295 = vpack.c.bf16 %v261, %v257
  %v296 = vpack.c.bf16 %v263, %v259
  %v297 = vpack.c.bf16 %v271, %v267
  %v298 = vpack.c.bf16 %v273, %v269
  %v299 = vpack.c.bf16 %v281, %v277
  %v300 = vpack.c.bf16 %v283, %v279
  %v317 = vunpack.c.l.b16 %v285
  %v318 = vunpack.c.l.b16 %v286
  %v319 = vunpack.c.h.b16 %v285
  %v320 = vunpack.c.h.b16 %v286
  %v321 = vunpack.c.l.b16 %v287
  %v322 = vunpack.c.l.b16 %v288
  %v323 = vunpack.c.h.b16 %v287
  %v324 = vunpack.c.h.b16 %v288
  %v325 = vunpack.c.l.b16 %v289
  %v326 = vunpack.c.l.b16 %v290
  %v327 = vunpack.c.h.b16 %v289
  %v328 = vunpack.c.h.b16 %v290
  %v329 = vunpack.c.l.b16 %v291
  %v330 = vunpack.c.l.b16 %v292
  %v331 = vunpack.c.h.b16 %v291
  %v332 = vunpack.c.h.b16 %v292
  %v333 = vunpack.c.l.b16 %v293
  %v334 = vunpack.c.l.b16 %v294
  %v335 = vunpack.c.h.b16 %v293
  %v336 = vunpack.c.h.b16 %v294
  %v337 = vunpack.c.l.b16 %v295
  %v338 = vunpack.c.l.b16 %v296
  %v339 = vunpack.c.h.b16 %v295
  %v340 = vunpack.c.h.b16 %v296
  %v341 = vunpack.c.l.b16 %v297
  %v342 = vunpack.c.l.b16 %v298
  %v343 = vunpack.c.h.b16 %v297
  %v344 = vunpack.c.h.b16 %v298
  %v345 = vunpack.c.l.b16 %v299
  %v346 = vunpack.c.l.b16 %v300
  %v347 = vunpack.c.h.b16 %v299
  %v348 = vunpack.c.h.b16 %v300
  %v349 = vpack.c.b16 %v318, %v317
  %v350 = vpack.c.b16 %v320, %v319
  %v351 = vpack.c.b16 %v322, %v321
  %v352 = vpack.c.b16 %v324, %v323
  %v353 = vpack.c.b16 %v326, %v325
  %v354 = vpack.c.b16 %v328, %v327
  %v355 = vpack.c.b16 %v330, %v329
  %v356 = vpack.c.b16 %v332, %v331
  %v357 = vpack.c.b16 %v334, %v333
  %v358 = vpack.c.b16 %v336, %v335
  %v359 = vpack.c.b16 %v338, %v337
  %v360 = vpack.c.b16 %v340, %v339
  %v361 = vpack.c.b16 %v342, %v341
  %v362 = vpack.c.b16 %v344, %v343
  %v363 = vpack.c.b16 %v346, %v345
  %v364 = vpack.c.b16 %v348, %v347
  %381 = vst [vmem:[%s2] sm:$0xff] %v349
  %382 = vst [vmem:[%s2 + $0x8] sm:$0xff] %v350
  %383 = vst [vmem:[%s2 + $0x10] sm:$0xff] %v351
  %384 = vst [vmem:[%s2 + $0x18] sm:$0xff] %v352
  %385 = vst [vmem:[%s2 + $0x20] sm:$0xff] %v353
  %386 = vst [vmem:[%s2 + $0x28] sm:$0xff] %v354
  %387 = vst [vmem:[%s2 + $0x30] sm:$0xff] %v355
  %388 = vst [vmem:[%s2 + $0x38] sm:$0xff] %v356
  %389 = vst [vmem:[%s2 + $0x40] sm:$0xff] %v357
  %390 = vst [vmem:[%s2 + $0x48] sm:$0xff] %v358
  %391 = vst [vmem:[%s2 + $0x50] sm:$0xff] %v359
  %392 = vst [vmem:[%s2 + $0x58] sm:$0xff] %v360
  %393 = vst [vmem:[%s2 + $0x60] sm:$0xff] %v361
  %394 = vst [vmem:[%s2 + $0x68] sm:$0xff] %v362
  %395 = vst [vmem:[%s2 + $0x70] sm:$0xff] %v363
  %396 = vst [vmem:[%s2 + $0x78] sm:$0xff] %v364
  // Predicated region
  $region10: #{generator_forward.20} parent=0 // pred_check
    _
  $region11: #{generator_forward.20} parent=0 // pred_check_branch
    %398 = sbr.rel (0) target = $region13
  $region12: #{generator_forward.20} parent=0 // pred_region
    _
  $region13: #{generator_forward.20} parent=0 // pred_fallthru
    _
  // Predicated region
  $region14: #{generator_forward.20} parent=0 // pred_check
    _
  $region15: #{generator_forward.20} parent=0 // pred_check_branch
    %400 = sbr.rel (0) target = $region17
  $region16: #{generator_forward.20} parent=0 // pred_region
    _
  $region17: #{generator_forward.20} parent=0 // pred_fallthru
    _

// kernel: generator_forward.21
$region0: #{generator_forward.21}
  #allocation0 [shape = 'u32[]', space=smem, size = 0x4, offset = 0x4, fixed_abs, tag = 'smem constant byte address 0x4 - core index']
  #allocation1 [shape = 'u32[144,128]{1,0:T(1,128)}', space=vmem, size = 0x12000, scoped, tag = 'internal scratch']
  #allocation2 [shape = 'f32[8,256]{1,0:T(8,128)}', space=vmem, size = 0x2000, scoped, tag = 'scratch operand']
  #allocation3 [shape = 'f32[8,256]{1,0:T(8,128)}', space=vmem, size = 0x2000, scoped, tag = 'scratch operand']
  %s0 = inlined_call_operand.vmem [shape: bf16[4,8,256], index: 0, kind: input, shape index: {}]
  %s1 = inlined_call_operand.vmem [shape: f32[1,256], index: 1, kind: output, shape index: {0}]
  %s2 = inlined_call_operand.vmem [shape: f32[1,256], index: 2, kind: output, shape index: {1}]
  %3 = xla_tuple %s1, %s2
  %s4 = sld [smem:[#allocation0]]
  $region30: #{generator_forward.21} parent=0
    _
  %s6 = ssub.s32 1, %s4
  %s7 = scalar_select 0, %s6, %s4
  // Predicated region
  $region2: #{generator_forward.21} parent=0 // pred_check
    _
  $region3: #{generator_forward.21} parent=0 // pred_check_branch
    %9 = sbr.rel (0) target = $region5
  $region4: #{generator_forward.21} parent=0 // pred_region
    _
  $region5: #{generator_forward.21} parent=0 // pred_fallthru
    _
  %p10 = scmp.eq.s32.totalorder 0, 0
  // Predicated region
  $region6: #{generator_forward.21} parent=0 // pred_check
    %p11 = pneg %p10
  $region7: #{generator_forward.21} parent=0 // pred_check_branch
    %13 = sbr.rel (%p11) target = $region9
  $region8: #{generator_forward.21} parent=0 // pred_region
    %14 = vst [vmem:[#allocation2] sm:$0xff] 0.0
    %15 = vst [vmem:[#allocation2 + $0x8] sm:$0xff] 0.0
    %16 = vst [vmem:[#allocation3] sm:$0xff] 0.0
    %17 = vst [vmem:[#allocation3 + $0x8] sm:$0xff] 0.0
  $region9: #{generator_forward.21} parent=0 // pred_fallthru
    _
  %v18 = vld [vmem:[%s0] sm:$0xff]
  %v19 = vld [vmem:[%s0 + $0x8] sm:$0xff]
  %v20 = vld [vmem:[%s0 + $0x10] sm:$0xff]
  %v21 = vld [vmem:[%s0 + $0x18] sm:$0xff]
  %v22 = vunpack.c.l.bf16 %v18
  %v23 = vunpack.c.h.bf16 %v18
  %v24 = vunpack.c.l.bf16 %v19
  %v25 = vunpack.c.h.bf16 %v19
  %v26 = vunpack.c.l.bf16 %v20
  %v27 = vunpack.c.h.bf16 %v20
  %v28 = vunpack.c.l.bf16 %v21
  %v29 = vunpack.c.h.bf16 %v21
  %v30 = vld [vmem:[#allocation2] sm:$0xff]
  %v31 = vld [vmem:[#allocation2 + $0x8] sm:$0xff]
  %v32 = vadd.f32 %v22, %v24
  %v33 = vadd.f32 %v32, %v26
  %v34 = vadd.f32 %v33, %v28
  %v35 = vadd.f32 %v23, %v25
  %v36 = vadd.f32 %v35, %v27
  %v37 = vadd.f32 %v36, %v29
  %v38 = vadd.f32 %v30, %v34
  %v39 = vadd.f32 %v31, %v37
  %40 = vst [vmem:[#allocation2] sm:$0xff] %v38
  %41 = vst [vmem:[#allocation2 + $0x8] sm:$0xff] %v39
  %v42 = vld [vmem:[#allocation3] sm:$0xff]
  %v43 = vld [vmem:[#allocation3 + $0x8] sm:$0xff]
  %v44 = vmul.f32 %v22, %v22
  %v45 = vmul.f32 %v23, %v23
  %v46 = vmul.f32 %v24, %v24
  %v47 = vmul.f32 %v25, %v25
  %v48 = vmul.f32 %v26, %v26
  %v49 = vmul.f32 %v27, %v27
  %v50 = vmul.f32 %v28, %v28
  %v51 = vmul.f32 %v29, %v29
  %v52 = vadd.f32 %v44, %v46
  %v53 = vadd.f32 %v52, %v48
  %v54 = vadd.f32 %v53, %v50
  %v55 = vadd.f32 %v45, %v47
  %v56 = vadd.f32 %v55, %v49
  %v57 = vadd.f32 %v56, %v51
  %v58 = vadd.f32 %v42, %v54
  %v59 = vadd.f32 %v43, %v57
  %60 = vst [vmem:[#allocation3] sm:$0xff] %v58
  %61 = vst [vmem:[#allocation3 + $0x8] sm:$0xff] %v59
  // Predicated region
  $region10: #{generator_forward.21} parent=0 // pred_check
    %p62 = pneg %p10
  $region11: #{generator_forward.21} parent=0 // pred_check_branch
    %64 = sbr.rel (%p62) target = $region13
  $region12: #{generator_forward.21} parent=0 // pred_region
    %v65 = vld [vmem:[#allocation2] sm:$0xff]
    %v66 = vld [vmem:[#allocation2 + $0x8] sm:$0xff]
    %v67 = vrot.slane %v65, 4
    %v68 = vadd.f32 %v65, %v67
    %v69 = vrot.slane %v68, 2
    %v70 = vadd.f32 %v68, %v69
    %v71 = vrot.slane %v70, 1
    %v72 = vadd.f32 %v70, %v71
    %v73 = vrot.slane %v66, 4
    %v74 = vadd.f32 %v66, %v73
    %v75 = vrot.slane %v74, 2
    %v76 = vadd.f32 %v74, %v75
    %v77 = vrot.slane %v76, 1
    %v78 = vadd.f32 %v76, %v77
    %v81 = vcombine.low %v72, %v78
    %v83 = vunpack.c.l.s4 1966171168
    %v84 = vunpack.c.0.s8 %v83
    %v85 = vlaneseq
    %v86 = vshrl.u32 %v85, 7
    %v87 = vsub.s32 %v84, %v86
    %v88 = vrot.slane %v81, %v87
    %v90 = vunpack.c.l.s4 1966171168
    %v91 = vunpack.c.0.s8 %v90
    %v92 = vlaneseq
    %v93 = vshrl.u32 %v92, 7
    %v94 = vsub.s32 %v91, %v93
    %v95 = vrot.slane %v88, %v94
    %v97 = vlaneseq
    %vm98 = vcmp.ge.s32.totalorder %v97, 0
    %vm99 = vcmp.lt.s32.totalorder %v97, 256
    %vm100 = vmand %vm98, %vm99
    %101 = vst.msk [vmem:[%s1] sm:$0x3] %vm100, %v95
    %v102 = vld [vmem:[#allocation3] sm:$0xff]
    %v103 = vld [vmem:[#allocation3 + $0x8] sm:$0xff]
    %v104 = vrot.slane %v102, 4
    %v105 = vadd.f32 %v102, %v104
    %v106 = vrot.slane %v105, 2
    %v107 = vadd.f32 %v105, %v106
    %v108 = vrot.slane %v107, 1
    %v109 = vadd.f32 %v107, %v108
    %v110 = vrot.slane %v103, 4
    %v111 = vadd.f32 %v103, %v110
    %v112 = vrot.slane %v111, 2
    %v113 = vadd.f32 %v111, %v112
    %v114 = vrot.slane %v113, 1
    %v115 = vadd.f32 %v113, %v114
    %v118 = vcombine.low %v109, %v115
    %v120 = vunpack.c.l.s4 1966171168
    %v121 = vunpack.c.0.s8 %v120
    %v122 = vlaneseq
    %v123 = vshrl.u32 %v122, 7
    %v124 = vsub.s32 %v121, %v123
    %v125 = vrot.slane %v118, %v124
    %v127 = vunpack.c.l.s4 1966171168
    %v128 = vunpack.c.0.s8 %v127
    %v129 = vlaneseq
    %v130 = vshrl.u32 %v129, 7
    %v131 = vsub.s32 %v128, %v130
    %v132 = vrot.slane %v125, %v131
    %134 = vst.msk [vmem:[%s2] sm:$0x3] %vm100, %v132
  $region13: #{generator_forward.21} parent=0 // pred_fallthru
    _
  // Predicated region
  $region14: #{generator_forward.21} parent=0 // pred_check
    _
  $region15: #{generator_forward.21} parent=0 // pred_check_branch
    %136 = sbr.rel (0) target = $region17
  $region16: #{generator_forward.21} parent=0 // pred_region
    _
  $region17: #{generator_forward.21} parent=0 // pred_fallthru
    _
  // Predicated region
  $region18: #{generator_forward.21} parent=0 // pred_check
    _
  $region19: #{generator_forward.21} parent=0 // pred_check_branch
    %138 = sbr.rel (0) target = $region21
  $region20: #{generator_forward.21} parent=0 // pred_region
    _
  $region21: #{generator_forward.21} parent=0 // pred_fallthru
    _
  // Predicated region
  $region22: #{generator_forward.21} parent=0 // pred_check
    _
  $region23: #{generator_forward.21} parent=0 // pred_check_branch
    %140 = sbr.rel (0) target = $region25
  $region24: #{generator_forward.21} parent=0 // pred_region
    _
  $region25: #{generator_forward.21} parent=0 // pred_fallthru
    _
  // Predicated region
  $region26: #{generator_forward.21} parent=0 // pred_check
    _
  $region27: #{generator_forward.21} parent=0 // pred_check_branch
    %142 = sbr.rel (0) target = $region29
  $region28: #{generator_forward.21} parent=0 // pred_region
    _
  $region29: #{generator_forward.21} parent=0 // pred_fallthru
    _

// kernel: tile.63
$region0: #{tile.63}
  #allocation0 [shape = 's32[1]{0}', space=sflag, size = 0x4, scoped, tag = 'scoped memory for tile.63']
  %s0 = inlined_call_operand.vmem [shape: f32[16], index: 0, kind: input, shape index: {}]
  %s1 = inlined_call_operand.vmem [shape: f32[16,16], index: 1, kind: output, shape index: {}]
  // Predicated region
  $region2: #{tile.63} parent=0 // pred_check
    _
  $region3: #{tile.63} parent=0 // pred_check_branch
    %3 = sbr.rel (0) target = $region5
  $region4: #{tile.63} parent=0 // pred_region
    _
  $region5: #{tile.63} parent=0 // pred_fallthru
    _
  %v4 = vld [vmem:[%s0] ss:$0 sm:$0xff]
  %5 = vst [vmem:[%s1] sm:$0xff] %v4
  %s6 = scalar_lea.vmem %s1, 8
  %7 = vst [vmem:[%s6] sm:$0xff] %v4

// kernel: tile.64
$region0: #{tile.64}
  %s0 = inlined_call_operand.vmem [shape: f32[16,16], index: 0, kind: input, shape index: {}]
  %s1 = inlined_call_operand.vmem [shape: f32[1,256], index: 1, kind: output, shape index: {}]
  $region1: #{tile.64} parent=0
    #allocation0 [shape = 'u8[8192]{0}', space=vmem, size = 0x2000, scoped, tag = 'scoped mem for output reshape']
    %s2 = smov 3
    %v3 = vld [vmem:[%s0] ss:$8 sm:%s2]
    %vm4 = vcmask 130048
    %5 = vst.msk [vmem:[#allocation0] ss:$8 sm:$0x3] %vm4, %v3
    %s6 = scalar_lea.vmem %s0, 7
    %s7 = smov 3
    %v8 = vld [vmem:[%s6] ss:$8 sm:%s7]
    %9 = vrot.lane.b32.xlu0 %v8, 112
    %v10 = vpop.permute.xlu0 %9
    %vm11 = vcmask 1048448
    %12 = vst.msk [vmem:[#allocation0] ss:$8 sm:$0x3] %vm11, %v10
    %s13 = scalar_lea.vmem %s0, 6
    %s14 = smov 3
    %v15 = vld [vmem:[%s13] ss:$8 sm:%s14]
    %16 = vrot.lane.b32.xlu0 %v15, 96
    %v17 = vpop.permute.xlu0 %16
    %vm18 = vcmask 917248
    %19 = vst.msk [vmem:[#allocation0] ss:$8 sm:$0x3] %vm18, %v17
    %s20 = scalar_lea.vmem %s0, 5
    %s21 = smov 3
    %v22 = vld [vmem:[%s20] ss:$8 sm:%s21]
    %23 = vrot.lane.b32.xlu0 %v22, 80
    %v24 = vpop.permute.xlu0 %23
    %vm25 = vcmask 786048
    %26 = vst.msk [vmem:[#allocation0] ss:$8 sm:$0x3] %vm25, %v24
    %s27 = scalar_lea.vmem %s0, 4
    %s28 = smov 3
    %v29 = vld [vmem:[%s27] ss:$8 sm:%s28]
    %30 = vrot.lane.b32.xlu0 %v29, 64
    %v31 = vpop.permute.xlu0 %30
    %vm32 = vcmask 654848
    %33 = vst.msk [vmem:[#allocation0] ss:$8 sm:$0x3] %vm32, %v31
    %s34 = scalar_lea.vmem %s0, 3
    %s35 = smov 3
    %v36 = vld [vmem:[%s34] ss:$8 sm:%s35]
    %37 = vrot.lane.b32.xlu0 %v36, 48
    %v38 = vpop.permute.xlu0 %37
    %vm39 = vcmask 523648
    %40 = vst.msk [vmem:[#allocation0] ss:$8 sm:$0x3] %vm39, %v38
    %s41 = scalar_lea.vmem %s0, 2
    %s42 = smov 3
    %v43 = vld [vmem:[%s41] ss:$8 sm:%s42]
    %44 = vrot.lane.b32.xlu0 %v43, 32
    %v45 = vpop.permute.xlu0 %44
    %vm46 = vcmask 392448
    %47 = vst.msk [vmem:[#allocation0] ss:$8 sm:$0x3] %vm46, %v45
    %s48 = scalar_lea.vmem %s0, 1
    %s49 = smov 3
    %v50 = vld [vmem:[%s48] ss:$8 sm:%s49]
    %51 = vrot.lane.b32.xlu0 %v50, 16
    %v52 = vpop.permute.xlu0 %51
    %vm53 = vcmask 261248
    %54 = vst.msk [vmem:[#allocation0] ss:$8 sm:$0x3] %vm53, %v52
    %s56 = sshllo.u32 0, 1
    %v58 = vld [vmem:[#allocation0] sm:%s56]
    %s59 = sshllo.u32 0, 1
    %60 = vst [vmem:[%s1] sm:%s59] %v58
    %s61 = scalar_lea.vmem [#allocation0], 8
    %v62 = vld [vmem:[%s61] sm:%s56]
    %s63 = sshllo.u32 0, 1
    %s64 = scalar_lea.vmem %s1, 1
    %65 = vst [vmem:[%s64] sm:%s63] %v62

// kernel: generator_forward.22
$region0: #{generator_forward.22}
  #allocation0 [shape = 'u32[]', space=smem, size = 0x4, offset = 0x4, fixed_abs, tag = 'smem constant byte address 0x4 - core index']
  #allocation1 [shape = 'u32[144,128]{1,0:T(1,128)}', space=vmem, size = 0x12000, scoped, tag = 'internal scratch']
  %s0 = inlined_call_operand.vmem [shape: bf16[32,256], index: 0, kind: input, shape index: {}]
  %s1 = inlined_call_operand.vmem [shape: f32[1,256], index: 1, kind: input, shape index: {}]
  %s2 = inlined_call_operand.vmem [shape: f32[1,256], index: 2, kind: input, shape index: {}]
  %s3 = inlined_call_operand.vmem [shape: bf16[32,256], index: 3, kind: output, shape index: {}]
  %s4 = sld [smem:[#allocation0]]
  $region22: #{generator_forward.22} parent=0
    _
  %s6 = ssub.s32 1, %s4
  %s7 = scalar_select 0, %s6, %s4
  // Predicated region
  $region2: #{generator_forward.22} parent=0 // pred_check
    _
  $region3: #{generator_forward.22} parent=0 // pred_check_branch
    %9 = sbr.rel (0) target = $region5
  $region4: #{generator_forward.22} parent=0 // pred_region
    _
  $region5: #{generator_forward.22} parent=0 // pred_fallthru
    _
  // Predicated region
  $region6: #{generator_forward.22} parent=0 // pred_check
    _
  $region7: #{generator_forward.22} parent=0 // pred_check_branch
    %11 = sbr.rel (0) target = $region9
  $region8: #{generator_forward.22} parent=0 // pred_region
    _
  $region9: #{generator_forward.22} parent=0 // pred_fallthru
    _
  // Predicated region
  $region10: #{generator_forward.22} parent=0 // pred_check
    _
  $region11: #{generator_forward.22} parent=0 // pred_check_branch
    %13 = sbr.rel (0) target = $region13
  $region12: #{generator_forward.22} parent=0 // pred_region
    _
  $region13: #{generator_forward.22} parent=0 // pred_fallthru
    _
  %v14 = vld [vmem:[%s0] sm:$0xff]
  %v15 = vld [vmem:[%s0 + $0x8] sm:$0xff]
  %v16 = vld [vmem:[%s0 + $0x10] sm:$0xff]
  %v17 = vld [vmem:[%s0 + $0x18] sm:$0xff]
  %v18 = vunpack.c.l.bf16 %v14
  %v19 = vunpack.c.h.bf16 %v14
  %v20 = vunpack.c.l.bf16 %v15
  %v21 = vunpack.c.h.bf16 %v15
  %v22 = vunpack.c.l.bf16 %v16
  %v23 = vunpack.c.h.bf16 %v16
  %v24 = vunpack.c.l.bf16 %v17
  %v25 = vunpack.c.h.bf16 %v17
  %v26 = vld [vmem:[%s1] sm:$0x3]
  %v28 = vlaneseq
  %v29 = vshrl.u32 %v28, 7
  %v30 = vsub.s32 0, %v29
  %v31 = vrot.slane %v26, %v30
  %v32 = vlaneseq
  %v33 = vshrl.u32 %v32, 7
  %v34 = vsub.s32 1, %v33
  %v35 = vrot.slane %v26, %v34
  %v38 = vmul.f32 %v18, %v31
  %v39 = vmul.f32 %v19, %v35
  %v40 = vmul.f32 %v20, %v31
  %v41 = vmul.f32 %v21, %v35
  %v42 = vmul.f32 %v22, %v31
  %v43 = vmul.f32 %v23, %v35
  %v44 = vmul.f32 %v24, %v31
  %v45 = vmul.f32 %v25, %v35
  %v46 = vld [vmem:[%s2] sm:$0x3]
  %v48 = vlaneseq
  %v49 = vshrl.u32 %v48, 7
  %v50 = vsub.s32 0, %v49
  %v51 = vrot.slane %v46, %v50
  %v52 = vlaneseq
  %v53 = vshrl.u32 %v52, 7
  %v54 = vsub.s32 1, %v53
  %v55 = vrot.slane %v46, %v54
  %v58 = vadd.f32 %v38, %v51
  %v59 = vadd.f32 %v39, %v55
  %v60 = vadd.f32 %v40, %v51
  %v61 = vadd.f32 %v41, %v55
  %v62 = vadd.f32 %v42, %v51
  %v63 = vadd.f32 %v43, %v55
  %v64 = vadd.f32 %v44, %v51
  %v65 = vadd.f32 %v45, %v55
  %v66 = vmax.f32 %v58, 0.0
  %v67 = vmax.f32 %v59, 0.0
  %v68 = vmax.f32 %v60, 0.0
  %v69 = vmax.f32 %v61, 0.0
  %v70 = vmax.f32 %v62, 0.0
  %v71 = vmax.f32 %v63, 0.0
  %v72 = vmax.f32 %v64, 0.0
  %v73 = vmax.f32 %v65, 0.0
  %v74 = vpack.c.bf16 %v68, %v66
  %v75 = vpack.c.bf16 %v69, %v67
  %v76 = vpack.c.bf16 %v72, %v70
  %v77 = vpack.c.bf16 %v73, %v71
  %v82 = vunpack.c.l.b16 %v74
  %v83 = vunpack.c.l.b16 %v75
  %v84 = vunpack.c.h.b16 %v74
  %v85 = vunpack.c.h.b16 %v75
  %v86 = vunpack.c.l.b16 %v76
  %v87 = vunpack.c.l.b16 %v77
  %v88 = vunpack.c.h.b16 %v76
  %v89 = vunpack.c.h.b16 %v77
  %v90 = vpack.c.b16 %v83, %v82
  %v91 = vpack.c.b16 %v85, %v84
  %v92 = vpack.c.b16 %v87, %v86
  %v93 = vpack.c.b16 %v89, %v88
  %98 = vst [vmem:[%s3] sm:$0xff] %v90
  %99 = vst [vmem:[%s3 + $0x8] sm:$0xff] %v91
  %100 = vst [vmem:[%s3 + $0x10] sm:$0xff] %v92
  %101 = vst [vmem:[%s3 + $0x18] sm:$0xff] %v93
  // Predicated region
  $region14: #{generator_forward.22} parent=0 // pred_check
    _
  $region15: #{generator_forward.22} parent=0 // pred_check_branch
    %103 = sbr.rel (0) target = $region17
  $region16: #{generator_forward.22} parent=0 // pred_region
    _
  $region17: #{generator_forward.22} parent=0 // pred_fallthru
    _
  // Predicated region
  $region18: #{generator_forward.22} parent=0 // pred_check
    _
  $region19: #{generator_forward.22} parent=0 // pred_check_branch
    %105 = sbr.rel (0) target = $region21
  $region20: #{generator_forward.22} parent=0 // pred_region
    _
  $region21: #{generator_forward.22} parent=0 // pred_fallthru
    _

// kernel: generator_forward.23
$region0: #{generator_forward.23}
  #allocation0 [shape = 'u32[]', space=smem, size = 0x4, offset = 0x4, fixed_abs, tag = 'smem constant byte address 0x4 - core index']
  #allocation1 [shape = 'u32[144,128]{1,0:T(1,128)}', space=vmem, size = 0x12000, scoped, tag = 'internal scratch']
  %s0 = inlined_call_operand.vmem [shape: bf16[512,128], index: 0, kind: input, shape index: {}]
  %s1 = inlined_call_operand.vmem [shape: bf16[128,128], index: 1, kind: input, shape index: {}]
  %s2 = inlined_call_operand.vmem [shape: bf16[512,128], index: 2, kind: output, shape index: {}]
  %s3 = sld [smem:[#allocation0]]
  $region41: #{generator_forward.23} parent=0
    _
  %s5 = ssub.s32 1, %s3
  %s6 = scalar_select 0, %s5, %s3
  loop: start=0, step=1, limit=4
  $region2: #{generator_forward.23} parent=0 // loop_pre_header
    _
  $region3: #{generator_forward.23} parent=0 // loop_header
    %s8 = sphi 0, %s12
    %p9 = scmp.ge.s32.totalorder %s8, 4
    %s18 = sphi 0, %s20
    %s21 = sphi 0, %s18
    %s22 = sphi 0, %s21
    %s38 = sphi 0, %s22
    %s42 = sphi 0, %s42
    %s44 = sphi 0, %s42
    %s45 = sphi 0, %s44
    %s59 = sphi 0, %s45
    %s65 = sphi 0, %s67
    %s68 = sphi 0, %s65
    %s69 = sphi 0, %s68
    %s85 = sphi 0, %s69
  $region4: #{generator_forward.23} parent=0 // loop_header_branch
    %11 = sbr.rel (%p9) target = $region8
  $region5: #{generator_forward.23} parent=0 // loop_body
    %s13 = ssub.s32 %s8, 1
    %s14 = ssub.s32 %s8, 2
    %s15 = sadd.s32 %s8, 1
    %s16 = ssub.s32 %s8, %s15
    %p17 = scmp.eq.s32.totalorder %s16, 0
    %s19 = sadd.s32 %s18, 1
    %s20 = scalar_select %p17, %s18, %s19
    %p23 = pneg %p17
    %p24 = scmp.eq.s32.totalorder %s8, 1
    %p25 = por %p23, %p24
    %p26 = scmp.ne.s32.totalorder %s18, %s21
    %p27 = scmp.eq.s32.totalorder %s8, 0
    %p28 = por %p26, %p27
    %p29 = scmp.ne.s32.totalorder %s18, %s21
    %p30 = scmp.eq.s32.totalorder %s13, 1
    %p31 = por %p29, %p30
    %p32 = scmp.ne.s32.totalorder %s21, %s22
    %p33 = scmp.eq.s32.totalorder %s13, 0
    %p34 = por %p32, %p33
    %p35 = scmp.ne.s32.totalorder %s21, %s22
    %p36 = scmp.eq.s32.totalorder %s14, 1
    %p37 = por %p35, %p36
    %p39 = scmp.ne.s32.totalorder %s22, %s38
    %p40 = scmp.eq.s32.totalorder %s14, 0
    %p41 = por %p39, %p40
    %s43 = sadd.s32 %s42, 1
    %p46 = scmp.eq.s32.totalorder %s8, 1
    %p47 = scmp.ne.s32.totalorder %s42, %s44
    %p48 = scmp.eq.s32.totalorder %s8, 0
    %p49 = por %p47, %p48
    %p50 = scmp.ne.s32.totalorder %s42, %s44
    %p51 = scmp.eq.s32.totalorder %s13, 1
    %p52 = por %p50, %p51
    %p53 = scmp.ne.s32.totalorder %s44, %s45
    %p54 = scmp.eq.s32.totalorder %s13, 0
    %p55 = por %p53, %p54
    %p56 = scmp.ne.s32.totalorder %s44, %s45
    %p57 = scmp.eq.s32.totalorder %s14, 1
    %p58 = por %p56, %p57
    %p60 = scmp.ne.s32.totalorder %s45, %s59
    %p61 = scmp.eq.s32.totalorder %s14, 0
    %p62 = por %p60, %p61
    %s63 = ssub.s32 %s8, %s15
    %p64 = scmp.eq.s32.totalorder %s63, 0
    %s66 = sadd.s32 %s65, 1
    %s67 = scalar_select %p64, %s65, %s66
    %p70 = pneg %p64
    %p71 = scmp.eq.s32.totalorder %s8, 1
    %p72 = por %p70, %p71
    %p73 = scmp.ne.s32.totalorder %s65, %s68
    %p74 = scmp.eq.s32.totalorder %s8, 0
    %p75 = por %p73, %p74
    %p76 = scmp.ne.s32.totalorder %s65, %s68
    %p77 = scmp.eq.s32.totalorder %s13, 1
    %p78 = por %p76, %p77
    %p79 = scmp.ne.s32.totalorder %s68, %s69
    %p80 = scmp.eq.s32.totalorder %s13, 0
    %p81 = por %p79, %p80
    %p82 = scmp.ne.s32.totalorder %s68, %s69
    %p83 = scmp.eq.s32.totalorder %s14, 1
    %p84 = por %p82, %p83
    %p86 = scmp.ne.s32.totalorder %s69, %s85
    %p87 = scmp.eq.s32.totalorder %s14, 0
    %p88 = por %p86, %p87
    %p89 = scmp.le.s32.totalorder 1, %s8
    %p90 = scmp.lt.s32.totalorder %s8, 3
    %p91 = pnand %p89, %p90
    %p92 = pneg %p91
    // Predicated region
    $region9: #{generator_forward.23} parent=5 // pred_check
      _
    $region10: #{generator_forward.23} parent=5 // pred_check_branch
      %94 = sbr.rel (%p91) target = $region12
    $region11: #{generator_forward.23} parent=5 // pred_region
      %s95 = ssub.s32 %s8, 1
      // Predicated region
      $region13: #{generator_forward.23} parent=11 // pred_check
        %p96 = pneg %p55
      $region14: #{generator_forward.23} parent=11 // pred_check_branch
        %98 = sbr.rel (%p96) target = $region16
      $region15: #{generator_forward.23} parent=11 // pred_region
        _
      $region16: #{generator_forward.23} parent=11 // pred_fallthru
        _
    $region12: #{generator_forward.23} parent=5 // pred_fallthru
      _
    %p99 = scmp.lt.s32.totalorder %s8, 2
    // Predicated region
    $region17: #{generator_forward.23} parent=5 // pred_check
      %p100 = pneg %p99
    $region18: #{generator_forward.23} parent=5 // pred_check_branch
      %102 = sbr.rel (%p100) target = $region20
    $region19: #{generator_forward.23} parent=5 // pred_region
      // Predicated region
      $region21: #{generator_forward.23} parent=19 // pred_check
        %p103 = pneg %p28
      $region22: #{generator_forward.23} parent=19 // pred_check_branch
        %105 = sbr.rel (%p103) target = $region24
      $region23: #{generator_forward.23} parent=19 // pred_region
        %s106 = smul.u32 32, %s8
        %p107 = scmp.lt.s32.totalorder %s106, 63
        %s108 = scalar_select %p107, %s106, 63
        %s109 = smul.addr %s108, 4
        %s110 = scalar_lea.vmem %s0, %s109
        %s111 = smul.u32 32, %s8
      $region24: #{generator_forward.23} parent=19 // pred_fallthru
        _
    $region20: #{generator_forward.23} parent=5 // pred_fallthru
      _
    %p112 = scmp.le.s32.totalorder 1, %s8
    %p113 = scmp.lt.s32.totalorder %s8, 3
    %p114 = pnand %p112, %p113
    %p115 = pneg %p114
    // Predicated region
    $region25: #{generator_forward.23} parent=5 // pred_check
      _
    $region26: #{generator_forward.23} parent=5 // pred_check_branch
      %117 = sbr.rel (%p114) target = $region28
    $region27: #{generator_forward.23} parent=5 // pred_region
      %s118 = ssub.s32 %s8, 1
      %s119 = smul.u32 32, %s13
      %p120 = scmp.lt.s32.totalorder %s119, 63
      %s121 = scalar_select %p120, %s119, 63
      %s122 = smul.addr %s121, 4
      %s123 = scalar_lea.vmem %s0, %s122
      %p124 = pneg %p34
      %p125 = pneg %p31
      %p126 = pneg %p55
      %p127 = pneg %p52
      %p128 = pneg %p81
      %p129 = pneg %p78
      %s130 = smul.u32 32, %s13
      %p131 = scmp.lt.s32.totalorder %s130, 63
      %s132 = scalar_select %p131, %s130, 63
      %s133 = smul.addr %s132, 4
      %s134 = scalar_lea.vmem %s2, %s133
      %s135 = smul.u32 32, %s13
      %p136 = scmp.lt.s32.totalorder %s135, 63
      %s137 = scalar_select %p136, %s135, 63
      %s138 = smul.addr %s137, 4
      %s139 = scalar_lea.vmem %s0, %s138
      %s140 = smul.u32 32, %s13
      %s141 = smul.u32 32, %s13
      %p142 = scmp.lt.s32.totalorder %s141, 63
      %s143 = scalar_select %p142, %s141, 63
      %s144 = smul.addr %s143, 4
      %s145 = scalar_lea.vmem %s2, %s144
      %s146 = smul.u32 32, %s13
      %v148 = vld [vmem:[%s139] sm:$0xf]
      %v149 = vld [vmem:[%s139 + $0x4] sm:$0xf]
      %v150 = vld [vmem:[%s139 + $0x8] sm:$0xf]
      %v151 = vld [vmem:[%s139 + $0xc] sm:$0xf]
      %v152 = vld [vmem:[%s139 + $0x10] sm:$0xf]
      %v153 = vld [vmem:[%s139 + $0x14] sm:$0xf]
      %v154 = vld [vmem:[%s139 + $0x18] sm:$0xf]
      %v155 = vld [vmem:[%s139 + $0x1c] sm:$0xf]
      %v156 = vld [vmem:[%s139 + $0x20] sm:$0xf]
      %v157 = vld [vmem:[%s139 + $0x24] sm:$0xf]
      %v158 = vld [vmem:[%s139 + $0x28] sm:$0xf]
      %v159 = vld [vmem:[%s139 + $0x2c] sm:$0xf]
      %v160 = vld [vmem:[%s139 + $0x30] sm:$0xf]
      %v161 = vld [vmem:[%s139 + $0x34] sm:$0xf]
      %v162 = vld [vmem:[%s139 + $0x38] sm:$0xf]
      %v163 = vld [vmem:[%s139 + $0x3c] sm:$0xf]
      %v164 = vld [vmem:[%s139 + $0x40] sm:$0xf]
      %v165 = vld [vmem:[%s139 + $0x44] sm:$0xf]
      %v166 = vld [vmem:[%s139 + $0x48] sm:$0xf]
      %v167 = vld [vmem:[%s139 + $0x4c] sm:$0xf]
      %v168 = vld [vmem:[%s139 + $0x50] sm:$0xf]
      %v169 = vld [vmem:[%s139 + $0x54] sm:$0xf]
      %v170 = vld [vmem:[%s139 + $0x58] sm:$0xf]
      %v171 = vld [vmem:[%s139 + $0x5c] sm:$0xf]
      %v172 = vld [vmem:[%s139 + $0x60] sm:$0xf]
      %v173 = vld [vmem:[%s139 + $0x64] sm:$0xf]
      %v174 = vld [vmem:[%s139 + $0x68] sm:$0xf]
      %v175 = vld [vmem:[%s139 + $0x6c] sm:$0xf]
      %v176 = vld [vmem:[%s139 + $0x70] sm:$0xf]
      %v177 = vld [vmem:[%s139 + $0x74] sm:$0xf]
      %v178 = vld [vmem:[%s139 + $0x78] sm:$0xf]
      %v179 = vld [vmem:[%s139 + $0x7c] sm:$0xf]
      %v180 = vld [vmem:[%s1] sm:$0xf]
      %v181 = vld [vmem:[%s1 + $0x4] sm:$0xf]
      %v182 = vld [vmem:[%s1 + $0x8] sm:$0xf]
      %v183 = vld [vmem:[%s1 + $0xc] sm:$0xf]
      %v184 = vld [vmem:[%s1 + $0x10] sm:$0xf]
      %v185 = vld [vmem:[%s1 + $0x14] sm:$0xf]
      %v186 = vld [vmem:[%s1 + $0x18] sm:$0xf]
      %v187 = vld [vmem:[%s1 + $0x1c] sm:$0xf]
      %v188 = vld [vmem:[%s1 + $0x20] sm:$0xf]
      %v189 = vld [vmem:[%s1 + $0x24] sm:$0xf]
      %v190 = vld [vmem:[%s1 + $0x28] sm:$0xf]
      %v191 = vld [vmem:[%s1 + $0x2c] sm:$0xf]
      %v192 = vld [vmem:[%s1 + $0x30] sm:$0xf]
      %v193 = vld [vmem:[%s1 + $0x34] sm:$0xf]
      %v194 = vld [vmem:[%s1 + $0x38] sm:$0xf]
      %v195 = vld [vmem:[%s1 + $0x3c] sm:$0xf]
      %v228 = vunpack.c.l.b16 %v148
      %v229 = vunpack.c.l.b16 %v149
      %v230 = vunpack.c.l.b16 %v150
      %v231 = vunpack.c.l.b16 %v151
      %v232 = vunpack.c.l.b16 %v152
      %v233 = vunpack.c.l.b16 %v153
      %v234 = vunpack.c.l.b16 %v154
      %v235 = vunpack.c.l.b16 %v155
      %v236 = vunpack.c.l.b16 %v156
      %v237 = vunpack.c.l.b16 %v157
      %v238 = vunpack.c.l.b16 %v158
      %v239 = vunpack.c.l.b16 %v159
      %v240 = vunpack.c.l.b16 %v160
      %v241 = vunpack.c.l.b16 %v161
      %v242 = vunpack.c.l.b16 %v162
      %v243 = vunpack.c.l.b16 %v163
      %v244 = vunpack.c.l.b16 %v164
      %v245 = vunpack.c.l.b16 %v165
      %v246 = vunpack.c.l.b16 %v166
      %v247 = vunpack.c.l.b16 %v167
      %v248 = vunpack.c.l.b16 %v168
      %v249 = vunpack.c.l.b16 %v169
      %v250 = vunpack.c.l.b16 %v170
      %v251 = vunpack.c.l.b16 %v171
      %v252 = vunpack.c.l.b16 %v172
      %v253 = vunpack.c.l.b16 %v173
      %v254 = vunpack.c.l.b16 %v174
      %v255 = vunpack.c.l.b16 %v175
      %v256 = vunpack.c.l.b16 %v176
      %v257 = vunpack.c.l.b16 %v177
      %v258 = vunpack.c.l.b16 %v178
      %v259 = vunpack.c.l.b16 %v179
      %v260 = vpack.c.b16 %v229, %v228
      %v261 = vpack.c.b16 %v231, %v230
      %v262 = vpack.c.b16 %v233, %v232
      %v263 = vpack.c.b16 %v235, %v234
      %v264 = vpack.c.b16 %v237, %v236
      %v265 = vpack.c.b16 %v239, %v238
      %v266 = vpack.c.b16 %v241, %v240
      %v267 = vpack.c.b16 %v243, %v242
      %v268 = vpack.c.b16 %v245, %v244
      %v269 = vpack.c.b16 %v247, %v246
      %v270 = vpack.c.b16 %v249, %v248
      %v271 = vpack.c.b16 %v251, %v250
      %v272 = vpack.c.b16 %v253, %v252
      %v273 = vpack.c.b16 %v255, %v254
      %v274 = vpack.c.b16 %v257, %v256
      %v275 = vpack.c.b16 %v259, %v258
      %v308 = vunpack.c.l.b16 %v180
      %v309 = vunpack.c.l.b16 %v181
      %v310 = vunpack.c.l.b16 %v182
      %v311 = vunpack.c.l.b16 %v183
      %v312 = vunpack.c.l.b16 %v184
      %v313 = vunpack.c.l.b16 %v185
      %v314 = vunpack.c.l.b16 %v186
      %v315 = vunpack.c.l.b16 %v187
      %v316 = vunpack.c.l.b16 %v188
      %v317 = vunpack.c.l.b16 %v189
      %v318 = vunpack.c.l.b16 %v190
      %v319 = vunpack.c.l.b16 %v191
      %v320 = vunpack.c.l.b16 %v192
      %v321 = vunpack.c.l.b16 %v193
      %v322 = vunpack.c.l.b16 %v194
      %v323 = vunpack.c.l.b16 %v195
      %v324 = vpack.c.b16 %v309, %v308
      %v325 = vpack.c.b16 %v311, %v310
      %v326 = vpack.c.b16 %v313, %v312
      %v327 = vpack.c.b16 %v315, %v314
      %v328 = vpack.c.b16 %v317, %v316
      %v329 = vpack.c.b16 %v319, %v318
      %v330 = vpack.c.b16 %v321, %v320
      %v331 = vpack.c.b16 %v323, %v322
      %340 = vmatprep.subr.bf16.mxu0 0
      %341 = vmatpush1.bf16.msra.mxu0 %v324
      %342 = vmatprep.subr.bf16.mxu0 0
      %343 = vmatpush1.bf16.msra.mxu0 %v325
      %344 = vmatprep.subr.bf16.mxu0 0
      %345 = vmatpush1.bf16.msra.mxu0 %v326
      %346 = vmatprep.subr.bf16.mxu0 0
      %347 = vmatpush1.bf16.msra.mxu0 %v327
      %348 = vmatprep.subr.bf16.mxu0 0
      %349 = vmatpush1.bf16.msra.mxu0 %v328
      %350 = vmatprep.subr.bf16.mxu0 0
      %351 = vmatpush1.bf16.msra.mxu0 %v329
      %352 = vmatprep.subr.bf16.mxu0 0
      %353 = vmatpush1.bf16.msra.mxu0 %v330
      %354 = vmatprep.subr.bf16.mxu0 0
      %355 = vmatpush1.bf16.msra.mxu0 %v331
      %356 = vmatprep.subr.bf16.mxu0 0
      %357 = vmatpush1.bf16.msra.mxu0 0
      %358 = vmatprep.subr.bf16.mxu0 0
      %359 = vmatpush1.bf16.msra.mxu0 0
      %360 = vmatprep.subr.bf16.mxu0 0
      %361 = vmatpush1.bf16.msra.mxu0 0
      %362 = vmatprep.subr.bf16.mxu0 0
      %363 = vmatpush1.bf16.msra.mxu0 0
      %364 = vmatprep.subr.bf16.mxu0 0
      %365 = vmatpush1.bf16.msra.mxu0 0
      %366 = vmatprep.subr.bf16.mxu0 0
      %367 = vmatpush1.bf16.msra.mxu0 0
      %368 = vmatprep.subr.bf16.mxu0 0
      %369 = vmatpush1.bf16.msra.mxu0 0
      %370 = vmatprep.subr.bf16.mxu0 0
      %371 = vmatpush1.bf16.msra.mxu0 0
      %372 = vmatprep.mubr.bf16.mxu0 0
      %373 = vmatmul.mubr.bf16.gmra.mrb[0].mxu0 %v260
      %v374 = vpop.f32.mrb[0].mxu0
      %v375 = vadd.f32 0.0, %v374
      %v376 = vpop.f32.mrb[0].mxu0
      %v377 = vpop.f32.mrb[0].mxu0
      %v378 = vadd.f32 0.0, %v377
      %v379 = vpop.f32.mrb[0].mxu0
      %380 = vmatprep.mubr.bf16.mxu0 0
      %381 = vmatmul.mubr.bf16.gmra.mrb[0].mxu0 %v261
      %v382 = vpop.f32.mrb[0].mxu0
      %v383 = vadd.f32 0.0, %v382
      %v384 = vpop.f32.mrb[0].mxu0
      %v385 = vpop.f32.mrb[0].mxu0
      %v386 = vadd.f32 0.0, %v385
      %v387 = vpop.f32.mrb[0].mxu0
      %388 = vmatprep.mubr.bf16.mxu0 0
      %389 = vmatmul.mubr.bf16.gmra.mrb[0].mxu0 %v262
      %v390 = vpop.f32.mrb[0].mxu0
      %v391 = vadd.f32 0.0, %v390
      %v392 = vpop.f32.mrb[0].mxu0
      %v393 = vpop.f32.mrb[0].mxu0
      %v394 = vadd.f32 0.0, %v393
      %v395 = vpop.f32.mrb[0].mxu0
      %396 = vmatprep.mubr.bf16.mxu0 0
      %397 = vmatmul.mubr.bf16.gmra.mrb[0].mxu0 %v263
      %v398 = vpop.f32.mrb[0].mxu0
      %v399 = vadd.f32 0.0, %v398
      %v400 = vpop.f32.mrb[0].mxu0
      %v401 = vpop.f32.mrb[0].mxu0
      %v402 = vadd.f32 0.0, %v401
      %v403 = vpop.f32.mrb[0].mxu0
      %404 = vmatprep.mubr.bf16.mxu0 0
      %405 = vmatmul.mubr.bf16.gmra.mrb[0].mxu0 %v264
      %v406 = vpop.f32.mrb[0].mxu0
      %v407 = vadd.f32 0.0, %v406
      %v408 = vpop.f32.mrb[0].mxu0
      %v409 = vpop.f32.mrb[0].mxu0
      %v410 = vadd.f32 0.0, %v409
      %v411 = vpop.f32.mrb[0].mxu0
      %412 = vmatprep.mubr.bf16.mxu0 0
      %413 = vmatmul.mubr.bf16.gmra.mrb[0].mxu0 %v265
      %v414 = vpop.f32.mrb[0].mxu0
      %v415 = vadd.f32 0.0, %v414
      %v416 = vpop.f32.mrb[0].mxu0
      %v417 = vpop.f32.mrb[0].mxu0
      %v418 = vadd.f32 0.0, %v417
      %v419 = vpop.f32.mrb[0].mxu0
      %420 = vmatprep.mubr.bf16.mxu0 0
      %421 = vmatmul.mubr.bf16.gmra.mrb[0].mxu0 %v266
      %v422 = vpop.f32.mrb[0].mxu0
      %v423 = vadd.f32 0.0, %v422
      %v424 = vpop.f32.mrb[0].mxu0
      %v425 = vpop.f32.mrb[0].mxu0
      %v426 = vadd.f32 0.0, %v425
      %v427 = vpop.f32.mrb[0].mxu0
      %428 = vmatprep.mubr.bf16.mxu0 0
      %429 = vmatmul.mubr.bf16.gmra.mrb[0].mxu0 %v267
      %v430 = vpop.f32.mrb[0].mxu0
      %v431 = vadd.f32 0.0, %v430
      %v432 = vpop.f32.mrb[0].mxu0
      %v433 = vpop.f32.mrb[0].mxu0
      %v434 = vadd.f32 0.0, %v433
      %v435 = vpop.f32.mrb[0].mxu0
      %436 = vmatprep.mubr.bf16.mxu0 0
      %437 = vmatmul.mubr.bf16.gmra.mrb[0].mxu0 %v268
      %v438 = vpop.f32.mrb[0].mxu0
      %v439 = vadd.f32 0.0, %v438
      %v440 = vpop.f32.mrb[0].mxu0
      %v441 = vpop.f32.mrb[0].mxu0
      %v442 = vadd.f32 0.0, %v441
      %v443 = vpop.f32.mrb[0].mxu0
      %444 = vmatprep.mubr.bf16.mxu0 0
      %445 = vmatmul.mubr.bf16.gmra.mrb[0].mxu0 %v269
      %v446 = vpop.f32.mrb[0].mxu0
      %v447 = vadd.f32 0.0, %v446
      %v448 = vpop.f32.mrb[0].mxu0
      %v449 = vpop.f32.mrb[0].mxu0
      %v450 = vadd.f32 0.0, %v449
      %v451 = vpop.f32.mrb[0].mxu0
      %452 = vmatprep.mubr.bf16.mxu0 0
      %453 = vmatmul.mubr.bf16.gmra.mrb[0].mxu0 %v270
      %v454 = vpop.f32.mrb[0].mxu0
      %v455 = vadd.f32 0.0, %v454
      %v456 = vpop.f32.mrb[0].mxu0
      %v457 = vpop.f32.mrb[0].mxu0
      %v458 = vadd.f32 0.0, %v457
      %v459 = vpop.f32.mrb[0].mxu0
      %460 = vmatprep.mubr.bf16.mxu0 0
      %461 = vmatmul.mubr.bf16.gmra.mrb[0].mxu0 %v271
      %v462 = vpop.f32.mrb[0].mxu0
      %v463 = vadd.f32 0.0, %v462
      %v464 = vpop.f32.mrb[0].mxu0
      %v465 = vpop.f32.mrb[0].mxu0
      %v466 = vadd.f32 0.0, %v465
      %v467 = vpop.f32.mrb[0].mxu0
      %468 = vmatprep.mubr.bf16.mxu0 0
      %469 = vmatmul.mubr.bf16.gmra.mrb[0].mxu0 %v272
      %v470 = vpop.f32.mrb[0].mxu0
      %v471 = vadd.f32 0.0, %v470
      %v472 = vpop.f32.mrb[0].mxu0
      %v473 = vpop.f32.mrb[0].mxu0
      %v474 = vadd.f32 0.0, %v473
      %v475 = vpop.f32.mrb[0].mxu0
      %476 = vmatprep.mubr.bf16.mxu0 0
      %477 = vmatmul.mubr.bf16.gmra.mrb[0].mxu0 %v273
      %v478 = vpop.f32.mrb[0].mxu0
      %v479 = vadd.f32 0.0, %v478
      %v480 = vpop.f32.mrb[0].mxu0
      %v481 = vpop.f32.mrb[0].mxu0
      %v482 = vadd.f32 0.0, %v481
      %v483 = vpop.f32.mrb[0].mxu0
      %484 = vmatprep.mubr.bf16.mxu0 0
      %485 = vmatmul.mubr.bf16.gmra.mrb[0].mxu0 %v274
      %v486 = vpop.f32.mrb[0].mxu0
      %v487 = vadd.f32 0.0, %v486
      %v488 = vpop.f32.mrb[0].mxu0
      %v489 = vpop.f32.mrb[0].mxu0
      %v490 = vadd.f32 0.0, %v489
      %v491 = vpop.f32.mrb[0].mxu0
      %492 = vmatprep.mubr.bf16.mxu0 0
      %493 = vmatmul.mubr.bf16.gmra.mrb[0].mxu0 %v275
      %v494 = vpop.f32.mrb[0].mxu0
      %v495 = vadd.f32 0.0, %v494
      %v496 = vpop.f32.mrb[0].mxu0
      %v497 = vpop.f32.mrb[0].mxu0
      %v498 = vadd.f32 0.0, %v497
      %v499 = vpop.f32.mrb[0].mxu0
      %500 = vdwg.mxu0
      %v501 = vpack.c.bf16 %v378, %v375
      %v502 = vpack.c.bf16 %v386, %v383
      %v503 = vpack.c.bf16 %v394, %v391
      %v504 = vpack.c.bf16 %v402, %v399
      %v505 = vpack.c.bf16 %v410, %v407
      %v506 = vpack.c.bf16 %v418, %v415
      %v507 = vpack.c.bf16 %v426, %v423
      %v508 = vpack.c.bf16 %v434, %v431
      %v509 = vpack.c.bf16 %v442, %v439
      %v510 = vpack.c.bf16 %v450, %v447
      %v511 = vpack.c.bf16 %v458, %v455
      %v512 = vpack.c.bf16 %v466, %v463
      %v513 = vpack.c.bf16 %v474, %v471
      %v514 = vpack.c.bf16 %v482, %v479
      %v515 = vpack.c.bf16 %v490, %v487
      %v516 = vpack.c.bf16 %v498, %v495
      %v533 = vunpack.c.l.b16 %v501
      %v534 = vunpack.c.h.b16 %v501
      %v535 = vunpack.c.l.b16 %v502
      %v536 = vunpack.c.h.b16 %v502
      %v537 = vunpack.c.l.b16 %v503
      %v538 = vunpack.c.h.b16 %v503
      %v539 = vunpack.c.l.b16 %v504
      %v540 = vunpack.c.h.b16 %v504
      %v541 = vunpack.c.l.b16 %v505
      %v542 = vunpack.c.h.b16 %v505
      %v543 = vunpack.c.l.b16 %v506
      %v544 = vunpack.c.h.b16 %v506
      %v545 = vunpack.c.l.b16 %v507
      %v546 = vunpack.c.h.b16 %v507
      %v547 = vunpack.c.l.b16 %v508
      %v548 = vunpack.c.h.b16 %v508
      %v549 = vunpack.c.l.b16 %v509
      %v550 = vunpack.c.h.b16 %v509
      %v551 = vunpack.c.l.b16 %v510
      %v552 = vunpack.c.h.b16 %v510
      %v553 = vunpack.c.l.b16 %v511
      %v554 = vunpack.c.h.b16 %v511
      %v555 = vunpack.c.l.b16 %v512
      %v556 = vunpack.c.h.b16 %v512
      %v557 = vunpack.c.l.b16 %v513
      %v558 = vunpack.c.h.b16 %v513
      %v559 = vunpack.c.l.b16 %v514
      %v560 = vunpack.c.h.b16 %v514
      %v561 = vunpack.c.l.b16 %v515
      %v562 = vunpack.c.h.b16 %v515
      %v563 = vunpack.c.l.b16 %v516
      %v564 = vunpack.c.h.b16 %v516
      %v565 = vpack.c.b16 %v533, %v533
      %v566 = vpack.c.b16 %v534, %v534
      %v567 = vpack.c.b16 %v535, %v535
      %v568 = vpack.c.b16 %v536, %v536
      %v569 = vpack.c.b16 %v537, %v537
      %v570 = vpack.c.b16 %v538, %v538
      %v571 = vpack.c.b16 %v539, %v539
      %v572 = vpack.c.b16 %v540, %v540
      %v573 = vpack.c.b16 %v541, %v541
      %v574 = vpack.c.b16 %v542, %v542
      %v575 = vpack.c.b16 %v543, %v543
      %v576 = vpack.c.b16 %v544, %v544
      %v577 = vpack.c.b16 %v545, %v545
      %v578 = vpack.c.b16 %v546, %v546
      %v579 = vpack.c.b16 %v547, %v547
      %v580 = vpack.c.b16 %v548, %v548
      %v581 = vpack.c.b16 %v549, %v549
      %v582 = vpack.c.b16 %v550, %v550
      %v583 = vpack.c.b16 %v551, %v551
      %v584 = vpack.c.b16 %v552, %v552
      %v585 = vpack.c.b16 %v553, %v553
      %v586 = vpack.c.b16 %v554, %v554
      %v587 = vpack.c.b16 %v555, %v555
      %v588 = vpack.c.b16 %v556, %v556
      %v589 = vpack.c.b16 %v557, %v557
      %v590 = vpack.c.b16 %v558, %v558
      %v591 = vpack.c.b16 %v559, %v559
      %v592 = vpack.c.b16 %v560, %v560
      %v593 = vpack.c.b16 %v561, %v561
      %v594 = vpack.c.b16 %v562, %v562
      %v595 = vpack.c.b16 %v563, %v563
      %v596 = vpack.c.b16 %v564, %v564
      %629 = vst [vmem:[%s145] sm:$0xf] %v565
      %630 = vst [vmem:[%s145 + $0x4] sm:$0xf] %v566
      %631 = vst [vmem:[%s145 + $0x8] sm:$0xf] %v567
      %632 = vst [vmem:[%s145 + $0xc] sm:$0xf] %v568
      %633 = vst [vmem:[%s145 + $0x10] sm:$0xf] %v569
      %634 = vst [vmem:[%s145 + $0x14] sm:$0xf] %v570
      %635 = vst [vmem:[%s145 + $0x18] sm:$0xf] %v571
      %636 = vst [vmem:[%s145 + $0x1c] sm:$0xf] %v572
      %637 = vst [vmem:[%s145 + $0x20] sm:$0xf] %v573
      %638 = vst [vmem:[%s145 + $0x24] sm:$0xf] %v574
      %639 = vst [vmem:[%s145 + $0x28] sm:$0xf] %v575
      %640 = vst [vmem:[%s145 + $0x2c] sm:$0xf] %v576
      %641 = vst [vmem:[%s145 + $0x30] sm:$0xf] %v577
      %642 = vst [vmem:[%s145 + $0x34] sm:$0xf] %v578
      %643 = vst [vmem:[%s145 + $0x38] sm:$0xf] %v579
      %644 = vst [vmem:[%s145 + $0x3c] sm:$0xf] %v580
      %645 = vst [vmem:[%s145 + $0x40] sm:$0xf] %v581
      %646 = vst [vmem:[%s145 + $0x44] sm:$0xf] %v582
      %647 = vst [vmem:[%s145 + $0x48] sm:$0xf] %v583
      %648 = vst [vmem:[%s145 + $0x4c] sm:$0xf] %v584
      %649 = vst [vmem:[%s145 + $0x50] sm:$0xf] %v585
      %650 = vst [vmem:[%s145 + $0x54] sm:$0xf] %v586
      %651 = vst [vmem:[%s145 + $0x58] sm:$0xf] %v587
      %652 = vst [vmem:[%s145 + $0x5c] sm:$0xf] %v588
      %653 = vst [vmem:[%s145 + $0x60] sm:$0xf] %v589
      %654 = vst [vmem:[%s145 + $0x64] sm:$0xf] %v590
      %655 = vst [vmem:[%s145 + $0x68] sm:$0xf] %v591
      %656 = vst [vmem:[%s145 + $0x6c] sm:$0xf] %v592
      %657 = vst [vmem:[%s145 + $0x70] sm:$0xf] %v593
      %658 = vst [vmem:[%s145 + $0x74] sm:$0xf] %v594
      %659 = vst [vmem:[%s145 + $0x78] sm:$0xf] %v595
      %660 = vst [vmem:[%s145 + $0x7c] sm:$0xf] %v596
      %s661 = smul.u32 32, %s13
      %p662 = scmp.lt.s32.totalorder %s661, 63
      %s663 = scalar_select %p662, %s661, 63
      %s664 = smul.addr %s663, 4
      %s665 = scalar_lea.vmem %s2, %s664
      // Predicated region
      $region29: #{generator_forward.23} parent=27 // pred_check
        %p666 = pneg %p78
      $region30: #{generator_forward.23} parent=27 // pred_check_branch
        %668 = sbr.rel (%p666) target = $region32
      $region31: #{generator_forward.23} parent=27 // pred_region
        %s669 = smul.u32 32, %s13
      $region32: #{generator_forward.23} parent=27 // pred_fallthru
        _
    $region28: #{generator_forward.23} parent=5 // pred_fallthru
      _
    %p670 = scmp.le.s32.totalorder 2, %s8
    // Predicated region
    $region33: #{generator_forward.23} parent=5 // pred_check
      %p671 = pneg %p670
    $region34: #{generator_forward.23} parent=5 // pred_check_branch
      %673 = sbr.rel (%p671) target = $region36
    $region35: #{generator_forward.23} parent=5 // pred_region
      %s674 = ssub.s32 %s8, 2
      // Predicated region
      $region37: #{generator_forward.23} parent=35 // pred_check
        %p675 = pneg %p84
      $region38: #{generator_forward.23} parent=35 // pred_check_branch
        %677 = sbr.rel (%p675) target = $region40
      $region39: #{generator_forward.23} parent=35 // pred_region
        %s678 = smul.u32 32, %s14
        %p679 = scmp.lt.s32.totalorder %s678, 63
        %s680 = scalar_select %p679, %s678, 63
        %s681 = smul.addr %s680, 4
        %s682 = scalar_lea.vmem %s2, %s681
      $region40: #{generator_forward.23} parent=35 // pred_fallthru
        _
    $region36: #{generator_forward.23} parent=5 // pred_fallthru
      _
  $region6: #{generator_forward.23} parent=0 // loop_footer
    %s12 = sadd.s32 1, %s8
  $region7: #{generator_forward.23} parent=0 // loop_footer_branch
    %7 = sbr.rel target = $region3
  $region8: #{generator_forward.23} parent=0 // loop_exit
    _

// kernel: generator_forward.24
$region0: #{generator_forward.24}
  #allocation0 [shape = 'u32[]', space=smem, size = 0x4, offset = 0x4, fixed_abs, tag = 'smem constant byte address 0x4 - core index']
  #allocation1 [shape = 'u32[144,128]{1,0:T(1,128)}', space=vmem, size = 0x12000, scoped, tag = 'internal scratch']
  #allocation2 [shape = 'f32[8,256]{1,0:T(8,128)}', space=vmem, size = 0x2000, scoped, tag = 'scratch operand']
  #allocation3 [shape = 'f32[8,256]{1,0:T(8,128)}', space=vmem, size = 0x2000, scoped, tag = 'scratch operand']
  %s0 = inlined_call_operand.vmem [shape: bf16[8,8,256], index: 0, kind: input, shape index: {}]
  %s1 = inlined_call_operand.vmem [shape: f32[1,256], index: 1, kind: output, shape index: {0}]
  %s2 = inlined_call_operand.vmem [shape: f32[1,256], index: 2, kind: output, shape index: {1}]
  %3 = xla_tuple %s1, %s2
  %s4 = sld [smem:[#allocation0]]
  $region30: #{generator_forward.24} parent=0
    _
  %s6 = ssub.s32 1, %s4
  %s7 = scalar_select 0, %s6, %s4
  // Predicated region
  $region2: #{generator_forward.24} parent=0 // pred_check
    _
  $region3: #{generator_forward.24} parent=0 // pred_check_branch
    %9 = sbr.rel (0) target = $region5
  $region4: #{generator_forward.24} parent=0 // pred_region
    _
  $region5: #{generator_forward.24} parent=0 // pred_fallthru
    _
  %p10 = scmp.eq.s32.totalorder 0, 0
  // Predicated region
  $region6: #{generator_forward.24} parent=0 // pred_check
    %p11 = pneg %p10
  $region7: #{generator_forward.24} parent=0 // pred_check_branch
    %13 = sbr.rel (%p11) target = $region9
  $region8: #{generator_forward.24} parent=0 // pred_region
    %14 = vst [vmem:[#allocation2] sm:$0xff] 0.0
    %15 = vst [vmem:[#allocation2 + $0x8] sm:$0xff] 0.0
    %16 = vst [vmem:[#allocation3] sm:$0xff] 0.0
    %17 = vst [vmem:[#allocation3 + $0x8] sm:$0xff] 0.0
  $region9: #{generator_forward.24} parent=0 // pred_fallthru
    _
  %v18 = vld [vmem:[%s0] sm:$0xff]
  %v19 = vld [vmem:[%s0 + $0x8] sm:$0xff]
  %v20 = vld [vmem:[%s0 + $0x10] sm:$0xff]
  %v21 = vld [vmem:[%s0 + $0x18] sm:$0xff]
  %v22 = vld [vmem:[%s0 + $0x20] sm:$0xff]
  %v23 = vld [vmem:[%s0 + $0x28] sm:$0xff]
  %v24 = vld [vmem:[%s0 + $0x30] sm:$0xff]
  %v25 = vld [vmem:[%s0 + $0x38] sm:$0xff]
  %v26 = vunpack.c.l.bf16 %v18
  %v27 = vunpack.c.h.bf16 %v18
  %v28 = vunpack.c.l.bf16 %v19
  %v29 = vunpack.c.h.bf16 %v19
  %v30 = vunpack.c.l.bf16 %v20
  %v31 = vunpack.c.h.bf16 %v20
  %v32 = vunpack.c.l.bf16 %v21
  %v33 = vunpack.c.h.bf16 %v21
  %v34 = vunpack.c.l.bf16 %v22
  %v35 = vunpack.c.h.bf16 %v22
  %v36 = vunpack.c.l.bf16 %v23
  %v37 = vunpack.c.h.bf16 %v23
  %v38 = vunpack.c.l.bf16 %v24
  %v39 = vunpack.c.h.bf16 %v24
  %v40 = vunpack.c.l.bf16 %v25
  %v41 = vunpack.c.h.bf16 %v25
  %v42 = vld [vmem:[#allocation2] sm:$0xff]
  %v43 = vld [vmem:[#allocation2 + $0x8] sm:$0xff]
  %v44 = vadd.f32 %v26, %v28
  %v45 = vadd.f32 %v44, %v30
  %v46 = vadd.f32 %v45, %v32
  %v47 = vadd.f32 %v46, %v34
  %v48 = vadd.f32 %v47, %v36
  %v49 = vadd.f32 %v48, %v38
  %v50 = vadd.f32 %v49, %v40
  %v51 = vadd.f32 %v27, %v29
  %v52 = vadd.f32 %v51, %v31
  %v53 = vadd.f32 %v52, %v33
  %v54 = vadd.f32 %v53, %v35
  %v55 = vadd.f32 %v54, %v37
  %v56 = vadd.f32 %v55, %v39
  %v57 = vadd.f32 %v56, %v41
  %v58 = vadd.f32 %v42, %v50
  %v59 = vadd.f32 %v43, %v57
  %60 = vst [vmem:[#allocation2] sm:$0xff] %v58
  %61 = vst [vmem:[#allocation2 + $0x8] sm:$0xff] %v59
  %v62 = vld [vmem:[#allocation3] sm:$0xff]
  %v63 = vld [vmem:[#allocation3 + $0x8] sm:$0xff]
  %v64 = vmul.f32 %v26, %v26
  %v65 = vmul.f32 %v27, %v27
  %v66 = vmul.f32 %v28, %v28
  %v67 = vmul.f32 %v29, %v29
  %v68 = vmul.f32 %v30, %v30
  %v69 = vmul.f32 %v31, %v31
  %v70 = vmul.f32 %v32, %v32
  %v71 = vmul.f32 %v33, %v33
  %v72 = vmul.f32 %v34, %v34
  %v73 = vmul.f32 %v35, %v35
  %v74 = vmul.f32 %v36, %v36
  %v75 = vmul.f32 %v37, %v37
  %v76 = vmul.f32 %v38, %v38
  %v77 = vmul.f32 %v39, %v39
  %v78 = vmul.f32 %v40, %v40
  %v79 = vmul.f32 %v41, %v41
  %v80 = vadd.f32 %v64, %v66
  %v81 = vadd.f32 %v80, %v68
  %v82 = vadd.f32 %v81, %v70
  %v83 = vadd.f32 %v82, %v72
  %v84 = vadd.f32 %v83, %v74
  %v85 = vadd.f32 %v84, %v76
  %v86 = vadd.f32 %v85, %v78
  %v87 = vadd.f32 %v65, %v67
  %v88 = vadd.f32 %v87, %v69
  %v89 = vadd.f32 %v88, %v71
  %v90 = vadd.f32 %v89, %v73
  %v91 = vadd.f32 %v90, %v75
  %v92 = vadd.f32 %v91, %v77
  %v93 = vadd.f32 %v92, %v79
  %v94 = vadd.f32 %v62, %v86
  %v95 = vadd.f32 %v63, %v93
  %96 = vst [vmem:[#allocation3] sm:$0xff] %v94
  %97 = vst [vmem:[#allocation3 + $0x8] sm:$0xff] %v95
  // Predicated region
  $region10: #{generator_forward.24} parent=0 // pred_check
    %p98 = pneg %p10
  $region11: #{generator_forward.24} parent=0 // pred_check_branch
    %100 = sbr.rel (%p98) target = $region13
  $region12: #{generator_forward.24} parent=0 // pred_region
    %v101 = vld [vmem:[#allocation2] sm:$0xff]
    %v102 = vld [vmem:[#allocation2 + $0x8] sm:$0xff]
    %v103 = vrot.slane %v101, 4
    %v104 = vadd.f32 %v101, %v103
    %v105 = vrot.slane %v104, 2
    %v106 = vadd.f32 %v104, %v105
    %v107 = vrot.slane %v106, 1
    %v108 = vadd.f32 %v106, %v107
    %v109 = vrot.slane %v102, 4
    %v110 = vadd.f32 %v102, %v109
    %v111 = vrot.slane %v110, 2
    %v112 = vadd.f32 %v110, %v111
    %v113 = vrot.slane %v112, 1
    %v114 = vadd.f32 %v112, %v113
    %v117 = vcombine.low %v108, %v114
    %v119 = vunpack.c.l.s4 1966171168
    %v120 = vunpack.c.0.s8 %v119
    %v121 = vlaneseq
    %v122 = vshrl.u32 %v121, 7
    %v123 = vsub.s32 %v120, %v122
    %v124 = vrot.slane %v117, %v123
    %v126 = vunpack.c.l.s4 1966171168
    %v127 = vunpack.c.0.s8 %v126
    %v128 = vlaneseq
    %v129 = vshrl.u32 %v128, 7
    %v130 = vsub.s32 %v127, %v129
    %v131 = vrot.slane %v124, %v130
    %v133 = vlaneseq
    %vm134 = vcmp.ge.s32.totalorder %v133, 0
    %vm135 = vcmp.lt.s32.totalorder %v133, 256
    %vm136 = vmand %vm134, %vm135
    %137 = vst.msk [vmem:[%s1] sm:$0x3] %vm136, %v131
    %v138 = vld [vmem:[#allocation3] sm:$0xff]
    %v139 = vld [vmem:[#allocation3 + $0x8] sm:$0xff]
    %v140 = vrot.slane %v138, 4
    %v141 = vadd.f32 %v138, %v140
    %v142 = vrot.slane %v141, 2
    %v143 = vadd.f32 %v141, %v142
    %v144 = vrot.slane %v143, 1
    %v145 = vadd.f32 %v143, %v144
    %v146 = vrot.slane %v139, 4
    %v147 = vadd.f32 %v139, %v146
    %v148 = vrot.slane %v147, 2
    %v149 = vadd.f32 %v147, %v148
    %v150 = vrot.slane %v149, 1
    %v151 = vadd.f32 %v149, %v150
    %v154 = vcombine.low %v145, %v151
    %v156 = vunpack.c.l.s4 1966171168
    %v157 = vunpack.c.0.s8 %v156
    %v158 = vlaneseq
    %v159 = vshrl.u32 %v158, 7
    %v160 = vsub.s32 %v157, %v159
    %v161 = vrot.slane %v154, %v160
    %v163 = vunpack.c.l.s4 1966171168
    %v164 = vunpack.c.0.s8 %v163
    %v165 = vlaneseq
    %v166 = vshrl.u32 %v165, 7
    %v167 = vsub.s32 %v164, %v166
    %v168 = vrot.slane %v161, %v167
    %170 = vst.msk [vmem:[%s2] sm:$0x3] %vm136, %v168
  $region13: #{generator_forward.24} parent=0 // pred_fallthru
    _
  // Predicated region
  $region14: #{generator_forward.24} parent=0 // pred_check
    _
  $region15: #{generator_forward.24} parent=0 // pred_check_branch
    %172 = sbr.rel (0) target = $region17
  $region16: #{generator_forward.24} parent=0 // pred_region
    _
  $region17: #{generator_forward.24} parent=0 // pred_fallthru
    _
  // Predicated region
  $region18: #{generator_forward.24} parent=0 // pred_check
    _
  $region19: #{generator_forward.24} parent=0 // pred_check_branch
    %174 = sbr.rel (0) target = $region21
  $region20: #{generator_forward.24} parent=0 // pred_region
    _
  $region21: #{generator_forward.24} parent=0 // pred_fallthru
    _
  // Predicated region
  $region22: #{generator_forward.24} parent=0 // pred_check
    _
  $region23: #{generator_forward.24} parent=0 // pred_check_branch
    %176 = sbr.rel (0) target = $region25
  $region24: #{generator_forward.24} parent=0 // pred_region
    _
  $region25: #{generator_forward.24} parent=0 // pred_fallthru
    _
  // Predicated region
  $region26: #{generator_forward.24} parent=0 // pred_check
    _
  $region27: #{generator_forward.24} parent=0 // pred_check_branch
    %178 = sbr.rel (0) target = $region29
  $region28: #{generator_forward.24} parent=0 // pred_region
    _
  $region29: #{generator_forward.24} parent=0 // pred_fallthru
    _

// kernel: tile.73
$region0: #{tile.73}
  #allocation0 [shape = 's32[1]{0}', space=sflag, size = 0x4, scoped, tag = 'scoped memory for tile.73']
  %s0 = inlined_call_operand.vmem [shape: f32[8], index: 0, kind: input, shape index: {}]
  %s1 = inlined_call_operand.vmem [shape: f32[32,8], index: 1, kind: output, shape index: {}]
  // Predicated region
  $region2: #{tile.73} parent=0 // pred_check
    _
  $region3: #{tile.73} parent=0 // pred_check_branch
    %3 = sbr.rel (0) target = $region5
  $region4: #{tile.73} parent=0 // pred_region
    _
  $region5: #{tile.73} parent=0 // pred_fallthru
    _
  %v4 = vld [vmem:[%s0] ss:$0 sm:$0xff]
  %5 = vst [vmem:[%s1] sm:$0xff] %v4
  %s6 = scalar_lea.vmem %s1, 8
  %7 = vst [vmem:[%s6] sm:$0xff] %v4
  %s8 = scalar_lea.vmem %s1, 16
  %9 = vst [vmem:[%s8] sm:$0xff] %v4
  %s10 = scalar_lea.vmem %s1, 24
  %11 = vst [vmem:[%s10] sm:$0xff] %v4

// kernel: tile.74
$region0: #{tile.74}
  %s0 = inlined_call_operand.vmem [shape: f32[32,8], index: 0, kind: input, shape index: {}]
  %s1 = inlined_call_operand.vmem [shape: f32[1,256], index: 1, kind: output, shape index: {}]
  $region1: #{tile.74} parent=0
    #allocation0 [shape = 'u8[8192]{0}', space=vmem, size = 0x2000, scoped, tag = 'scoped mem for output reshape']
    %s2 = smov 3
    %v3 = vld [vmem:[%s0] ss:$16 sm:%s2]
    %vm4 = vcmask 64512
    %5 = vst.msk [vmem:[#allocation0] ss:$8 sm:$0x3] %vm4, %v3
    %s6 = scalar_lea.vmem %s0, 15
    %s7 = smov 3
    %v8 = vld [vmem:[%s6] ss:$16 sm:%s7]
    %9 = vrot.lane.b32.xlu0 %v8, 120
    %v10 = vpop.permute.xlu0 %9
    %vm11 = vcmask 1048512
    %12 = vst.msk [vmem:[#allocation0] ss:$8 sm:$0x3] %vm11, %v10
    %s13 = scalar_lea.vmem %s0, 14
    %s14 = smov 3
    %v15 = vld [vmem:[%s13] ss:$16 sm:%s14]
    %16 = vrot.lane.b32.xlu0 %v15, 112
    %v17 = vpop.permute.xlu0 %16
    %vm18 = vcmask 982912
    %19 = vst.msk [vmem:[#allocation0] ss:$8 sm:$0x3] %vm18, %v17
    %s20 = scalar_lea.vmem %s0, 13
    %s21 = smov 3
    %v22 = vld [vmem:[%s20] ss:$16 sm:%s21]
    %23 = vrot.lane.b32.xlu0 %v22, 104
    %v24 = vpop.permute.xlu0 %23
    %vm25 = vcmask 917312
    %26 = vst.msk [vmem:[#allocation0] ss:$8 sm:$0x3] %vm25, %v24
    %s27 = scalar_lea.vmem %s0, 12
    %s28 = smov 3
    %v29 = vld [vmem:[%s27] ss:$16 sm:%s28]
    %30 = vrot.lane.b32.xlu0 %v29, 96
    %v31 = vpop.permute.xlu0 %30
    %vm32 = vcmask 851712
    %33 = vst.msk [vmem:[#allocation0] ss:$8 sm:$0x3] %vm32, %v31
    %s34 = scalar_lea.vmem %s0, 11
    %s35 = smov 3
    %v36 = vld [vmem:[%s34] ss:$16 sm:%s35]
    %37 = vrot.lane.b32.xlu0 %v36, 88
    %v38 = vpop.permute.xlu0 %37
    %vm39 = vcmask 786112
    %40 = vst.msk [vmem:[#allocation0] ss:$8 sm:$0x3] %vm39, %v38
    %s41 = scalar_lea.vmem %s0, 10
    %s42 = smov 3
    %v43 = vld [vmem:[%s41] ss:$16 sm:%s42]
    %44 = vrot.lane.b32.xlu0 %v43, 80
    %v45 = vpop.permute.xlu0 %44
    %vm46 = vcmask 720512
    %47 = vst.msk [vmem:[#allocation0] ss:$8 sm:$0x3] %vm46, %v45
    %s48 = scalar_lea.vmem %s0, 9
    %s49 = smov 3
    %v50 = vld [vmem:[%s48] ss:$16 sm:%s49]
    %51 = vrot.lane.b32.xlu0 %v50, 72
    %v52 = vpop.permute.xlu0 %51
    %vm53 = vcmask 654912
    %54 = vst.msk [vmem:[#allocation0] ss:$8 sm:$0x3] %vm53, %v52
    %s55 = scalar_lea.vmem %s0, 8
    %s56 = smov 3
    %v57 = vld [vmem:[%s55] ss:$16 sm:%s56]
    %58 = vrot.lane.b32.xlu0 %v57, 64
    %v59 = vpop.permute.xlu0 %58
    %vm60 = vcmask 589312
    %61 = vst.msk [vmem:[#allocation0] ss:$8 sm:$0x3] %vm60, %v59
    %s62 = scalar_lea.vmem %s0, 7
    %s63 = smov 3
    %v64 = vld [vmem:[%s62] ss:$16 sm:%s63]
    %65 = vrot.lane.b32.xlu0 %v64, 56
    %v66 = vpop.permute.xlu0 %65
    %vm67 = vcmask 523712
    %68 = vst.msk [vmem:[#allocation0] ss:$8 sm:$0x3] %vm67, %v66
    %s69 = scalar_lea.vmem %s0, 6
    %s70 = smov 3
    %v71 = vld [vmem:[%s69] ss:$16 sm:%s70]
    %72 = vrot.lane.b32.xlu0 %v71, 48
    %v73 = vpop.permute.xlu0 %72
    %vm74 = vcmask 458112
    %75 = vst.msk [vmem:[#allocation0] ss:$8 sm:$0x3] %vm74, %v73
    %s76 = scalar_lea.vmem %s0, 5
    %s77 = smov 3
    %v78 = vld [vmem:[%s76] ss:$16 sm:%s77]
    %79 = vrot.lane.b32.xlu0 %v78, 40
    %v80 = vpop.permute.xlu0 %79
    %vm81 = vcmask 392512
    %82 = vst.msk [vmem:[#allocation0] ss:$8 sm:$0x3] %vm81, %v80
    %s83 = scalar_lea.vmem %s0, 4
    %s84 = smov 3
    %v85 = vld [vmem:[%s83] ss:$16 sm:%s84]
    %86 = vrot.lane.b32.xlu0 %v85, 32
    %v87 = vpop.permute.xlu0 %86
    %vm88 = vcmask 326912
    %89 = vst.msk [vmem:[#allocation0] ss:$8 sm:$0x3] %vm88, %v87
    %s90 = scalar_lea.vmem %s0, 3
    %s91 = smov 3
    %v92 = vld [vmem:[%s90] ss:$16 sm:%s91]
    %93 = vrot.lane.b32.xlu0 %v92, 24
    %v94 = vpop.permute.xlu0 %93
    %vm95 = vcmask 261312
    %96 = vst.msk [vmem:[#allocation0] ss:$8 sm:$0x3] %vm95, %v94
    %s97 = scalar_lea.vmem %s0, 2
    %s98 = smov 3
    %v99 = vld [vmem:[%s97] ss:$16 sm:%s98]
    %100 = vrot.lane.b32.xlu0 %v99, 16
    %v101 = vpop.permute.xlu0 %100
    %vm102 = vcmask 195712
    %103 = vst.msk [vmem:[#allocation0] ss:$8 sm:$0x3] %vm102, %v101
    %s104 = scalar_lea.vmem %s0, 1
    %s105 = smov 3
    %v106 = vld [vmem:[%s104] ss:$16 sm:%s105]
    %107 = vrot.lane.b32.xlu0 %v106, 8
    %v108 = vpop.permute.xlu0 %107
    %vm109 = vcmask 130112
    %110 = vst.msk [vmem:[#allocation0] ss:$8 sm:$0x3] %vm109, %v108
    %s112 = sshllo.u32 0, 1
    %v114 = vld [vmem:[#allocation0] sm:%s112]
    %s115 = sshllo.u32 0, 1
    %116 = vst [vmem:[%s1] sm:%s115] %v114
    %s117 = scalar_lea.vmem [#allocation0], 8
    %v118 = vld [vmem:[%s117] sm:%s112]
    %s119 = sshllo.u32 0, 1
    %s120 = scalar_lea.vmem %s1, 1
    %121 = vst [vmem:[%s120] sm:%s119] %v118

// kernel: generator_forward.25
$region0: #{generator_forward.25}
  #allocation0 [shape = 'u32[]', space=smem, size = 0x4, offset = 0x4, fixed_abs, tag = 'smem constant byte address 0x4 - core index']
  #allocation1 [shape = 'u32[144,128]{1,0:T(1,128)}', space=vmem, size = 0x12000, scoped, tag = 'internal scratch']
  %s0 = inlined_call_operand.vmem [shape: bf16[64,256], index: 0, kind: input, shape index: {}]
  %s1 = inlined_call_operand.vmem [shape: f32[1,256], index: 1, kind: input, shape index: {}]
  %s2 = inlined_call_operand.vmem [shape: f32[1,256], index: 2, kind: input, shape index: {}]
  %s3 = inlined_call_operand.vmem [shape: bf16[64,256], index: 3, kind: output, shape index: {}]
  %s4 = sld [smem:[#allocation0]]
  $region22: #{generator_forward.25} parent=0
    _
  %s6 = ssub.s32 1, %s4
  %s7 = scalar_select 0, %s6, %s4
  // Predicated region
  $region2: #{generator_forward.25} parent=0 // pred_check
    _
  $region3: #{generator_forward.25} parent=0 // pred_check_branch
    %9 = sbr.rel (0) target = $region5
  $region4: #{generator_forward.25} parent=0 // pred_region
    _
  $region5: #{generator_forward.25} parent=0 // pred_fallthru
    _
  // Predicated region
  $region6: #{generator_forward.25} parent=0 // pred_check
    _
  $region7: #{generator_forward.25} parent=0 // pred_check_branch
    %11 = sbr.rel (0) target = $region9
  $region8: #{generator_forward.25} parent=0 // pred_region
    _
  $region9: #{generator_forward.25} parent=0 // pred_fallthru
    _
  // Predicated region
  $region10: #{generator_forward.25} parent=0 // pred_check
    _
  $region11: #{generator_forward.25} parent=0 // pred_check_branch
    %13 = sbr.rel (0) target = $region13
  $region12: #{generator_forward.25} parent=0 // pred_region
    _
  $region13: #{generator_forward.25} parent=0 // pred_fallthru
    _
  %v14 = vld [vmem:[%s0] sm:$0xff]
  %v15 = vld [vmem:[%s0 + $0x8] sm:$0xff]
  %v16 = vld [vmem:[%s0 + $0x10] sm:$0xff]
  %v17 = vld [vmem:[%s0 + $0x18] sm:$0xff]
  %v18 = vld [vmem:[%s0 + $0x20] sm:$0xff]
  %v19 = vld [vmem:[%s0 + $0x28] sm:$0xff]
  %v20 = vld [vmem:[%s0 + $0x30] sm:$0xff]
  %v21 = vld [vmem:[%s0 + $0x38] sm:$0xff]
  %v22 = vunpack.c.l.bf16 %v14
  %v23 = vunpack.c.h.bf16 %v14
  %v24 = vunpack.c.l.bf16 %v15
  %v25 = vunpack.c.h.bf16 %v15
  %v26 = vunpack.c.l.bf16 %v16
  %v27 = vunpack.c.h.bf16 %v16
  %v28 = vunpack.c.l.bf16 %v17
  %v29 = vunpack.c.h.bf16 %v17
  %v30 = vunpack.c.l.bf16 %v18
  %v31 = vunpack.c.h.bf16 %v18
  %v32 = vunpack.c.l.bf16 %v19
  %v33 = vunpack.c.h.bf16 %v19
  %v34 = vunpack.c.l.bf16 %v20
  %v35 = vunpack.c.h.bf16 %v20
  %v36 = vunpack.c.l.bf16 %v21
  %v37 = vunpack.c.h.bf16 %v21
  %v38 = vld [vmem:[%s1] sm:$0x3]
  %v40 = vlaneseq
  %v41 = vshrl.u32 %v40, 7
  %v42 = vsub.s32 0, %v41
  %v43 = vrot.slane %v38, %v42
  %v44 = vlaneseq
  %v45 = vshrl.u32 %v44, 7
  %v46 = vsub.s32 1, %v45
  %v47 = vrot.slane %v38, %v46
  %v50 = vmul.f32 %v22, %v43
  %v51 = vmul.f32 %v23, %v47
  %v52 = vmul.f32 %v24, %v43
  %v53 = vmul.f32 %v25, %v47
  %v54 = vmul.f32 %v26, %v43
  %v55 = vmul.f32 %v27, %v47
  %v56 = vmul.f32 %v28, %v43
  %v57 = vmul.f32 %v29, %v47
  %v58 = vmul.f32 %v30, %v43
  %v59 = vmul.f32 %v31, %v47
  %v60 = vmul.f32 %v32, %v43
  %v61 = vmul.f32 %v33, %v47
  %v62 = vmul.f32 %v34, %v43
  %v63 = vmul.f32 %v35, %v47
  %v64 = vmul.f32 %v36, %v43
  %v65 = vmul.f32 %v37, %v47
  %v66 = vld [vmem:[%s2] sm:$0x3]
  %v68 = vlaneseq
  %v69 = vshrl.u32 %v68, 7
  %v70 = vsub.s32 0, %v69
  %v71 = vrot.slane %v66, %v70
  %v72 = vlaneseq
  %v73 = vshrl.u32 %v72, 7
  %v74 = vsub.s32 1, %v73
  %v75 = vrot.slane %v66, %v74
  %v78 = vadd.f32 %v50, %v71
  %v79 = vadd.f32 %v51, %v75
  %v80 = vadd.f32 %v52, %v71
  %v81 = vadd.f32 %v53, %v75
  %v82 = vadd.f32 %v54, %v71
  %v83 = vadd.f32 %v55, %v75
  %v84 = vadd.f32 %v56, %v71
  %v85 = vadd.f32 %v57, %v75
  %v86 = vadd.f32 %v58, %v71
  %v87 = vadd.f32 %v59, %v75
  %v88 = vadd.f32 %v60, %v71
  %v89 = vadd.f32 %v61, %v75
  %v90 = vadd.f32 %v62, %v71
  %v91 = vadd.f32 %v63, %v75
  %v92 = vadd.f32 %v64, %v71
  %v93 = vadd.f32 %v65, %v75
  %v94 = vmax.f32 %v78, 0.0
  %v95 = vmax.f32 %v79, 0.0
  %v96 = vmax.f32 %v80, 0.0
  %v97 = vmax.f32 %v81, 0.0
  %v98 = vmax.f32 %v82, 0.0
  %v99 = vmax.f32 %v83, 0.0
  %v100 = vmax.f32 %v84, 0.0
  %v101 = vmax.f32 %v85, 0.0
  %v102 = vmax.f32 %v86, 0.0
  %v103 = vmax.f32 %v87, 0.0
  %v104 = vmax.f32 %v88, 0.0
  %v105 = vmax.f32 %v89, 0.0
  %v106 = vmax.f32 %v90, 0.0
  %v107 = vmax.f32 %v91, 0.0
  %v108 = vmax.f32 %v92, 0.0
  %v109 = vmax.f32 %v93, 0.0
  %v110 = vpack.c.bf16 %v96, %v94
  %v111 = vpack.c.bf16 %v97, %v95
  %v112 = vpack.c.bf16 %v100, %v98
  %v113 = vpack.c.bf16 %v101, %v99
  %v114 = vpack.c.bf16 %v104, %v102
  %v115 = vpack.c.bf16 %v105, %v103
  %v116 = vpack.c.bf16 %v108, %v106
  %v117 = vpack.c.bf16 %v109, %v107
  %v126 = vunpack.c.l.b16 %v110
  %v127 = vunpack.c.l.b16 %v111
  %v128 = vunpack.c.h.b16 %v110
  %v129 = vunpack.c.h.b16 %v111
  %v130 = vunpack.c.l.b16 %v112
  %v131 = vunpack.c.l.b16 %v113
  %v132 = vunpack.c.h.b16 %v112
  %v133 = vunpack.c.h.b16 %v113
  %v134 = vunpack.c.l.b16 %v114
  %v135 = vunpack.c.l.b16 %v115
  %v136 = vunpack.c.h.b16 %v114
  %v137 = vunpack.c.h.b16 %v115
  %v138 = vunpack.c.l.b16 %v116
  %v139 = vunpack.c.l.b16 %v117
  %v140 = vunpack.c.h.b16 %v116
  %v141 = vunpack.c.h.b16 %v117
  %v142 = vpack.c.b16 %v127, %v126
  %v143 = vpack.c.b16 %v129, %v128
  %v144 = vpack.c.b16 %v131, %v130
  %v145 = vpack.c.b16 %v133, %v132
  %v146 = vpack.c.b16 %v135, %v134
  %v147 = vpack.c.b16 %v137, %v136
  %v148 = vpack.c.b16 %v139, %v138
  %v149 = vpack.c.b16 %v141, %v140
  %158 = vst [vmem:[%s3] sm:$0xff] %v142
  %159 = vst [vmem:[%s3 + $0x8] sm:$0xff] %v143
  %160 = vst [vmem:[%s3 + $0x10] sm:$0xff] %v144
  %161 = vst [vmem:[%s3 + $0x18] sm:$0xff] %v145
  %162 = vst [vmem:[%s3 + $0x20] sm:$0xff] %v146
  %163 = vst [vmem:[%s3 + $0x28] sm:$0xff] %v147
  %164 = vst [vmem:[%s3 + $0x30] sm:$0xff] %v148
  %165 = vst [vmem:[%s3 + $0x38] sm:$0xff] %v149
  // Predicated region
  $region14: #{generator_forward.25} parent=0 // pred_check
    _
  $region15: #{generator_forward.25} parent=0 // pred_check_branch
    %167 = sbr.rel (0) target = $region17
  $region16: #{generator_forward.25} parent=0 // pred_region
    _
  $region17: #{generator_forward.25} parent=0 // pred_fallthru
    _
  // Predicated region
  $region18: #{generator_forward.25} parent=0 // pred_check
    _
  $region19: #{generator_forward.25} parent=0 // pred_check_branch
    %169 = sbr.rel (0) target = $region21
  $region20: #{generator_forward.25} parent=0 // pred_region
    _
  $region21: #{generator_forward.25} parent=0 // pred_fallthru
    _

// kernel: generator_forward.26
$region0: #{generator_forward.26}
  #allocation0 [shape = 'u32[]', space=smem, size = 0x4, offset = 0x4, fixed_abs, tag = 'smem constant byte address 0x4 - core index']
  #allocation1 [shape = 'u32[144,128]{1,0:T(1,128)}', space=vmem, size = 0x12000, scoped, tag = 'internal scratch']
  %s0 = inlined_call_operand.vmem [shape: bf16[2048,128], index: 0, kind: input, shape index: {}]
  %s1 = inlined_call_operand.vmem [shape: bf16[128,128], index: 1, kind: input, shape index: {}]
  %s2 = inlined_call_operand.vmem [shape: bf16[2048,128], index: 2, kind: output, shape index: {}]
  %s3 = sld [smem:[#allocation0]]
  $region41: #{generator_forward.26} parent=0
    _
  %s5 = ssub.s32 1, %s3
  %s6 = scalar_select 0, %s5, %s3
  loop: start=0, step=1, limit=6
  $region2: #{generator_forward.26} parent=0 // loop_pre_header
    _
  $region3: #{generator_forward.26} parent=0 // loop_header
    %s8 = sphi 0, %s12
    %p9 = scmp.ge.s32.totalorder %s8, 6
    %s18 = sphi 0, %s20
    %s21 = sphi 0, %s18
    %s22 = sphi 0, %s21
    %s38 = sphi 0, %s22
    %s42 = sphi 0, %s42
    %s44 = sphi 0, %s42
    %s45 = sphi 0, %s44
    %s59 = sphi 0, %s45
    %s65 = sphi 0, %s67
    %s68 = sphi 0, %s65
    %s69 = sphi 0, %s68
    %s85 = sphi 0, %s69
  $region4: #{generator_forward.26} parent=0 // loop_header_branch
    %11 = sbr.rel (%p9) target = $region8
  $region5: #{generator_forward.26} parent=0 // loop_body
    %s13 = ssub.s32 %s8, 1
    %s14 = ssub.s32 %s8, 2
    %s15 = sadd.s32 %s8, 1
    %s16 = ssub.s32 %s8, %s15
    %p17 = scmp.eq.s32.totalorder %s16, 0
    %s19 = sadd.s32 %s18, 1
    %s20 = scalar_select %p17, %s18, %s19
    %p23 = pneg %p17
    %p24 = scmp.eq.s32.totalorder %s8, 3
    %p25 = por %p23, %p24
    %p26 = scmp.ne.s32.totalorder %s18, %s21
    %p27 = scmp.eq.s32.totalorder %s8, 0
    %p28 = por %p26, %p27
    %p29 = scmp.ne.s32.totalorder %s18, %s21
    %p30 = scmp.eq.s32.totalorder %s13, 3
    %p31 = por %p29, %p30
    %p32 = scmp.ne.s32.totalorder %s21, %s22
    %p33 = scmp.eq.s32.totalorder %s13, 0
    %p34 = por %p32, %p33
    %p35 = scmp.ne.s32.totalorder %s21, %s22
    %p36 = scmp.eq.s32.totalorder %s14, 3
    %p37 = por %p35, %p36
    %p39 = scmp.ne.s32.totalorder %s22, %s38
    %p40 = scmp.eq.s32.totalorder %s14, 0
    %p41 = por %p39, %p40
    %s43 = sadd.s32 %s42, 1
    %p46 = scmp.eq.s32.totalorder %s8, 3
    %p47 = scmp.ne.s32.totalorder %s42, %s44
    %p48 = scmp.eq.s32.totalorder %s8, 0
    %p49 = por %p47, %p48
    %p50 = scmp.ne.s32.totalorder %s42, %s44
    %p51 = scmp.eq.s32.totalorder %s13, 3
    %p52 = por %p50, %p51
    %p53 = scmp.ne.s32.totalorder %s44, %s45
    %p54 = scmp.eq.s32.totalorder %s13, 0
    %p55 = por %p53, %p54
    %p56 = scmp.ne.s32.totalorder %s44, %s45
    %p57 = scmp.eq.s32.totalorder %s14, 3
    %p58 = por %p56, %p57
    %p60 = scmp.ne.s32.totalorder %s45, %s59
    %p61 = scmp.eq.s32.totalorder %s14, 0
    %p62 = por %p60, %p61
    %s63 = ssub.s32 %s8, %s15
    %p64 = scmp.eq.s32.totalorder %s63, 0
    %s66 = sadd.s32 %s65, 1
    %s67 = scalar_select %p64, %s65, %s66
    %p70 = pneg %p64
    %p71 = scmp.eq.s32.totalorder %s8, 3
    %p72 = por %p70, %p71
    %p73 = scmp.ne.s32.totalorder %s65, %s68
    %p74 = scmp.eq.s32.totalorder %s8, 0
    %p75 = por %p73, %p74
    %p76 = scmp.ne.s32.totalorder %s65, %s68
    %p77 = scmp.eq.s32.totalorder %s13, 3
    %p78 = por %p76, %p77
    %p79 = scmp.ne.s32.totalorder %s68, %s69
    %p80 = scmp.eq.s32.totalorder %s13, 0
    %p81 = por %p79, %p80
    %p82 = scmp.ne.s32.totalorder %s68, %s69
    %p83 = scmp.eq.s32.totalorder %s14, 3
    %p84 = por %p82, %p83
    %p86 = scmp.ne.s32.totalorder %s69, %s85
    %p87 = scmp.eq.s32.totalorder %s14, 0
    %p88 = por %p86, %p87
    %p89 = scmp.le.s32.totalorder 1, %s8
    %p90 = scmp.lt.s32.totalorder %s8, 5
    %p91 = pnand %p89, %p90
    %p92 = pneg %p91
    // Predicated region
    $region9: #{generator_forward.26} parent=5 // pred_check
      _
    $region10: #{generator_forward.26} parent=5 // pred_check_branch
      %94 = sbr.rel (%p91) target = $region12
    $region11: #{generator_forward.26} parent=5 // pred_region
      %s95 = ssub.s32 %s8, 1
      // Predicated region
      $region13: #{generator_forward.26} parent=11 // pred_check
        %p96 = pneg %p55
      $region14: #{generator_forward.26} parent=11 // pred_check_branch
        %98 = sbr.rel (%p96) target = $region16
      $region15: #{generator_forward.26} parent=11 // pred_region
        _
      $region16: #{generator_forward.26} parent=11 // pred_fallthru
        _
    $region12: #{generator_forward.26} parent=5 // pred_fallthru
      _
    %p99 = scmp.lt.s32.totalorder %s8, 4
    // Predicated region
    $region17: #{generator_forward.26} parent=5 // pred_check
      %p100 = pneg %p99
    $region18: #{generator_forward.26} parent=5 // pred_check_branch
      %102 = sbr.rel (%p100) target = $region20
    $region19: #{generator_forward.26} parent=5 // pred_region
      // Predicated region
      $region21: #{generator_forward.26} parent=19 // pred_check
        %p103 = pneg %p28
      $region22: #{generator_forward.26} parent=19 // pred_check_branch
        %105 = sbr.rel (%p103) target = $region24
      $region23: #{generator_forward.26} parent=19 // pred_region
        %s106 = smul.u32 64, %s8
        %p107 = scmp.lt.s32.totalorder %s106, 255
        %s108 = scalar_select %p107, %s106, 255
        %s109 = smul.addr %s108, 4
        %s110 = scalar_lea.vmem %s0, %s109
        %s111 = smul.u32 64, %s8
      $region24: #{generator_forward.26} parent=19 // pred_fallthru
        _
    $region20: #{generator_forward.26} parent=5 // pred_fallthru
      _
    %p112 = scmp.le.s32.totalorder 1, %s8
    %p113 = scmp.lt.s32.totalorder %s8, 5
    %p114 = pnand %p112, %p113
    %p115 = pneg %p114
    // Predicated region
    $region25: #{generator_forward.26} parent=5 // pred_check
      _
    $region26: #{generator_forward.26} parent=5 // pred_check_branch
      %117 = sbr.rel (%p114) target = $region28
    $region27: #{generator_forward.26} parent=5 // pred_region
      %s118 = ssub.s32 %s8, 1
      %s119 = smul.u32 64, %s13
      %p120 = scmp.lt.s32.totalorder %s119, 255
      %s121 = scalar_select %p120, %s119, 255
      %s122 = smul.addr %s121, 4
      %s123 = scalar_lea.vmem %s0, %s122
      %p124 = pneg %p34
      %p125 = pneg %p31
      %p126 = pneg %p55
      %p127 = pneg %p52
      %p128 = pneg %p81
      %p129 = pneg %p78
      %s130 = smul.u32 64, %s13
      %p131 = scmp.lt.s32.totalorder %s130, 255
      %s132 = scalar_select %p131, %s130, 255
      %s133 = smul.addr %s132, 4
      %s134 = scalar_lea.vmem %s2, %s133
      %s135 = smul.u32 64, %s13
      %p136 = scmp.lt.s32.totalorder %s135, 255
      %s137 = scalar_select %p136, %s135, 255
      %s138 = smul.addr %s137, 4
      %s139 = scalar_lea.vmem %s0, %s138
      %s140 = smul.u32 64, %s13
      %s141 = smul.u32 64, %s13
      %p142 = scmp.lt.s32.totalorder %s141, 255
      %s143 = scalar_select %p142, %s141, 255
      %s144 = smul.addr %s143, 4
      %s145 = scalar_lea.vmem %s2, %s144
      %s146 = smul.u32 64, %s13
      %v148 = vld [vmem:[%s139] sm:$0xf]
      %v149 = vld [vmem:[%s139 + $0x4] sm:$0xf]
      %v150 = vld [vmem:[%s139 + $0x8] sm:$0xf]
      %v151 = vld [vmem:[%s139 + $0xc] sm:$0xf]
      %v152 = vld [vmem:[%s139 + $0x10] sm:$0xf]
      %v153 = vld [vmem:[%s139 + $0x14] sm:$0xf]
      %v154 = vld [vmem:[%s139 + $0x18] sm:$0xf]
      %v155 = vld [vmem:[%s139 + $0x1c] sm:$0xf]
      %v156 = vld [vmem:[%s139 + $0x20] sm:$0xf]
      %v157 = vld [vmem:[%s139 + $0x24] sm:$0xf]
      %v158 = vld [vmem:[%s139 + $0x28] sm:$0xf]
      %v159 = vld [vmem:[%s139 + $0x2c] sm:$0xf]
      %v160 = vld [vmem:[%s139 + $0x30] sm:$0xf]
      %v161 = vld [vmem:[%s139 + $0x34] sm:$0xf]
      %v162 = vld [vmem:[%s139 + $0x38] sm:$0xf]
      %v163 = vld [vmem:[%s139 + $0x3c] sm:$0xf]
      %v164 = vld [vmem:[%s139 + $0x40] sm:$0xf]
      %v165 = vld [vmem:[%s139 + $0x44] sm:$0xf]
      %v166 = vld [vmem:[%s139 + $0x48] sm:$0xf]
      %v167 = vld [vmem:[%s139 + $0x4c] sm:$0xf]
      %v168 = vld [vmem:[%s139 + $0x50] sm:$0xf]
      %v169 = vld [vmem:[%s139 + $0x54] sm:$0xf]
      %v170 = vld [vmem:[%s139 + $0x58] sm:$0xf]
      %v171 = vld [vmem:[%s139 + $0x5c] sm:$0xf]
      %v172 = vld [vmem:[%s139 + $0x60] sm:$0xf]
      %v173 = vld [vmem:[%s139 + $0x64] sm:$0xf]
      %v174 = vld [vmem:[%s139 + $0x68] sm:$0xf]
      %v175 = vld [vmem:[%s139 + $0x6c] sm:$0xf]
      %v176 = vld [vmem:[%s139 + $0x70] sm:$0xf]
      %v177 = vld [vmem:[%s139 + $0x74] sm:$0xf]
      %v178 = vld [vmem:[%s139 + $0x78] sm:$0xf]
      %v179 = vld [vmem:[%s139 + $0x7c] sm:$0xf]
      %v180 = vld [vmem:[%s139 + $0x80] sm:$0xf]
      %v181 = vld [vmem:[%s139 + $0x84] sm:$0xf]
      %v182 = vld [vmem:[%s139 + $0x88] sm:$0xf]
      %v183 = vld [vmem:[%s139 + $0x8c] sm:$0xf]
      %v184 = vld [vmem:[%s139 + $0x90] sm:$0xf]
      %v185 = vld [vmem:[%s139 + $0x94] sm:$0xf]
      %v186 = vld [vmem:[%s139 + $0x98] sm:$0xf]
      %v187 = vld [vmem:[%s139 + $0x9c] sm:$0xf]
      %v188 = vld [vmem:[%s139 + $0xa0] sm:$0xf]
      %v189 = vld [vmem:[%s139 + $0xa4] sm:$0xf]
      %v190 = vld [vmem:[%s139 + $0xa8] sm:$0xf]
      %v191 = vld [vmem:[%s139 + $0xac] sm:$0xf]
      %v192 = vld [vmem:[%s139 + $0xb0] sm:$0xf]
      %v193 = vld [vmem:[%s139 + $0xb4] sm:$0xf]
      %v194 = vld [vmem:[%s139 + $0xb8] sm:$0xf]
      %v195 = vld [vmem:[%s139 + $0xbc] sm:$0xf]
      %v196 = vld [vmem:[%s139 + $0xc0] sm:$0xf]
      %v197 = vld [vmem:[%s139 + $0xc4] sm:$0xf]
      %v198 = vld [vmem:[%s139 + $0xc8] sm:$0xf]
      %v199 = vld [vmem:[%s139 + $0xcc] sm:$0xf]
      %v200 = vld [vmem:[%s139 + $0xd0] sm:$0xf]
      %v201 = vld [vmem:[%s139 + $0xd4] sm:$0xf]
      %v202 = vld [vmem:[%s139 + $0xd8] sm:$0xf]
      %v203 = vld [vmem:[%s139 + $0xdc] sm:$0xf]
      %v204 = vld [vmem:[%s139 + $0xe0] sm:$0xf]
      %v205 = vld [vmem:[%s139 + $0xe4] sm:$0xf]
      %v206 = vld [vmem:[%s139 + $0xe8] sm:$0xf]
      %v207 = vld [vmem:[%s139 + $0xec] sm:$0xf]
      %v208 = vld [vmem:[%s139 + $0xf0] sm:$0xf]
      %v209 = vld [vmem:[%s139 + $0xf4] sm:$0xf]
      %v210 = vld [vmem:[%s139 + $0xf8] sm:$0xf]
      %v211 = vld [vmem:[%s139 + $0xfc] sm:$0xf]
      %v212 = vld [vmem:[%s1] sm:$0xf]
      %v213 = vld [vmem:[%s1 + $0x4] sm:$0xf]
      %v214 = vld [vmem:[%s1 + $0x8] sm:$0xf]
      %v215 = vld [vmem:[%s1 + $0xc] sm:$0xf]
      %v216 = vld [vmem:[%s1 + $0x10] sm:$0xf]
      %v217 = vld [vmem:[%s1 + $0x14] sm:$0xf]
      %v218 = vld [vmem:[%s1 + $0x18] sm:$0xf]
      %v219 = vld [vmem:[%s1 + $0x1c] sm:$0xf]
      %v220 = vld [vmem:[%s1 + $0x20] sm:$0xf]
      %v221 = vld [vmem:[%s1 + $0x24] sm:$0xf]
      %v222 = vld [vmem:[%s1 + $0x28] sm:$0xf]
      %v223 = vld [vmem:[%s1 + $0x2c] sm:$0xf]
      %v224 = vld [vmem:[%s1 + $0x30] sm:$0xf]
      %v225 = vld [vmem:[%s1 + $0x34] sm:$0xf]
      %v226 = vld [vmem:[%s1 + $0x38] sm:$0xf]
      %v227 = vld [vmem:[%s1 + $0x3c] sm:$0xf]
      %v292 = vunpack.c.l.b16 %v148
      %v293 = vunpack.c.l.b16 %v149
      %v294 = vunpack.c.l.b16 %v150
      %v295 = vunpack.c.l.b16 %v151
      %v296 = vunpack.c.l.b16 %v152
      %v297 = vunpack.c.l.b16 %v153
      %v298 = vunpack.c.l.b16 %v154
      %v299 = vunpack.c.l.b16 %v155
      %v300 = vunpack.c.l.b16 %v156
      %v301 = vunpack.c.l.b16 %v157
      %v302 = vunpack.c.l.b16 %v158
      %v303 = vunpack.c.l.b16 %v159
      %v304 = vunpack.c.l.b16 %v160
      %v305 = vunpack.c.l.b16 %v161
      %v306 = vunpack.c.l.b16 %v162
      %v307 = vunpack.c.l.b16 %v163
      %v308 = vunpack.c.l.b16 %v164
      %v309 = vunpack.c.l.b16 %v165
      %v310 = vunpack.c.l.b16 %v166
      %v311 = vunpack.c.l.b16 %v167
      %v312 = vunpack.c.l.b16 %v168
      %v313 = vunpack.c.l.b16 %v169
      %v314 = vunpack.c.l.b16 %v170
      %v315 = vunpack.c.l.b16 %v171
      %v316 = vunpack.c.l.b16 %v172
      %v317 = vunpack.c.l.b16 %v173
      %v318 = vunpack.c.l.b16 %v174
      %v319 = vunpack.c.l.b16 %v175
      %v320 = vunpack.c.l.b16 %v176
      %v321 = vunpack.c.l.b16 %v177
      %v322 = vunpack.c.l.b16 %v178
      %v323 = vunpack.c.l.b16 %v179
      %v324 = vunpack.c.l.b16 %v180
      %v325 = vunpack.c.l.b16 %v181
      %v326 = vunpack.c.l.b16 %v182
      %v327 = vunpack.c.l.b16 %v183
      %v328 = vunpack.c.l.b16 %v184
      %v329 = vunpack.c.l.b16 %v185
      %v330 = vunpack.c.l.b16 %v186
      %v331 = vunpack.c.l.b16 %v187
      %v332 = vunpack.c.l.b16 %v188
      %v333 = vunpack.c.l.b16 %v189
      %v334 = vunpack.c.l.b16 %v190
      %v335 = vunpack.c.l.b16 %v191
      %v336 = vunpack.c.l.b16 %v192
      %v337 = vunpack.c.l.b16 %v193
      %v338 = vunpack.c.l.b16 %v194
      %v339 = vunpack.c.l.b16 %v195
      %v340 = vunpack.c.l.b16 %v196
      %v341 = vunpack.c.l.b16 %v197
      %v342 = vunpack.c.l.b16 %v198
      %v343 = vunpack.c.l.b16 %v199
      %v344 = vunpack.c.l.b16 %v200
      %v345 = vunpack.c.l.b16 %v201
      %v346 = vunpack.c.l.b16 %v202
      %v347 = vunpack.c.l.b16 %v203
      %v348 = vunpack.c.l.b16 %v204
      %v349 = vunpack.c.l.b16 %v205
      %v350 = vunpack.c.l.b16 %v206
      %v351 = vunpack.c.l.b16 %v207
      %v352 = vunpack.c.l.b16 %v208
      %v353 = vunpack.c.l.b16 %v209
      %v354 = vunpack.c.l.b16 %v210
      %v355 = vunpack.c.l.b16 %v211
      %v356 = vpack.c.b16 %v293, %v292
      %v357 = vpack.c.b16 %v295, %v294
      %v358 = vpack.c.b16 %v297, %v296
      %v359 = vpack.c.b16 %v299, %v298
      %v360 = vpack.c.b16 %v301, %v300
      %v361 = vpack.c.b16 %v303, %v302
      %v362 = vpack.c.b16 %v305, %v304
      %v363 = vpack.c.b16 %v307, %v306
      %v364 = vpack.c.b16 %v309, %v308
      %v365 = vpack.c.b16 %v311, %v310
      %v366 = vpack.c.b16 %v313, %v312
      %v367 = vpack.c.b16 %v315, %v314
      %v368 = vpack.c.b16 %v317, %v316
      %v369 = vpack.c.b16 %v319, %v318
      %v370 = vpack.c.b16 %v321, %v320
      %v371 = vpack.c.b16 %v323, %v322
      %v372 = vpack.c.b16 %v325, %v324
      %v373 = vpack.c.b16 %v327, %v326
      %v374 = vpack.c.b16 %v329, %v328
      %v375 = vpack.c.b16 %v331, %v330
      %v376 = vpack.c.b16 %v333, %v332
      %v377 = vpack.c.b16 %v335, %v334
      %v378 = vpack.c.b16 %v337, %v336
      %v379 = vpack.c.b16 %v339, %v338
      %v380 = vpack.c.b16 %v341, %v340
      %v381 = vpack.c.b16 %v343, %v342
      %v382 = vpack.c.b16 %v345, %v344
      %v383 = vpack.c.b16 %v347, %v346
      %v384 = vpack.c.b16 %v349, %v348
      %v385 = vpack.c.b16 %v351, %v350
      %v386 = vpack.c.b16 %v353, %v352
      %v387 = vpack.c.b16 %v355, %v354
      %v436 = vunpack.c.l.b16 %v212
      %v437 = vunpack.c.l.b16 %v213
      %v438 = vunpack.c.l.b16 %v214
      %v439 = vunpack.c.l.b16 %v215
      %v440 = vunpack.c.l.b16 %v216
      %v441 = vunpack.c.l.b16 %v217
      %v442 = vunpack.c.l.b16 %v218
      %v443 = vunpack.c.l.b16 %v219
      %v444 = vunpack.c.l.b16 %v220
      %v445 = vunpack.c.l.b16 %v221
      %v446 = vunpack.c.l.b16 %v222
      %v447 = vunpack.c.l.b16 %v223
      %v448 = vunpack.c.l.b16 %v224
      %v449 = vunpack.c.l.b16 %v225
      %v450 = vunpack.c.l.b16 %v226
      %v451 = vunpack.c.l.b16 %v227
      %v452 = vpack.c.b16 %v437, %v436
      %v453 = vpack.c.b16 %v439, %v438
      %v454 = vpack.c.b16 %v441, %v440
      %v455 = vpack.c.b16 %v443, %v442
      %v456 = vpack.c.b16 %v445, %v444
      %v457 = vpack.c.b16 %v447, %v446
      %v458 = vpack.c.b16 %v449, %v448
      %v459 = vpack.c.b16 %v451, %v450
      %468 = vmatprep.subr.bf16.mxu0 0
      %469 = vmatpush1.bf16.msra.mxu0 %v452
      %470 = vmatprep.subr.bf16.mxu0 0
      %471 = vmatpush1.bf16.msra.mxu0 %v453
      %472 = vmatprep.subr.bf16.mxu0 0
      %473 = vmatpush1.bf16.msra.mxu0 %v454
      %474 = vmatprep.subr.bf16.mxu0 0
      %475 = vmatpush1.bf16.msra.mxu0 %v455
      %476 = vmatprep.subr.bf16.mxu0 0
      %477 = vmatpush1.bf16.msra.mxu0 %v456
      %478 = vmatprep.subr.bf16.mxu0 0
      %479 = vmatpush1.bf16.msra.mxu0 %v457
      %480 = vmatprep.subr.bf16.mxu0 0
      %481 = vmatpush1.bf16.msra.mxu0 %v458
      %482 = vmatprep.subr.bf16.mxu0 0
      %483 = vmatpush1.bf16.msra.mxu0 %v459
      %484 = vmatprep.subr.bf16.mxu0 0
      %485 = vmatpush1.bf16.msra.mxu0 0
      %486 = vmatprep.subr.bf16.mxu0 0
      %487 = vmatpush1.bf16.msra.mxu0 0
      %488 = vmatprep.subr.bf16.mxu0 0
      %489 = vmatpush1.bf16.msra.mxu0 0
      %490 = vmatprep.subr.bf16.mxu0 0
      %491 = vmatpush1.bf16.msra.mxu0 0
      %492 = vmatprep.subr.bf16.mxu0 0
      %493 = vmatpush1.bf16.msra.mxu0 0
      %494 = vmatprep.subr.bf16.mxu0 0
      %495 = vmatpush1.bf16.msra.mxu0 0
      %496 = vmatprep.subr.bf16.mxu0 0
      %497 = vmatpush1.bf16.msra.mxu0 0
      %498 = vmatprep.subr.bf16.mxu0 0
      %499 = vmatpush1.bf16.msra.mxu0 0
      %500 = vmatprep.mubr.bf16.mxu0 0
      %501 = vmatmul.mubr.bf16.gmra.mrb[0].mxu0 %v356
      %v502 = vpop.f32.mrb[0].mxu0
      %v503 = vadd.f32 0.0, %v502
      %v504 = vpop.f32.mrb[0].mxu0
      %v505 = vpop.f32.mrb[0].mxu0
      %v506 = vadd.f32 0.0, %v505
      %v507 = vpop.f32.mrb[0].mxu0
      %508 = vmatprep.mubr.bf16.mxu0 0
      %509 = vmatmul.mubr.bf16.gmra.mrb[0].mxu0 %v357
      %v510 = vpop.f32.mrb[0].mxu0
      %v511 = vadd.f32 0.0, %v510
      %v512 = vpop.f32.mrb[0].mxu0
      %v513 = vpop.f32.mrb[0].mxu0
      %v514 = vadd.f32 0.0, %v513
      %v515 = vpop.f32.mrb[0].mxu0
      %516 = vmatprep.mubr.bf16.mxu0 0
      %517 = vmatmul.mubr.bf16.gmra.mrb[0].mxu0 %v358
      %v518 = vpop.f32.mrb[0].mxu0
      %v519 = vadd.f32 0.0, %v518
      %v520 = vpop.f32.mrb[0].mxu0
      %v521 = vpop.f32.mrb[0].mxu0
      %v522 = vadd.f32 0.0, %v521
      %v523 = vpop.f32.mrb[0].mxu0
      %524 = vmatprep.mubr.bf16.mxu0 0
      %525 = vmatmul.mubr.bf16.gmra.mrb[0].mxu0 %v359
      %v526 = vpop.f32.mrb[0].mxu0
      %v527 = vadd.f32 0.0, %v526
      %v528 = vpop.f32.mrb[0].mxu0
      %v529 = vpop.f32.mrb[0].mxu0
      %v530 = vadd.f32 0.0, %v529
      %v531 = vpop.f32.mrb[0].mxu0
      %532 = vmatprep.mubr.bf16.mxu0 0
      %533 = vmatmul.mubr.bf16.gmra.mrb[0].mxu0 %v360
      %v534 = vpop.f32.mrb[0].mxu0
      %v535 = vadd.f32 0.0, %v534
      %v536 = vpop.f32.mrb[0].mxu0
      %v537 = vpop.f32.mrb[0].mxu0
      %v538 = vadd.f32 0.0, %v537
      %v539 = vpop.f32.mrb[0].mxu0
      %540 = vmatprep.mubr.bf16.mxu0 0
      %541 = vmatmul.mubr.bf16.gmra.mrb[0].mxu0 %v361
      %v542 = vpop.f32.mrb[0].mxu0
      %v543 = vadd.f32 0.0, %v542
      %v544 = vpop.f32.mrb[0].mxu0
      %v545 = vpop.f32.mrb[0].mxu0
      %v546 = vadd.f32 0.0, %v545
      %v547 = vpop.f32.mrb[0].mxu0
      %548 = vmatprep.mubr.bf16.mxu0 0
      %549 = vmatmul.mubr.bf16.gmra.mrb[0].mxu0 %v362
      %v550 = vpop.f32.mrb[0].mxu0
      %v551 = vadd.f32 0.0, %v550
      %v552 = vpop.f32.mrb[0].mxu0
      %v553 = vpop.f32.mrb[0].mxu0
      %v554 = vadd.f32 0.0, %v553
      %v555 = vpop.f32.mrb[0].mxu0
      %556 = vmatprep.mubr.bf16.mxu0 0
      %557 = vmatmul.mubr.bf16.gmra.mrb[0].mxu0 %v363
      %v558 = vpop.f32.mrb[0].mxu0
      %v559 = vadd.f32 0.0, %v558
      %v560 = vpop.f32.mrb[0].mxu0
      %v561 = vpop.f32.mrb[0].mxu0
      %v562 = vadd.f32 0.0, %v561
      %v563 = vpop.f32.mrb[0].mxu0
      %564 = vmatprep.mubr.bf16.mxu0 0
      %565 = vmatmul.mubr.bf16.gmra.mrb[0].mxu0 %v364
      %v566 = vpop.f32.mrb[0].mxu0
      %v567 = vadd.f32 0.0, %v566
      %v568 = vpop.f32.mrb[0].mxu0
      %v569 = vpop.f32.mrb[0].mxu0
      %v570 = vadd.f32 0.0, %v569
      %v571 = vpop.f32.mrb[0].mxu0
      %572 = vmatprep.mubr.bf16.mxu0 0
      %573 = vmatmul.mubr.bf16.gmra.mrb[0].mxu0 %v365
      %v574 = vpop.f32.mrb[0].mxu0
      %v575 = vadd.f32 0.0, %v574
      %v576 = vpop.f32.mrb[0].mxu0
      %v577 = vpop.f32.mrb[0].mxu0
      %v578 = vadd.f32 0.0, %v577
      %v579 = vpop.f32.mrb[0].mxu0
      %580 = vmatprep.mubr.bf16.mxu0 0
      %581 = vmatmul.mubr.bf16.gmra.mrb[0].mxu0 %v366
      %v582 = vpop.f32.mrb[0].mxu0
      %v583 = vadd.f32 0.0, %v582
      %v584 = vpop.f32.mrb[0].mxu0
      %v585 = vpop.f32.mrb[0].mxu0
      %v586 = vadd.f32 0.0, %v585
      %v587 = vpop.f32.mrb[0].mxu0
      %588 = vmatprep.mubr.bf16.mxu0 0
      %589 = vmatmul.mubr.bf16.gmra.mrb[0].mxu0 %v367
      %v590 = vpop.f32.mrb[0].mxu0
      %v591 = vadd.f32 0.0, %v590
      %v592 = vpop.f32.mrb[0].mxu0
      %v593 = vpop.f32.mrb[0].mxu0
      %v594 = vadd.f32 0.0, %v593
      %v595 = vpop.f32.mrb[0].mxu0
      %596 = vmatprep.mubr.bf16.mxu0 0
      %597 = vmatmul.mubr.bf16.gmra.mrb[0].mxu0 %v368
      %v598 = vpop.f32.mrb[0].mxu0
      %v599 = vadd.f32 0.0, %v598
      %v600 = vpop.f32.mrb[0].mxu0
      %v601 = vpop.f32.mrb[0].mxu0
      %v602 = vadd.f32 0.0, %v601
      %v603 = vpop.f32.mrb[0].mxu0
      %604 = vmatprep.mubr.bf16.mxu0 0
      %605 = vmatmul.mubr.bf16.gmra.mrb[0].mxu0 %v369
      %v606 = vpop.f32.mrb[0].mxu0
      %v607 = vadd.f32 0.0, %v606
      %v608 = vpop.f32.mrb[0].mxu0
      %v609 = vpop.f32.mrb[0].mxu0
      %v610 = vadd.f32 0.0, %v609
      %v611 = vpop.f32.mrb[0].mxu0
      %612 = vmatprep.mubr.bf16.mxu0 0
      %613 = vmatmul.mubr.bf16.gmra.mrb[0].mxu0 %v370
      %v614 = vpop.f32.mrb[0].mxu0
      %v615 = vadd.f32 0.0, %v614
      %v616 = vpop.f32.mrb[0].mxu0
      %v617 = vpop.f32.mrb[0].mxu0
      %v618 = vadd.f32 0.0, %v617
      %v619 = vpop.f32.mrb[0].mxu0
      %620 = vmatprep.mubr.bf16.mxu0 0
      %621 = vmatmul.mubr.bf16.gmra.mrb[0].mxu0 %v371
      %v622 = vpop.f32.mrb[0].mxu0
      %v623 = vadd.f32 0.0, %v622
      %v624 = vpop.f32.mrb[0].mxu0
      %v625 = vpop.f32.mrb[0].mxu0
      %v626 = vadd.f32 0.0, %v625
      %v627 = vpop.f32.mrb[0].mxu0
      %628 = vmatprep.mubr.bf16.mxu0 0
      %629 = vmatmul.mubr.bf16.gmra.mrb[0].mxu0 %v372
      %v630 = vpop.f32.mrb[0].mxu0
      %v631 = vadd.f32 0.0, %v630
      %v632 = vpop.f32.mrb[0].mxu0
      %v633 = vpop.f32.mrb[0].mxu0
      %v634 = vadd.f32 0.0, %v633
      %v635 = vpop.f32.mrb[0].mxu0
      %636 = vmatprep.mubr.bf16.mxu0 0
      %637 = vmatmul.mubr.bf16.gmra.mrb[0].mxu0 %v373
      %v638 = vpop.f32.mrb[0].mxu0
      %v639 = vadd.f32 0.0, %v638
      %v640 = vpop.f32.mrb[0].mxu0
      %v641 = vpop.f32.mrb[0].mxu0
      %v642 = vadd.f32 0.0, %v641
      %v643 = vpop.f32.mrb[0].mxu0
      %644 = vmatprep.mubr.bf16.mxu0 0
      %645 = vmatmul.mubr.bf16.gmra.mrb[0].mxu0 %v374
      %v646 = vpop.f32.mrb[0].mxu0
      %v647 = vadd.f32 0.0, %v646
      %v648 = vpop.f32.mrb[0].mxu0
      %v649 = vpop.f32.mrb[0].mxu0
      %v650 = vadd.f32 0.0, %v649
      %v651 = vpop.f32.mrb[0].mxu0
      %652 = vmatprep.mubr.bf16.mxu0 0
      %653 = vmatmul.mubr.bf16.gmra.mrb[0].mxu0 %v375
      %v654 = vpop.f32.mrb[0].mxu0
      %v655 = vadd.f32 0.0, %v654
      %v656 = vpop.f32.mrb[0].mxu0
      %v657 = vpop.f32.mrb[0].mxu0
      %v658 = vadd.f32 0.0, %v657
      %v659 = vpop.f32.mrb[0].mxu0
      %660 = vmatprep.mubr.bf16.mxu0 0
      %661 = vmatmul.mubr.bf16.gmra.mrb[0].mxu0 %v376
      %v662 = vpop.f32.mrb[0].mxu0
      %v663 = vadd.f32 0.0, %v662
      %v664 = vpop.f32.mrb[0].mxu0
      %v665 = vpop.f32.mrb[0].mxu0
      %v666 = vadd.f32 0.0, %v665
      %v667 = vpop.f32.mrb[0].mxu0
      %668 = vmatprep.mubr.bf16.mxu0 0
      %669 = vmatmul.mubr.bf16.gmra.mrb[0].mxu0 %v377
      %v670 = vpop.f32.mrb[0].mxu0
      %v671 = vadd.f32 0.0, %v670
      %v672 = vpop.f32.mrb[0].mxu0
      %v673 = vpop.f32.mrb[0].mxu0
      %v674 = vadd.f32 0.0, %v673
      %v675 = vpop.f32.mrb[0].mxu0
      %676 = vmatprep.mubr.bf16.mxu0 0
      %677 = vmatmul.mubr.bf16.gmra.mrb[0].mxu0 %v378
      %v678 = vpop.f32.mrb[0].mxu0
      %v679 = vadd.f32 0.0, %v678
      %v680 = vpop.f32.mrb[0].mxu0
      %v681 = vpop.f32.mrb[0].mxu0
      %v682 = vadd.f32 0.0, %v681
      %v683 = vpop.f32.mrb[0].mxu0
      %684 = vmatprep.mubr.bf16.mxu0 0
      %685 = vmatmul.mubr.bf16.gmra.mrb[0].mxu0 %v379
      %v686 = vpop.f32.mrb[0].mxu0
      %v687 = vadd.f32 0.0, %v686
      %v688 = vpop.f32.mrb[0].mxu0
      %v689 = vpop.f32.mrb[0].mxu0
      %v690 = vadd.f32 0.0, %v689
      %v691 = vpop.f32.mrb[0].mxu0
      %692 = vmatprep.mubr.bf16.mxu0 0
      %693 = vmatmul.mubr.bf16.gmra.mrb[0].mxu0 %v380
      %v694 = vpop.f32.mrb[0].mxu0
      %v695 = vadd.f32 0.0, %v694
      %v696 = vpop.f32.mrb[0].mxu0
      %v697 = vpop.f32.mrb[0].mxu0
      %v698 = vadd.f32 0.0, %v697
      %v699 = vpop.f32.mrb[0].mxu0
      %700 = vmatprep.mubr.bf16.mxu0 0
      %701 = vmatmul.mubr.bf16.gmra.mrb[0].mxu0 %v381
      %v702 = vpop.f32.mrb[0].mxu0
      %v703 = vadd.f32 0.0, %v702
      %v704 = vpop.f32.mrb[0].mxu0
      %v705 = vpop.f32.mrb[0].mxu0
      %v706 = vadd.f32 0.0, %v705
      %v707 = vpop.f32.mrb[0].mxu0
      %708 = vmatprep.mubr.bf16.mxu0 0
      %709 = vmatmul.mubr.bf16.gmra.mrb[0].mxu0 %v382
      %v710 = vpop.f32.mrb[0].mxu0
      %v711 = vadd.f32 0.0, %v710
      %v712 = vpop.f32.mrb[0].mxu0
      %v713 = vpop.f32.mrb[0].mxu0
      %v714 = vadd.f32 0.0, %v713
      %v715 = vpop.f32.mrb[0].mxu0
      %716 = vmatprep.mubr.bf16.mxu0 0
      %717 = vmatmul.mubr.bf16.gmra.mrb[0].mxu0 %v383
      %v718 = vpop.f32.mrb[0].mxu0
      %v719 = vadd.f32 0.0, %v718
      %v720 = vpop.f32.mrb[0].mxu0
      %v721 = vpop.f32.mrb[0].mxu0
      %v722 = vadd.f32 0.0, %v721
      %v723 = vpop.f32.mrb[0].mxu0
      %724 = vmatprep.mubr.bf16.mxu0 0
      %725 = vmatmul.mubr.bf16.gmra.mrb[0].mxu0 %v384
      %v726 = vpop.f32.mrb[0].mxu0
      %v727 = vadd.f32 0.0, %v726
      %v728 = vpop.f32.mrb[0].mxu0
      %v729 = vpop.f32.mrb[0].mxu0
      %v730 = vadd.f32 0.0, %v729
      %v731 = vpop.f32.mrb[0].mxu0
      %732 = vmatprep.mubr.bf16.mxu0 0
      %733 = vmatmul.mubr.bf16.gmra.mrb[0].mxu0 %v385
      %v734 = vpop.f32.mrb[0].mxu0
      %v735 = vadd.f32 0.0, %v734
      %v736 = vpop.f32.mrb[0].mxu0
      %v737 = vpop.f32.mrb[0].mxu0
      %v738 = vadd.f32 0.0, %v737
      %v739 = vpop.f32.mrb[0].mxu0
      %740 = vmatprep.mubr.bf16.mxu0 0
      %741 = vmatmul.mubr.bf16.gmra.mrb[0].mxu0 %v386
      %v742 = vpop.f32.mrb[0].mxu0
      %v743 = vadd.f32 0.0, %v742
      %v744 = vpop.f32.mrb[0].mxu0
      %v745 = vpop.f32.mrb[0].mxu0
      %v746 = vadd.f32 0.0, %v745
      %v747 = vpop.f32.mrb[0].mxu0
      %748 = vmatprep.mubr.bf16.mxu0 0
      %749 = vmatmul.mubr.bf16.gmra.mrb[0].mxu0 %v387
      %v750 = vpop.f32.mrb[0].mxu0
      %v751 = vadd.f32 0.0, %v750
      %v752 = vpop.f32.mrb[0].mxu0
      %v753 = vpop.f32.mrb[0].mxu0
      %v754 = vadd.f32 0.0, %v753
      %v755 = vpop.f32.mrb[0].mxu0
      %756 = vdwg.mxu0
      %v757 = vpack.c.bf16 %v506, %v503
      %v758 = vpack.c.bf16 %v514, %v511
      %v759 = vpack.c.bf16 %v522, %v519
      %v760 = vpack.c.bf16 %v530, %v527
      %v761 = vpack.c.bf16 %v538, %v535
      %v762 = vpack.c.bf16 %v546, %v543
      %v763 = vpack.c.bf16 %v554, %v551
      %v764 = vpack.c.bf16 %v562, %v559
      %v765 = vpack.c.bf16 %v570, %v567
      %v766 = vpack.c.bf16 %v578, %v575
      %v767 = vpack.c.bf16 %v586, %v583
      %v768 = vpack.c.bf16 %v594, %v591
      %v769 = vpack.c.bf16 %v602, %v599
      %v770 = vpack.c.bf16 %v610, %v607
      %v771 = vpack.c.bf16 %v618, %v615
      %v772 = vpack.c.bf16 %v626, %v623
      %v773 = vpack.c.bf16 %v634, %v631
      %v774 = vpack.c.bf16 %v642, %v639
      %v775 = vpack.c.bf16 %v650, %v647
      %v776 = vpack.c.bf16 %v658, %v655
      %v777 = vpack.c.bf16 %v666, %v663
      %v778 = vpack.c.bf16 %v674, %v671
      %v779 = vpack.c.bf16 %v682, %v679
      %v780 = vpack.c.bf16 %v690, %v687
      %v781 = vpack.c.bf16 %v698, %v695
      %v782 = vpack.c.bf16 %v706, %v703
      %v783 = vpack.c.bf16 %v714, %v711
      %v784 = vpack.c.bf16 %v722, %v719
      %v785 = vpack.c.bf16 %v730, %v727
      %v786 = vpack.c.bf16 %v738, %v735
      %v787 = vpack.c.bf16 %v746, %v743
      %v788 = vpack.c.bf16 %v754, %v751
      %v821 = vunpack.c.l.b16 %v757
      %v822 = vunpack.c.h.b16 %v757
      %v823 = vunpack.c.l.b16 %v758
      %v824 = vunpack.c.h.b16 %v758
      %v825 = vunpack.c.l.b16 %v759
      %v826 = vunpack.c.h.b16 %v759
      %v827 = vunpack.c.l.b16 %v760
      %v828 = vunpack.c.h.b16 %v760
      %v829 = vunpack.c.l.b16 %v761
      %v830 = vunpack.c.h.b16 %v761
      %v831 = vunpack.c.l.b16 %v762
      %v832 = vunpack.c.h.b16 %v762
      %v833 = vunpack.c.l.b16 %v763
      %v834 = vunpack.c.h.b16 %v763
      %v835 = vunpack.c.l.b16 %v764
      %v836 = vunpack.c.h.b16 %v764
      %v837 = vunpack.c.l.b16 %v765
      %v838 = vunpack.c.h.b16 %v765
      %v839 = vunpack.c.l.b16 %v766
      %v840 = vunpack.c.h.b16 %v766
      %v841 = vunpack.c.l.b16 %v767
      %v842 = vunpack.c.h.b16 %v767
      %v843 = vunpack.c.l.b16 %v768
      %v844 = vunpack.c.h.b16 %v768
      %v845 = vunpack.c.l.b16 %v769
      %v846 = vunpack.c.h.b16 %v769
      %v847 = vunpack.c.l.b16 %v770
      %v848 = vunpack.c.h.b16 %v770
      %v849 = vunpack.c.l.b16 %v771
      %v850 = vunpack.c.h.b16 %v771
      %v851 = vunpack.c.l.b16 %v772
      %v852 = vunpack.c.h.b16 %v772
      %v853 = vunpack.c.l.b16 %v773
      %v854 = vunpack.c.h.b16 %v773
      %v855 = vunpack.c.l.b16 %v774
      %v856 = vunpack.c.h.b16 %v774
      %v857 = vunpack.c.l.b16 %v775
      %v858 = vunpack.c.h.b16 %v775
      %v859 = vunpack.c.l.b16 %v776
      %v860 = vunpack.c.h.b16 %v776
      %v861 = vunpack.c.l.b16 %v777
      %v862 = vunpack.c.h.b16 %v777
      %v863 = vunpack.c.l.b16 %v778
      %v864 = vunpack.c.h.b16 %v778
      %v865 = vunpack.c.l.b16 %v779
      %v866 = vunpack.c.h.b16 %v779
      %v867 = vunpack.c.l.b16 %v780
      %v868 = vunpack.c.h.b16 %v780
      %v869 = vunpack.c.l.b16 %v781
      %v870 = vunpack.c.h.b16 %v781
      %v871 = vunpack.c.l.b16 %v782
      %v872 = vunpack.c.h.b16 %v782
      %v873 = vunpack.c.l.b16 %v783
      %v874 = vunpack.c.h.b16 %v783
      %v875 = vunpack.c.l.b16 %v784
      %v876 = vunpack.c.h.b16 %v784
      %v877 = vunpack.c.l.b16 %v785
      %v878 = vunpack.c.h.b16 %v785
      %v879 = vunpack.c.l.b16 %v786
      %v880 = vunpack.c.h.b16 %v786
      %v881 = vunpack.c.l.b16 %v787
      %v882 = vunpack.c.h.b16 %v787
      %v883 = vunpack.c.l.b16 %v788
      %v884 = vunpack.c.h.b16 %v788
      %v885 = vpack.c.b16 %v821, %v821
      %v886 = vpack.c.b16 %v822, %v822
      %v887 = vpack.c.b16 %v823, %v823
      %v888 = vpack.c.b16 %v824, %v824
      %v889 = vpack.c.b16 %v825, %v825
      %v890 = vpack.c.b16 %v826, %v826
      %v891 = vpack.c.b16 %v827, %v827
      %v892 = vpack.c.b16 %v828, %v828
      %v893 = vpack.c.b16 %v829, %v829
      %v894 = vpack.c.b16 %v830, %v830
      %v895 = vpack.c.b16 %v831, %v831
      %v896 = vpack.c.b16 %v832, %v832
      %v897 = vpack.c.b16 %v833, %v833
      %v898 = vpack.c.b16 %v834, %v834
      %v899 = vpack.c.b16 %v835, %v835
      %v900 = vpack.c.b16 %v836, %v836
      %v901 = vpack.c.b16 %v837, %v837
      %v902 = vpack.c.b16 %v838, %v838
      %v903 = vpack.c.b16 %v839, %v839
      %v904 = vpack.c.b16 %v840, %v840
      %v905 = vpack.c.b16 %v841, %v841
      %v906 = vpack.c.b16 %v842, %v842
      %v907 = vpack.c.b16 %v843, %v843
      %v908 = vpack.c.b16 %v844, %v844
      %v909 = vpack.c.b16 %v845, %v845
      %v910 = vpack.c.b16 %v846, %v846
      %v911 = vpack.c.b16 %v847, %v847
      %v912 = vpack.c.b16 %v848, %v848
      %v913 = vpack.c.b16 %v849, %v849
      %v914 = vpack.c.b16 %v850, %v850
      %v915 = vpack.c.b16 %v851, %v851
      %v916 = vpack.c.b16 %v852, %v852
      %v917 = vpack.c.b16 %v853, %v853
      %v918 = vpack.c.b16 %v854, %v854
      %v919 = vpack.c.b16 %v855, %v855
      %v920 = vpack.c.b16 %v856, %v856
      %v921 = vpack.c.b16 %v857, %v857
      %v922 = vpack.c.b16 %v858, %v858
      %v923 = vpack.c.b16 %v859, %v859
      %v924 = vpack.c.b16 %v860, %v860
      %v925 = vpack.c.b16 %v861, %v861
      %v926 = vpack.c.b16 %v862, %v862
      %v927 = vpack.c.b16 %v863, %v863
      %v928 = vpack.c.b16 %v864, %v864
      %v929 = vpack.c.b16 %v865, %v865
      %v930 = vpack.c.b16 %v866, %v866
      %v931 = vpack.c.b16 %v867, %v867
      %v932 = vpack.c.b16 %v868, %v868
      %v933 = vpack.c.b16 %v869, %v869
      %v934 = vpack.c.b16 %v870, %v870
      %v935 = vpack.c.b16 %v871, %v871
      %v936 = vpack.c.b16 %v872, %v872
      %v937 = vpack.c.b16 %v873, %v873
      %v938 = vpack.c.b16 %v874, %v874
      %v939 = vpack.c.b16 %v875, %v875
      %v940 = vpack.c.b16 %v876, %v876
      %v941 = vpack.c.b16 %v877, %v877
      %v942 = vpack.c.b16 %v878, %v878
      %v943 = vpack.c.b16 %v879, %v879
      %v944 = vpack.c.b16 %v880, %v880
      %v945 = vpack.c.b16 %v881, %v881
      %v946 = vpack.c.b16 %v882, %v882
      %v947 = vpack.c.b16 %v883, %v883
      %v948 = vpack.c.b16 %v884, %v884
      %1013 = vst [vmem:[%s145] sm:$0xf] %v885
      %1014 = vst [vmem:[%s145 + $0x4] sm:$0xf] %v886
      %1015 = vst [vmem:[%s145 + $0x8] sm:$0xf] %v887
      %1016 = vst [vmem:[%s145 + $0xc] sm:$0xf] %v888
      %1017 = vst [vmem:[%s145 + $0x10] sm:$0xf] %v889
      %1018 = vst [vmem:[%s145 + $0x14] sm:$0xf] %v890
      %1019 = vst [vmem:[%s145 + $0x18] sm:$0xf] %v891
      %1020 = vst [vmem:[%s145 + $0x1c] sm:$0xf] %v892
      %1021 = vst [vmem:[%s145 + $0x20] sm:$0xf] %v893
      %1022 = vst [vmem:[%s145 + $0x24] sm:$0xf] %v894
      %1023 = vst [vmem:[%s145 + $0x28] sm:$0xf] %v895
      %1024 = vst [vmem:[%s145 + $0x2c] sm:$0xf] %v896
      %1025 = vst [vmem:[%s145 + $0x30] sm:$0xf] %v897
      %1026 = vst [vmem:[%s145 + $0x34] sm:$0xf] %v898
      %1027 = vst [vmem:[%s145 + $0x38] sm:$0xf] %v899
      %1028 = vst [vmem:[%s145 + $0x3c] sm:$0xf] %v900
      %1029 = vst [vmem:[%s145 + $0x40] sm:$0xf] %v901
      %1030 = vst [vmem:[%s145 + $0x44] sm:$0xf] %v902
      %1031 = vst [vmem:[%s145 + $0x48] sm:$0xf] %v903
      %1032 = vst [vmem:[%s145 + $0x4c] sm:$0xf] %v904
      %1033 = vst [vmem:[%s145 + $0x50] sm:$0xf] %v905
      %1034 = vst [vmem:[%s145 + $0x54] sm:$0xf] %v906
      %1035 = vst [vmem:[%s145 + $0x58] sm:$0xf] %v907
      %1036 = vst [vmem:[%s145 + $0x5c] sm:$0xf] %v908
      %1037 = vst [vmem:[%s145 + $0x60] sm:$0xf] %v909
      %1038 = vst [vmem:[%s145 + $0x64] sm:$0xf] %v910
      %1039 = vst [vmem:[%s145 + $0x68] sm:$0xf] %v911
      %1040 = vst [vmem:[%s145 + $0x6c] sm:$0xf] %v912
      %1041 = vst [vmem:[%s145 + $0x70] sm:$0xf] %v913
      %1042 = vst [vmem:[%s145 + $0x74] sm:$0xf] %v914
      %1043 = vst [vmem:[%s145 + $0x78] sm:$0xf] %v915
      %1044 = vst [vmem:[%s145 + $0x7c] sm:$0xf] %v916
      %1045 = vst [vmem:[%s145 + $0x80] sm:$0xf] %v917
      %1046 = vst [vmem:[%s145 + $0x84] sm:$0xf] %v918
      %1047 = vst [vmem:[%s145 + $0x88] sm:$0xf] %v919
      %1048 = vst [vmem:[%s145 + $0x8c] sm:$0xf] %v920
      %1049 = vst [vmem:[%s145 + $0x90] sm:$0xf] %v921
      %1050 = vst [vmem:[%s145 + $0x94] sm:$0xf] %v922
      %1051 = vst [vmem:[%s145 + $0x98] sm:$0xf] %v923
      %1052 = vst [vmem:[%s145 + $0x9c] sm:$0xf] %v924
      %1053 = vst [vmem:[%s145 + $0xa0] sm:$0xf] %v925
      %1054 = vst [vmem:[%s145 + $0xa4] sm:$0xf] %v926
      %1055 = vst [vmem:[%s145 + $0xa8] sm:$0xf] %v927
      %1056 = vst [vmem:[%s145 + $0xac] sm:$0xf] %v928
      %1057 = vst [vmem:[%s145 + $0xb0] sm:$0xf] %v929
      %1058 = vst [vmem:[%s145 + $0xb4] sm:$0xf] %v930
      %1059 = vst [vmem:[%s145 + $0xb8] sm:$0xf] %v931
      %1060 = vst [vmem:[%s145 + $0xbc] sm:$0xf] %v932
      %1061 = vst [vmem:[%s145 + $0xc0] sm:$0xf] %v933
      %1062 = vst [vmem:[%s145 + $0xc4] sm:$0xf] %v934
      %1063 = vst [vmem:[%s145 + $0xc8] sm:$0xf] %v935
      %1064 = vst [vmem:[%s145 + $0xcc] sm:$0xf] %v936
      %1065 = vst [vmem:[%s145 + $0xd0] sm:$0xf] %v937
      %1066 = vst [vmem:[%s145 + $0xd4] sm:$0xf] %v938
      %1067 = vst [vmem:[%s145 + $0xd8] sm:$0xf] %v939
      %1068 = vst [vmem:[%s145 + $0xdc] sm:$0xf] %v940
      %1069 = vst [vmem:[%s145 + $0xe0] sm:$0xf] %v941
      %1070 = vst [vmem:[%s145 + $0xe4] sm:$0xf] %v942
      %1071 = vst [vmem:[%s145 + $0xe8] sm:$0xf] %v943
      %1072 = vst [vmem:[%s145 + $0xec] sm:$0xf] %v944
      %1073 = vst [vmem:[%s145 + $0xf0] sm:$0xf] %v945
      %1074 = vst [vmem:[%s145 + $0xf4] sm:$0xf] %v946
      %1075 = vst [vmem:[%s145 + $0xf8] sm:$0xf] %v947
      %1076 = vst [vmem:[%s145 + $0xfc] sm:$0xf] %v948
      %s1077 = smul.u32 64, %s13
      %p1078 = scmp.lt.s32.totalorder %s1077, 255
      %s1079 = scalar_select %p1078, %s1077, 255
      %s1080 = smul.addr %s1079, 4
      %s1081 = scalar_lea.vmem %s2, %s1080
      // Predicated region
      $region29: #{generator_forward.26} parent=27 // pred_check
        %p1082 = pneg %p78
      $region30: #{generator_forward.26} parent=27 // pred_check_branch
        %1084 = sbr.rel (%p1082) target = $region32
      $region31: #{generator_forward.26} parent=27 // pred_region
        %s1085 = smul.u32 64, %s13
      $region32: #{generator_forward.26} parent=27 // pred_fallthru
        _
    $region28: #{generator_forward.26} parent=5 // pred_fallthru
      _
    %p1086 = scmp.le.s32.totalorder 2, %s8
    // Predicated region
    $region33: #{generator_forward.26} parent=5 // pred_check
      %p1087 = pneg %p1086
    $region34: #{generator_forward.26} parent=5 // pred_check_branch
      %1089 = sbr.rel (%p1087) target = $region36
    $region35: #{generator_forward.26} parent=5 // pred_region
      %s1090 = ssub.s32 %s8, 2
      // Predicated region
      $region37: #{generator_forward.26} parent=35 // pred_check
        %p1091 = pneg %p84
      $region38: #{generator_forward.26} parent=35 // pred_check_branch
        %1093 = sbr.rel (%p1091) target = $region40
      $region39: #{generator_forward.26} parent=35 // pred_region
        %s1094 = smul.u32 64, %s14
        %p1095 = scmp.lt.s32.totalorder %s1094, 255
        %s1096 = scalar_select %p1095, %s1094, 255
        %s1097 = smul.addr %s1096, 4
        %s1098 = scalar_lea.vmem %s2, %s1097
      $region40: #{generator_forward.26} parent=35 // pred_fallthru
        _
    $region36: #{generator_forward.26} parent=5 // pred_fallthru
      _
  $region6: #{generator_forward.26} parent=0 // loop_footer
    %s12 = sadd.s32 1, %s8
  $region7: #{generator_forward.26} parent=0 // loop_footer_branch
    %7 = sbr.rel target = $region3
  $region8: #{generator_forward.26} parent=0 // loop_exit
    _

// kernel: generator_forward.27
$region0: #{generator_forward.27}
  #allocation0 [shape = 'u32[]', space=smem, size = 0x4, offset = 0x4, fixed_abs, tag = 'smem constant byte address 0x4 - core index']
  #allocation1 [shape = 'u32[144,128]{1,0:T(1,128)}', space=vmem, size = 0x12000, scoped, tag = 'internal scratch']
  %s0 = inlined_call_operand.vmem [shape: bf16[4,2048], index: 0, kind: input, shape index: {}]
  %s1 = inlined_call_operand.vmem [shape: f32[4,2048], index: 1, kind: output, shape index: {}]
  %s2 = sld [smem:[#allocation0]]
  $region14: #{generator_forward.27} parent=0
    _
  %s4 = ssub.s32 1, %s2
  %s5 = scalar_select 0, %s4, %s2
  // Predicated region
  $region2: #{generator_forward.27} parent=0 // pred_check
    _
  $region3: #{generator_forward.27} parent=0 // pred_check_branch
    %7 = sbr.rel (0) target = $region5
  $region4: #{generator_forward.27} parent=0 // pred_region
    _
  $region5: #{generator_forward.27} parent=0 // pred_fallthru
    _
  %v8 = vld [vmem:[%s0] sm:$0xff]
  %v9 = vld [vmem:[%s0 + $0x8] sm:$0xff]
  %v10 = vld [vmem:[%s0 + $0x10] sm:$0xff]
  %v11 = vld [vmem:[%s0 + $0x18] sm:$0xff]
  %v12 = vunpack.c.l.bf16 %v8
  %v13 = vunpack.c.h.bf16 %v8
  %v14 = vunpack.c.l.bf16 %v9
  %v15 = vunpack.c.h.bf16 %v9
  %v16 = vunpack.c.l.bf16 %v10
  %v17 = vunpack.c.h.bf16 %v10
  %v18 = vunpack.c.l.bf16 %v11
  %v19 = vunpack.c.h.bf16 %v11
  %v20 = vtanh.pop %v12
  %v21 = vtanh.pop %v13
  %v22 = vtanh.pop %v14
  %v23 = vtanh.pop %v15
  %v24 = vtanh.pop %v16
  %v25 = vtanh.pop %v17
  %v26 = vtanh.pop %v18
  %v27 = vtanh.pop %v19
  %28 = vst [vmem:[%s1] sm:$0xff] %v20
  %29 = vst [vmem:[%s1 + $0x8] sm:$0xff] %v21
  %30 = vst [vmem:[%s1 + $0x10] sm:$0xff] %v22
  %31 = vst [vmem:[%s1 + $0x18] sm:$0xff] %v23
  %32 = vst [vmem:[%s1 + $0x20] sm:$0xff] %v24
  %33 = vst [vmem:[%s1 + $0x28] sm:$0xff] %v25
  %34 = vst [vmem:[%s1 + $0x30] sm:$0xff] %v26
  %35 = vst [vmem:[%s1 + $0x38] sm:$0xff] %v27
  // Predicated region
  $region6: #{generator_forward.27} parent=0 // pred_check
    _
  $region7: #{generator_forward.27} parent=0 // pred_check_branch
    %37 = sbr.rel (0) target = $region9
  $region8: #{generator_forward.27} parent=0 // pred_region
    _
  $region9: #{generator_forward.27} parent=0 // pred_fallthru
    _
  // Predicated region
  $region10: #{generator_forward.27} parent=0 // pred_check
    _
  $region11: #{generator_forward.27} parent=0 // pred_check_branch
    %39 = sbr.rel (0) target = $region13
  $region12: #{generator_forward.27} parent=0 // pred_region
    _
  $region13: #{generator_forward.27} parent=0 // pred_fallthru
    _

</llo_original>
